<compile_context>
chip_gen: v6e
topology: v6e:2x2x1
jax: 0.10.0
libtpu: 0.0.40
codegen_flags: <defaults>
</compile_context>

<pallas_src>
import jax
import jax.numpy as jnp
import numpy as np
from jax import lax
from jax.experimental import pallas as pl
from jax.experimental.pallas import tpu as pltpu

NEG_SLOPE = 0.01   # nn.LeakyReLU default negative_slope
BN_EPS = 1e-5      # nn.BatchNorm2d default eps


# -----------------------------------------------------------------------------
# Fused forward kernel: one grid step per batch element.
# -----------------------------------------------------------------------------
def _disc_kernel(x_ref, w1_ref, s1_ref, sh1_ref, w2_ref, s2_ref, sh2_ref,
                 l1_ref, b1_ref, l2_ref, b2_ref, o_ref,
                 pad1_ref, patch1_ref, pool1_ref,
                 pad2_ref, patch2_ref, pool2_ref, flat_ref):
    # x_ref:   (1, H, W, 3)          NHWC input tile for this batch element
    # w*_ref:  (9*Cin, C)            conv weights in im2col layout
    # s*/sh*:  (1, C)                folded BatchNorm scale / shift
    # l1_ref:  (F, Hd)  b1: (1, Hd)  lin1 (rows pre-permuted to (y,x,c) order)
    # l2_ref:  (Hd, 1)  b2: (1, 1)
    # o_ref:   (1, 1, 1)             sigmoid output for this batch element
    H, W, Cin0 = x_ref.shape[1], x_ref.shape[2], x_ref.shape[3]
    C = w1_ref.shape[1]
    H2, W2 = H // 2, W // 2
    H4, W4 = H // 4, W // 4

    def conv_bn_lrelu_pool(x_hwc, pad_ref, patch_ref, pool_ref, w_ref, s_ref, sh_ref):
        hh, ww, cin = x_hwc.shape
        # -- zero halo in VMEM (no wrapper-side jnp.pad / HBM traffic) --------
        pad_ref[...] = jnp.zeros_like(pad_ref)
        pad_ref[pl.ds(1, hh), pl.ds(1, ww), :] = x_hwc
        xp = pad_ref[...]                                   # (hh+2, ww+2, cin)

        # -- im2col: 9 shifted windows side by side on lanes -> ONE MXU matmul
        t = 0
        for dy in range(3):
            for dx in range(3):
                win = xp[dy:dy + hh, dx:dx + ww, :].reshape(hh * ww, cin)
                patch_ref[:, pl.ds(t * cin, cin)] = win
                t += 1
        y = jnp.dot(patch_ref[...], w_ref[...],
                    preferred_element_type=jnp.float32)     # (hh*ww, C), K=9*cin
        y = y * s_ref[...] + sh_ref[...]                    # folded BatchNorm (eval)
        y = jnp.where(y > 0, y, NEG_SLOPE * y)              # LeakyReLU

        # -- 2x2 max pool via four stride-2 reads of the pre-pool activation --
        pool_ref[...] = y.reshape(hh, ww, C)
        ho, wo = hh // 2, ww // 2
        p00 = pool_ref[pl.ds(0, ho, 2), pl.ds(0, wo, 2), :]
        p01 = pool_ref[pl.ds(0, ho, 2), pl.ds(1, wo, 2), :]
        p10 = pool_ref[pl.ds(1, ho, 2), pl.ds(0, wo, 2), :]
        p11 = pool_ref[pl.ds(1, ho, 2), pl.ds(1, wo, 2), :]
        return jnp.maximum(jnp.maximum(p00, p01), jnp.maximum(p10, p11))

    a1 = conv_bn_lrelu_pool(x_ref[0], pad1_ref, patch1_ref, pool1_ref,
                            w1_ref, s1_ref, sh1_ref)        # (H2, W2, C)
    a2 = conv_bn_lrelu_pool(a1, pad2_ref, patch2_ref, pool2_ref,
                            w2_ref, s2_ref, sh2_ref)        # (H4, W4, C)

    # -- flatten in (y, x, c) order; lin1 weights are pre-permuted to match ---
    act = a2.reshape(H4 * W4, C)                            # (P, C)
    for i in range(H4 * W4):
        flat_ref[:, pl.ds(i * C, C)] = act[i:i + 1, :]
    flat = flat_ref[...]                                    # (1, F)

    # -- MLP head: Linear -> LeakyReLU -> Linear -> Sigmoid -------------------
    h = jnp.dot(flat, l1_ref[...], preferred_element_type=jnp.float32) + b1_ref[...]
    h = jnp.where(h > 0, h, NEG_SLOPE * h)
    z = jnp.dot(h, l2_ref[...], preferred_element_type=jnp.float32) + b2_ref[...]
    o_ref[0] = 1.0 / (1.0 + jnp.exp(-z))


# -----------------------------------------------------------------------------
# Parameter prep helpers (host-side, one-time).
# -----------------------------------------------------------------------------
def _fold_bn(conv_b, gamma, beta, mean, var):
    scale = gamma / jnp.sqrt(var + BN_EPS)
    shift = beta + (conv_b - mean) * scale
    return scale.reshape(1, -1), shift.reshape(1, -1)


def _im2col_weight(w_oihw):
    # (Cout, Cin, 3, 3) -> (9*Cin, Cout), row index = (ky*3 + kx)*Cin + cin
    cout, cin = w_oihw.shape[0], w_oihw.shape[1]
    return jnp.transpose(w_oihw, (2, 3, 1, 0)).reshape(9 * cin, cout)


def gan_discriminator_forward(params, x_nchw):
    N, Cin0, H, W = x_nchw.shape
    assert H % 4 == 0 and W % 4 == 0
    C = params["conv1_w"].shape[0]
    Hd = params["lin1_w"].shape[0]
    H2, W2, H4, W4 = H // 2, W // 2, H // 4, W // 4
    F = H4 * W4 * C

    x = jnp.transpose(x_nchw, (0, 2, 3, 1))                 # NCHW -> NHWC (once)

    w1 = _im2col_weight(params["conv1_w"])                  # (9*3,  C)
    w2 = _im2col_weight(params["conv2_w"])                  # (9*C,  C)
    s1, sh1 = _fold_bn(params["conv1_b"], params["bn1_gamma"], params["bn1_beta"],
                       params["bn1_mean"], params["bn1_var"])
    s2, sh2 = _fold_bn(params["conv2_b"], params["bn2_gamma"], params["bn2_beta"],
                       params["bn2_mean"], params["bn2_var"])
    # Pre-permute lin1 rows from torch (c, y, x) flatten order to kernel (y, x, c).
    l1 = params["lin1_w"].reshape(Hd, C, H4, W4).transpose(2, 3, 1, 0).reshape(F, Hd)
    b1 = params["lin1_b"].reshape(1, Hd)
    l2 = params["lin2_w"].T                                 # (Hd, 1)
    b2 = params["lin2_b"].reshape(1, 1)

    out = pl.pallas_call(
        _disc_kernel,
        out_shape=jax.ShapeDtypeStruct((N, 1, 1), jnp.float32),
        grid=(N,),
        in_specs=[
            pl.BlockSpec((1, H, W, Cin0), lambda n: (n, 0, 0, 0)),
            pl.BlockSpec((9 * Cin0, C), lambda n: (0, 0)),
            pl.BlockSpec((1, C), lambda n: (0, 0)),
            pl.BlockSpec((1, C), lambda n: (0, 0)),
            pl.BlockSpec((9 * C, C), lambda n: (0, 0)),
            pl.BlockSpec((1, C), lambda n: (0, 0)),
            pl.BlockSpec((1, C), lambda n: (0, 0)),
            pl.BlockSpec((F, Hd), lambda n: (0, 0)),
            pl.BlockSpec((1, Hd), lambda n: (0, 0)),
            pl.BlockSpec((Hd, 1), lambda n: (0, 0)),
            pl.BlockSpec((1, 1), lambda n: (0, 0)),
        ],
        out_specs=pl.BlockSpec((1, 1, 1), lambda n: (n, 0, 0)),
        scratch_shapes=[
            pltpu.VMEM((H + 2, W + 2, Cin0), jnp.float32),   # pad1 (zero halo)
            pltpu.VMEM((H * W, 9 * Cin0), jnp.float32),      # patch1 (im2col)
            pltpu.VMEM((H, W, C), jnp.float32),              # pre-pool act 1
            pltpu.VMEM((H2 + 2, W2 + 2, C), jnp.float32),    # pad2
            pltpu.VMEM((H2 * W2, 9 * C), jnp.float32),       # patch2
            pltpu.VMEM((H2, W2, C), jnp.float32),            # pre-pool act 2
            pltpu.VMEM((1, F), jnp.float32),                 # flattened features
        ],
        compiler_params=pltpu.CompilerParams(
            dimension_semantics=("parallel",)),              # v7x: 2 TCs on batch
    )(x, w1, s1, sh1, w2, s2, sh2, l1, b1, l2, b2)
    return out.reshape(N, 1)


# -----------------------------------------------------------------------------
# Deterministic parameter init + pure-JAX reference (PyTorch eval-mode parity).
# -----------------------------------------------------------------------------
def init_params(key, height, width, hidden_size, channels):
    F = (height // 4) * (width // 4) * channels
    ks = jax.random.split(key, 16)
    n = lambda k, shp, s: s * jax.random.normal(k, shp, jnp.float32)
    return {
        "conv1_w": n(ks[0], (channels, 3, 3, 3), 0.2),       # (Cout, Cin, kh, kw)
        "conv1_b": n(ks[1], (channels,), 0.1),
        "bn1_gamma": 1.0 + n(ks[2], (channels,), 0.1),
        "bn1_beta": n(ks[3], (channels,), 0.1),
        "bn1_mean": n(ks[4], (channels,), 0.1),
        "bn1_var": jnp.abs(1.0 + n(ks[5], (channels,), 0.1)),
        "conv2_w": n(ks[6], (channels, channels, 3, 3), 0.2),
        "conv2_b": n(ks[7], (channels,), 0.1),
        "bn2_gamma": 1.0 + n(ks[8], (channels,), 0.1),
        "bn2_beta": n(ks[9], (channels,), 0.1),
        "bn2_mean": n(ks[10], (channels,), 0.1),
        "bn2_var": jnp.abs(1.0 + n(ks[11], (channels,), 0.1)),
        "lin1_w": n(ks[12], (hidden_size, F), 1.0 / np.sqrt(F)),   # torch Linear layout
        "lin1_b": n(ks[13], (hidden_size,), 0.1),
        "lin2_w": n(ks[14], (1, hidden_size), 1.0 / np.sqrt(hidden_size)),
        "lin2_b": n(ks[15], (1,), 0.1),
    }


def reference_forward(params, x_nchw):
    def conv(x, w, b):
        y = lax.conv_general_dilated(x, w, (1, 1), ((1, 1), (1, 1)),
                                     dimension_numbers=("NCHW", "OIHW", "NCHW"))
        return y + b.reshape(1, -1, 1, 1)

    def bn(x, g, be, m, v):
        return (x - m.reshape(1, -1, 1, 1)) / jnp.sqrt(v.reshape(1, -1, 1, 1) + BN_EPS) \
               * g.reshape(1, -1, 1, 1) + be.reshape(1, -1, 1, 1)

    lrelu = lambda x: jnp.where(x > 0, x, NEG_SLOPE * x)
    pool = lambda x: lax.reduce_window(x, -jnp.inf, lax.max,
                                       (1, 1, 2, 2), (1, 1, 2, 2), "VALID")

    x = conv(x_nchw, params["conv1_w"], params["conv1_b"])
    x = pool(lrelu(bn(x, params["bn1_gamma"], params["bn1_beta"],
                      params["bn1_mean"], params["bn1_var"])))
    x = conv(x, params["conv2_w"], params["conv2_b"])
    x = pool(lrelu(bn(x, params["bn2_gamma"], params["bn2_beta"],
                      params["bn2_mean"], params["bn2_var"])))
    x = x.reshape(x.shape[0], -1)
    x = lrelu(x @ params["lin1_w"].T + params["lin1_b"])
    x = x @ params["lin2_w"].T + params["lin2_b"]
    return 1.0 / (1.0 + jnp.exp(-x))


if __name__ == "__main__":
    height, width = 16, 16
    hidden_size, channels = 32, 8
    N = 2

    key = jax.random.PRNGKey(0)
    pkey, xkey = jax.random.split(key)
    params = init_params(pkey, height, width, hidden_size, channels)
    x = jax.random.normal(xkey, (N, 3, height, width), jnp.float32)

    out = gan_discriminator_forward(params, x)
    out = jax.block_until_ready(out)
    assert out.shape == (N, 1)

    ref = reference_forward(params, x)
    np.testing.assert_allclose(np.asarray(out), np.asarray(ref), rtol=1e-4, atol=1e-4)
    print("KERNEL_OK")
</pallas_src>

<mosaic_0001>
module attributes {stable_mosaic.version = 11 : i64} {
  func.func @_disc_kernel(%arg0: i32, %arg1: memref<1x16x16x3xf32, #tpu.memory_space<vmem>>, %arg2: memref<27x8xf32, #tpu.memory_space<vmem>>, %arg3: memref<1x8xf32, #tpu.memory_space<vmem>>, %arg4: memref<1x8xf32, #tpu.memory_space<vmem>>, %arg5: memref<72x8xf32, #tpu.memory_space<vmem>>, %arg6: memref<1x8xf32, #tpu.memory_space<vmem>>, %arg7: memref<1x8xf32, #tpu.memory_space<vmem>>, %arg8: memref<128x32xf32, #tpu.memory_space<vmem>>, %arg9: memref<1x32xf32, #tpu.memory_space<vmem>>, %arg10: memref<32x1xf32, #tpu.memory_space<vmem>>, %arg11: memref<1x1xf32, #tpu.memory_space<vmem>>, %arg12: memref<1x1x1xf32, #tpu.memory_space<vmem>>, %arg13: memref<18x18x3xf32, #tpu.memory_space<vmem>>, %arg14: memref<256x27xf32, #tpu.memory_space<vmem>>, %arg15: memref<16x16x8xf32, #tpu.memory_space<vmem>>, %arg16: memref<10x10x8xf32, #tpu.memory_space<vmem>>, %arg17: memref<64x72xf32, #tpu.memory_space<vmem>>, %arg18: memref<8x8x8xf32, #tpu.memory_space<vmem>>, %arg19: memref<1x128xf32, #tpu.memory_space<vmem>>) attributes {dimension_semantics = [#tpu.dimension_semantics<parallel>], iteration_bounds = array<i64: 2>, scalar_prefetch = 0 : i64, scratch_operands = 7 : i64, tpu.core_type = #tpu.core_type<tc>, window_params = [{transform_indices = @transform_0, window_bounds = array<i64: 1, 16, 16, 3>}, {pipeline_mode = #tpu.pipeline_mode<synchronous>, transform_indices = @transform_1, window_bounds = array<i64: 27, 8>}, {pipeline_mode = #tpu.pipeline_mode<synchronous>, transform_indices = @transform_2, window_bounds = array<i64: 1, 8>}, {pipeline_mode = #tpu.pipeline_mode<synchronous>, transform_indices = @transform_3, window_bounds = array<i64: 1, 8>}, {pipeline_mode = #tpu.pipeline_mode<synchronous>, transform_indices = @transform_4, window_bounds = array<i64: 72, 8>}, {pipeline_mode = #tpu.pipeline_mode<synchronous>, transform_indices = @transform_5, window_bounds = array<i64: 1, 8>}, {pipeline_mode = #tpu.pipeline_mode<synchronous>, transform_indices = @transform_6, window_bounds = array<i64: 1, 8>}, {pipeline_mode = #tpu.pipeline_mode<synchronous>, transform_indices = @transform_7, window_bounds = array<i64: 128, 32>}, {pipeline_mode = #tpu.pipeline_mode<synchronous>, transform_indices = @transform_8, window_bounds = array<i64: 1, 32>}, {pipeline_mode = #tpu.pipeline_mode<synchronous>, transform_indices = @transform_9, window_bounds = array<i64: 32, 1>}, {pipeline_mode = #tpu.pipeline_mode<synchronous>, transform_indices = @transform_10, window_bounds = array<i64: 1, 1>}, {transform_indices = @transform_11, window_bounds = array<i64: 1, 1, 1>}]} {
    %c0 = arith.constant 0 : index
    %c0_0 = arith.constant 0 : index
    %c0_1 = arith.constant 0 : index
    %c0_2 = arith.constant 0 : index
    %0 = vector.load %arg1[%c0, %c0_0, %c0_1, %c0_2] : memref<1x16x16x3xf32, #tpu.memory_space<vmem>>, vector<1x16x16x3xf32>
    %1 = vector.shape_cast %0 : vector<1x16x16x3xf32> to vector<16x16x3xf32>
    %cst = arith.constant 0.000000e+00 : f32
    %2 = vector.broadcast %cst : f32 to vector<18x18x3xf32>
    %c0_3 = arith.constant 0 : index
    %c0_4 = arith.constant 0 : index
    %c0_5 = arith.constant 0 : index
    %3 = vector.load %arg13[%c0_3, %c0_4, %c0_5] : memref<18x18x3xf32, #tpu.memory_space<vmem>>, vector<18x18x3xf32>
    tpu.vector_store %arg13[%c0_3, %c0_4, %c0_5], %2 {strides = array<i32>} : memref<18x18x3xf32, #tpu.memory_space<vmem>>, vector<18x18x3xf32>,
    %c1 = arith.constant 1 : index
    %c1_6 = arith.constant 1 : index
    %c0_7 = arith.constant 0 : index
    %4 = vector.load %arg13[%c1, %c1_6, %c0_7] : memref<18x18x3xf32, #tpu.memory_space<vmem>>, vector<16x16x3xf32>
    tpu.vector_store %arg13[%c1, %c1_6, %c0_7], %1 {strides = array<i32>} : memref<18x18x3xf32, #tpu.memory_space<vmem>>, vector<16x16x3xf32>,
    %c0_8 = arith.constant 0 : index
    %c0_9 = arith.constant 0 : index
    %c0_10 = arith.constant 0 : index
    %5 = vector.load %arg13[%c0_8, %c0_9, %c0_10] : memref<18x18x3xf32, #tpu.memory_space<vmem>>, vector<18x18x3xf32>
    %6 = vector.extract_strided_slice %5 {offsets = [0, 0, 0], sizes = [16, 16, 3], strides = [1, 1, 1]} : vector<18x18x3xf32> to vector<16x16x3xf32>
    %7 = vector.shape_cast %6 : vector<16x16x3xf32> to vector<256x3xf32>
    %c0_11 = arith.constant 0 : index
    %c0_12 = arith.constant 0 : index
    %8 = vector.load %arg14[%c0_11, %c0_12] : memref<256x27xf32, #tpu.memory_space<vmem>>, vector<256x3xf32>
    tpu.vector_store %arg14[%c0_11, %c0_12], %7 {strides = array<i32>} : memref<256x27xf32, #tpu.memory_space<vmem>>, vector<256x3xf32>,
    %9 = vector.extract_strided_slice %5 {offsets = [0, 1, 0], sizes = [16, 16, 3], strides = [1, 1, 1]} : vector<18x18x3xf32> to vector<16x16x3xf32>
    %10 = vector.shape_cast %9 : vector<16x16x3xf32> to vector<256x3xf32>
    %c0_13 = arith.constant 0 : index
    %c3 = arith.constant 3 : index
    %11 = vector.load %arg14[%c0_13, %c3] : memref<256x27xf32, #tpu.memory_space<vmem>>, vector<256x3xf32>
    tpu.vector_store %arg14[%c0_13, %c3], %10 {strides = array<i32>} : memref<256x27xf32, #tpu.memory_space<vmem>>, vector<256x3xf32>,
    %12 = vector.extract_strided_slice %5 {offsets = [0, 2, 0], sizes = [16, 16, 3], strides = [1, 1, 1]} : vector<18x18x3xf32> to vector<16x16x3xf32>
    %13 = vector.shape_cast %12 : vector<16x16x3xf32> to vector<256x3xf32>
    %c0_14 = arith.constant 0 : index
    %c6 = arith.constant 6 : index
    %14 = vector.load %arg14[%c0_14, %c6] : memref<256x27xf32, #tpu.memory_space<vmem>>, vector<256x3xf32>
    tpu.vector_store %arg14[%c0_14, %c6], %13 {strides = array<i32>} : memref<256x27xf32, #tpu.memory_space<vmem>>, vector<256x3xf32>,
    %15 = vector.extract_strided_slice %5 {offsets = [1, 0, 0], sizes = [16, 16, 3], strides = [1, 1, 1]} : vector<18x18x3xf32> to vector<16x16x3xf32>
    %16 = vector.shape_cast %15 : vector<16x16x3xf32> to vector<256x3xf32>
    %c0_15 = arith.constant 0 : index
    %c9 = arith.constant 9 : index
    %17 = vector.load %arg14[%c0_15, %c9] : memref<256x27xf32, #tpu.memory_space<vmem>>, vector<256x3xf32>
    tpu.vector_store %arg14[%c0_15, %c9], %16 {strides = array<i32>} : memref<256x27xf32, #tpu.memory_space<vmem>>, vector<256x3xf32>,
    %18 = vector.extract_strided_slice %5 {offsets = [1, 1, 0], sizes = [16, 16, 3], strides = [1, 1, 1]} : vector<18x18x3xf32> to vector<16x16x3xf32>
    %19 = vector.shape_cast %18 : vector<16x16x3xf32> to vector<256x3xf32>
    %c0_16 = arith.constant 0 : index
    %c12 = arith.constant 12 : index
    %20 = vector.load %arg14[%c0_16, %c12] : memref<256x27xf32, #tpu.memory_space<vmem>>, vector<256x3xf32>
    tpu.vector_store %arg14[%c0_16, %c12], %19 {strides = array<i32>} : memref<256x27xf32, #tpu.memory_space<vmem>>, vector<256x3xf32>,
    %21 = vector.extract_strided_slice %5 {offsets = [1, 2, 0], sizes = [16, 16, 3], strides = [1, 1, 1]} : vector<18x18x3xf32> to vector<16x16x3xf32>
    %22 = vector.shape_cast %21 : vector<16x16x3xf32> to vector<256x3xf32>
    %c0_17 = arith.constant 0 : index
    %c15 = arith.constant 15 : index
    %23 = vector.load %arg14[%c0_17, %c15] : memref<256x27xf32, #tpu.memory_space<vmem>>, vector<256x3xf32>
    tpu.vector_store %arg14[%c0_17, %c15], %22 {strides = array<i32>} : memref<256x27xf32, #tpu.memory_space<vmem>>, vector<256x3xf32>,
    %24 = vector.extract_strided_slice %5 {offsets = [2, 0, 0], sizes = [16, 16, 3], strides = [1, 1, 1]} : vector<18x18x3xf32> to vector<16x16x3xf32>
    %25 = vector.shape_cast %24 : vector<16x16x3xf32> to vector<256x3xf32>
    %c0_18 = arith.constant 0 : index
    %c18 = arith.constant 18 : index
    %26 = vector.load %arg14[%c0_18, %c18] : memref<256x27xf32, #tpu.memory_space<vmem>>, vector<256x3xf32>
    tpu.vector_store %arg14[%c0_18, %c18], %25 {strides = array<i32>} : memref<256x27xf32, #tpu.memory_space<vmem>>, vector<256x3xf32>,
    %27 = vector.extract_strided_slice %5 {offsets = [2, 1, 0], sizes = [16, 16, 3], strides = [1, 1, 1]} : vector<18x18x3xf32> to vector<16x16x3xf32>
    %28 = vector.shape_cast %27 : vector<16x16x3xf32> to vector<256x3xf32>
    %c0_19 = arith.constant 0 : index
    %c21 = arith.constant 21 : index
    %29 = vector.load %arg14[%c0_19, %c21] : memref<256x27xf32, #tpu.memory_space<vmem>>, vector<256x3xf32>
    tpu.vector_store %arg14[%c0_19, %c21], %28 {strides = array<i32>} : memref<256x27xf32, #tpu.memory_space<vmem>>, vector<256x3xf32>,
    %30 = vector.extract_strided_slice %5 {offsets = [2, 2, 0], sizes = [16, 16, 3], strides = [1, 1, 1]} : vector<18x18x3xf32> to vector<16x16x3xf32>
    %31 = vector.shape_cast %30 : vector<16x16x3xf32> to vector<256x3xf32>
    %c0_20 = arith.constant 0 : index
    %c24 = arith.constant 24 : index
    %32 = vector.load %arg14[%c0_20, %c24] : memref<256x27xf32, #tpu.memory_space<vmem>>, vector<256x3xf32>
    tpu.vector_store %arg14[%c0_20, %c24], %31 {strides = array<i32>} : memref<256x27xf32, #tpu.memory_space<vmem>>, vector<256x3xf32>,
    %c0_21 = arith.constant 0 : index
    %c0_22 = arith.constant 0 : index
    %33 = vector.load %arg14[%c0_21, %c0_22] : memref<256x27xf32, #tpu.memory_space<vmem>>, vector<256x27xf32>
    %c0_23 = arith.constant 0 : index
    %c0_24 = arith.constant 0 : index
    %34 = vector.load %arg2[%c0_23, %c0_24] : memref<27x8xf32, #tpu.memory_space<vmem>>, vector<27x8xf32>
    %cst_25 = arith.constant dense<0.000000e+00> : vector<256x8xf32>
    %35 = tpu.matmul %33, %34, %cst_25 {dimension_numbers = #tpu.dot_dimension_numbers<[1], [0], [0], [1], [0, 0, 1, 1], [], []>} : vector<256x27xf32>, vector<27x8xf32>, vector<256x8xf32> -> vector<256x8xf32>
    %c0_26 = arith.constant 0 : index
    %c0_27 = arith.constant 0 : index
    %36 = vector.load %arg3[%c0_26, %c0_27] : memref<1x8xf32, #tpu.memory_space<vmem>>, vector<1x8xf32>
    %37 = vector.broadcast %36 : vector<1x8xf32> to vector<256x8xf32>
    %38 = arith.mulf %35, %37 : vector<256x8xf32>
    %c0_28 = arith.constant 0 : index
    %c0_29 = arith.constant 0 : index
    %39 = vector.load %arg4[%c0_28, %c0_29] : memref<1x8xf32, #tpu.memory_space<vmem>>, vector<1x8xf32>
    %40 = vector.broadcast %39 : vector<1x8xf32> to vector<256x8xf32>
    %41 = arith.addf %38, %40 : vector<256x8xf32>
    %cst_30 = arith.constant 0.000000e+00 : f32
    %42 = vector.broadcast %cst_30 : f32 to vector<256x8xf32>
    %43 = arith.cmpf ogt, %41, %42 : vector<256x8xf32>
    %cst_31 = arith.constant 0.00999999977 : f32
    %44 = vector.broadcast %cst_31 : f32 to vector<256x8xf32>
    %45 = arith.mulf %44, %41 : vector<256x8xf32>
    %46 = arith.select %43, %41, %45 : vector<256x8xi1>, vector<256x8xf32>
    %47 = vector.shape_cast %46 : vector<256x8xf32> to vector<16x16x8xf32>
    %c0_32 = arith.constant 0 : index
    %c0_33 = arith.constant 0 : index
    %c0_34 = arith.constant 0 : index
    %48 = vector.load %arg15[%c0_32, %c0_33, %c0_34] : memref<16x16x8xf32, #tpu.memory_space<vmem>>, vector<16x16x8xf32>
    tpu.vector_store %arg15[%c0_32, %c0_33, %c0_34], %47 {strides = array<i32>} : memref<16x16x8xf32, #tpu.memory_space<vmem>>, vector<16x16x8xf32>,
    %c0_35 = arith.constant 0 : index
    %c0_36 = arith.constant 0 : index
    %c0_37 = arith.constant 0 : index
    %49 = tpu.strided_load %arg15[%c0_35, %c0_36, %c0_37] {strides = array<i32: 2, 2, 1>} : memref<16x16x8xf32, #tpu.memory_space<vmem>>, vector<8x8x8xf32>
    %c0_38 = arith.constant 0 : index
    %c1_39 = arith.constant 1 : index
    %c0_40 = arith.constant 0 : index
    %50 = tpu.strided_load %arg15[%c0_38, %c1_39, %c0_40] {strides = array<i32: 2, 2, 1>} : memref<16x16x8xf32, #tpu.memory_space<vmem>>, vector<8x8x8xf32>
    %c1_41 = arith.constant 1 : index
    %c0_42 = arith.constant 0 : index
    %c0_43 = arith.constant 0 : index
    %51 = tpu.strided_load %arg15[%c1_41, %c0_42, %c0_43] {strides = array<i32: 2, 2, 1>} : memref<16x16x8xf32, #tpu.memory_space<vmem>>, vector<8x8x8xf32>
    %c1_44 = arith.constant 1 : index
    %c1_45 = arith.constant 1 : index
    %c0_46 = arith.constant 0 : index
    %52 = tpu.strided_load %arg15[%c1_44, %c1_45, %c0_46] {strides = array<i32: 2, 2, 1>} : memref<16x16x8xf32, #tpu.memory_space<vmem>>, vector<8x8x8xf32>
    %53 = arith.maximumf %49, %50 : vector<8x8x8xf32>
    %54 = arith.maximumf %51, %52 : vector<8x8x8xf32>
    %55 = arith.maximumf %53, %54 : vector<8x8x8xf32>
    %cst_47 = arith.constant 0.000000e+00 : f32
    %56 = vector.broadcast %cst_47 : f32 to vector<10x10x8xf32>
    %c0_48 = arith.constant 0 : index
    %c0_49 = arith.constant 0 : index
    %c0_50 = arith.constant 0 : index
    %57 = vector.load %arg16[%c0_48, %c0_49, %c0_50] : memref<10x10x8xf32, #tpu.memory_space<vmem>>, vector<10x10x8xf32>
    tpu.vector_store %arg16[%c0_48, %c0_49, %c0_50], %56 {strides = array<i32>} : memref<10x10x8xf32, #tpu.memory_space<vmem>>, vector<10x10x8xf32>,
    %c1_51 = arith.constant 1 : index
    %c1_52 = arith.constant 1 : index
    %c0_53 = arith.constant 0 : index
    %58 = vector.load %arg16[%c1_51, %c1_52, %c0_53] : memref<10x10x8xf32, #tpu.memory_space<vmem>>, vector<8x8x8xf32>
    tpu.vector_store %arg16[%c1_51, %c1_52, %c0_53], %55 {strides = array<i32>} : memref<10x10x8xf32, #tpu.memory_space<vmem>>, vector<8x8x8xf32>,
    %c0_54 = arith.constant 0 : index
    %c0_55 = arith.constant 0 : index
    %c0_56 = arith.constant 0 : index
    %59 = vector.load %arg16[%c0_54, %c0_55, %c0_56] : memref<10x10x8xf32, #tpu.memory_space<vmem>>, vector<10x10x8xf32>
    %60 = vector.extract_strided_slice %59 {offsets = [0, 0, 0], sizes = [8, 8, 8], strides = [1, 1, 1]} : vector<10x10x8xf32> to vector<8x8x8xf32>
    %61 = vector.shape_cast %60 : vector<8x8x8xf32> to vector<64x8xf32>
    %c0_57 = arith.constant 0 : index
    %c0_58 = arith.constant 0 : index
    %62 = vector.load %arg17[%c0_57, %c0_58] : memref<64x72xf32, #tpu.memory_space<vmem>>, vector<64x8xf32>
    tpu.vector_store %arg17[%c0_57, %c0_58], %61 {strides = array<i32>} : memref<64x72xf32, #tpu.memory_space<vmem>>, vector<64x8xf32>,
    %63 = vector.extract_strided_slice %59 {offsets = [0, 1, 0], sizes = [8, 8, 8], strides = [1, 1, 1]} : vector<10x10x8xf32> to vector<8x8x8xf32>
    %64 = vector.shape_cast %63 : vector<8x8x8xf32> to vector<64x8xf32>
    %c0_59 = arith.constant 0 : index
    %c8 = arith.constant 8 : index
    %65 = vector.load %arg17[%c0_59, %c8] : memref<64x72xf32, #tpu.memory_space<vmem>>, vector<64x8xf32>
    tpu.vector_store %arg17[%c0_59, %c8], %64 {strides = array<i32>} : memref<64x72xf32, #tpu.memory_space<vmem>>, vector<64x8xf32>,
    %66 = vector.extract_strided_slice %59 {offsets = [0, 2, 0], sizes = [8, 8, 8], strides = [1, 1, 1]} : vector<10x10x8xf32> to vector<8x8x8xf32>
    %67 = vector.shape_cast %66 : vector<8x8x8xf32> to vector<64x8xf32>
    %c0_60 = arith.constant 0 : index
    %c16 = arith.constant 16 : index
    %68 = vector.load %arg17[%c0_60, %c16] : memref<64x72xf32, #tpu.memory_space<vmem>>, vector<64x8xf32>
    tpu.vector_store %arg17[%c0_60, %c16], %67 {strides = array<i32>} : memref<64x72xf32, #tpu.memory_space<vmem>>, vector<64x8xf32>,
    %69 = vector.extract_strided_slice %59 {offsets = [1, 0, 0], sizes = [8, 8, 8], strides = [1, 1, 1]} : vector<10x10x8xf32> to vector<8x8x8xf32>
    %70 = vector.shape_cast %69 : vector<8x8x8xf32> to vector<64x8xf32>
    %c0_61 = arith.constant 0 : index
    %c24_62 = arith.constant 24 : index
    %71 = vector.load %arg17[%c0_61, %c24_62] : memref<64x72xf32, #tpu.memory_space<vmem>>, vector<64x8xf32>
    tpu.vector_store %arg17[%c0_61, %c24_62], %70 {strides = array<i32>} : memref<64x72xf32, #tpu.memory_space<vmem>>, vector<64x8xf32>,
    %72 = vector.extract_strided_slice %59 {offsets = [1, 1, 0], sizes = [8, 8, 8], strides = [1, 1, 1]} : vector<10x10x8xf32> to vector<8x8x8xf32>
    %73 = vector.shape_cast %72 : vector<8x8x8xf32> to vector<64x8xf32>
    %c0_63 = arith.constant 0 : index
    %c32 = arith.constant 32 : index
    %74 = vector.load %arg17[%c0_63, %c32] : memref<64x72xf32, #tpu.memory_space<vmem>>, vector<64x8xf32>
    tpu.vector_store %arg17[%c0_63, %c32], %73 {strides = array<i32>} : memref<64x72xf32, #tpu.memory_space<vmem>>, vector<64x8xf32>,
    %75 = vector.extract_strided_slice %59 {offsets = [1, 2, 0], sizes = [8, 8, 8], strides = [1, 1, 1]} : vector<10x10x8xf32> to vector<8x8x8xf32>
    %76 = vector.shape_cast %75 : vector<8x8x8xf32> to vector<64x8xf32>
    %c0_64 = arith.constant 0 : index
    %c40 = arith.constant 40 : index
    %77 = vector.load %arg17[%c0_64, %c40] : memref<64x72xf32, #tpu.memory_space<vmem>>, vector<64x8xf32>
    tpu.vector_store %arg17[%c0_64, %c40], %76 {strides = array<i32>} : memref<64x72xf32, #tpu.memory_space<vmem>>, vector<64x8xf32>,
    %78 = vector.extract_strided_slice %59 {offsets = [2, 0, 0], sizes = [8, 8, 8], strides = [1, 1, 1]} : vector<10x10x8xf32> to vector<8x8x8xf32>
    %79 = vector.shape_cast %78 : vector<8x8x8xf32> to vector<64x8xf32>
    %c0_65 = arith.constant 0 : index
    %c48 = arith.constant 48 : index
    %80 = vector.load %arg17[%c0_65, %c48] : memref<64x72xf32, #tpu.memory_space<vmem>>, vector<64x8xf32>
    tpu.vector_store %arg17[%c0_65, %c48], %79 {strides = array<i32>} : memref<64x72xf32, #tpu.memory_space<vmem>>, vector<64x8xf32>,
    %81 = vector.extract_strided_slice %59 {offsets = [2, 1, 0], sizes = [8, 8, 8], strides = [1, 1, 1]} : vector<10x10x8xf32> to vector<8x8x8xf32>
    %82 = vector.shape_cast %81 : vector<8x8x8xf32> to vector<64x8xf32>
    %c0_66 = arith.constant 0 : index
    %c56 = arith.constant 56 : index
    %83 = vector.load %arg17[%c0_66, %c56] : memref<64x72xf32, #tpu.memory_space<vmem>>, vector<64x8xf32>
    tpu.vector_store %arg17[%c0_66, %c56], %82 {strides = array<i32>} : memref<64x72xf32, #tpu.memory_space<vmem>>, vector<64x8xf32>,
    %84 = vector.extract_strided_slice %59 {offsets = [2, 2, 0], sizes = [8, 8, 8], strides = [1, 1, 1]} : vector<10x10x8xf32> to vector<8x8x8xf32>
    %85 = vector.shape_cast %84 : vector<8x8x8xf32> to vector<64x8xf32>
    %c0_67 = arith.constant 0 : index
    %c64 = arith.constant 64 : index
    %86 = vector.load %arg17[%c0_67, %c64] : memref<64x72xf32, #tpu.memory_space<vmem>>, vector<64x8xf32>
    tpu.vector_store %arg17[%c0_67, %c64], %85 {strides = array<i32>} : memref<64x72xf32, #tpu.memory_space<vmem>>, vector<64x8xf32>,
    %c0_68 = arith.constant 0 : index
    %c0_69 = arith.constant 0 : index
    %87 = vector.load %arg17[%c0_68, %c0_69] : memref<64x72xf32, #tpu.memory_space<vmem>>, vector<64x72xf32>
    %c0_70 = arith.constant 0 : index
    %c0_71 = arith.constant 0 : index
    %88 = vector.load %arg5[%c0_70, %c0_71] : memref<72x8xf32, #tpu.memory_space<vmem>>, vector<72x8xf32>
    %cst_72 = arith.constant dense<0.000000e+00> : vector<64x8xf32>
    %89 = tpu.matmul %87, %88, %cst_72 {dimension_numbers = #tpu.dot_dimension_numbers<[1], [0], [0], [1], [0, 0, 1, 1], [], []>} : vector<64x72xf32>, vector<72x8xf32>, vector<64x8xf32> -> vector<64x8xf32>
    %c0_73 = arith.constant 0 : index
    %c0_74 = arith.constant 0 : index
    %90 = vector.load %arg6[%c0_73, %c0_74] : memref<1x8xf32, #tpu.memory_space<vmem>>, vector<1x8xf32>
    %91 = vector.broadcast %90 : vector<1x8xf32> to vector<64x8xf32>
    %92 = arith.mulf %89, %91 : vector<64x8xf32>
    %c0_75 = arith.constant 0 : index
    %c0_76 = arith.constant 0 : index
    %93 = vector.load %arg7[%c0_75, %c0_76] : memref<1x8xf32, #tpu.memory_space<vmem>>, vector<1x8xf32>
    %94 = vector.broadcast %93 : vector<1x8xf32> to vector<64x8xf32>
    %95 = arith.addf %92, %94 : vector<64x8xf32>
    %cst_77 = arith.constant 0.000000e+00 : f32
    %96 = vector.broadcast %cst_77 : f32 to vector<64x8xf32>
    %97 = arith.cmpf ogt, %95, %96 : vector<64x8xf32>
    %cst_78 = arith.constant 0.00999999977 : f32
    %98 = vector.broadcast %cst_78 : f32 to vector<64x8xf32>
    %99 = arith.mulf %98, %95 : vector<64x8xf32>
    %100 = arith.select %97, %95, %99 : vector<64x8xi1>, vector<64x8xf32>
    %101 = vector.shape_cast %100 : vector<64x8xf32> to vector<8x8x8xf32>
    %c0_79 = arith.constant 0 : index
    %c0_80 = arith.constant 0 : index
    %c0_81 = arith.constant 0 : index
    %102 = vector.load %arg18[%c0_79, %c0_80, %c0_81] : memref<8x8x8xf32, #tpu.memory_space<vmem>>, vector<8x8x8xf32>
    tpu.vector_store %arg18[%c0_79, %c0_80, %c0_81], %101 {strides = array<i32>} : memref<8x8x8xf32, #tpu.memory_space<vmem>>, vector<8x8x8xf32>,
    %c0_82 = arith.constant 0 : index
    %c0_83 = arith.constant 0 : index
    %c0_84 = arith.constant 0 : index
    %103 = tpu.strided_load %arg18[%c0_82, %c0_83, %c0_84] {strides = array<i32: 2, 2, 1>} : memref<8x8x8xf32, #tpu.memory_space<vmem>>, vector<4x4x8xf32>
    %c0_85 = arith.constant 0 : index
    %c1_86 = arith.constant 1 : index
    %c0_87 = arith.constant 0 : index
    %104 = tpu.strided_load %arg18[%c0_85, %c1_86, %c0_87] {strides = array<i32: 2, 2, 1>} : memref<8x8x8xf32, #tpu.memory_space<vmem>>, vector<4x4x8xf32>
    %c1_88 = arith.constant 1 : index
    %c0_89 = arith.constant 0 : index
    %c0_90 = arith.constant 0 : index
    %105 = tpu.strided_load %arg18[%c1_88, %c0_89, %c0_90] {strides = array<i32: 2, 2, 1>} : memref<8x8x8xf32, #tpu.memory_space<vmem>>, vector<4x4x8xf32>
    %c1_91 = arith.constant 1 : index
    %c1_92 = arith.constant 1 : index
    %c0_93 = arith.constant 0 : index
    %106 = tpu.strided_load %arg18[%c1_91, %c1_92, %c0_93] {strides = array<i32: 2, 2, 1>} : memref<8x8x8xf32, #tpu.memory_space<vmem>>, vector<4x4x8xf32>
    %107 = arith.maximumf %103, %104 : vector<4x4x8xf32>
    %108 = arith.maximumf %105, %106 : vector<4x4x8xf32>
    %109 = arith.maximumf %107, %108 : vector<4x4x8xf32>
    %110 = vector.shape_cast %109 : vector<4x4x8xf32> to vector<16x8xf32>
    %111 = vector.extract_strided_slice %110 {offsets = [0, 0], sizes = [1, 8], strides = [1, 1]} : vector<16x8xf32> to vector<1x8xf32>
    %c0_94 = arith.constant 0 : index
    %c0_95 = arith.constant 0 : index
    %112 = vector.load %arg19[%c0_94, %c0_95] : memref<1x128xf32, #tpu.memory_space<vmem>>, vector<1x8xf32>
    tpu.vector_store %arg19[%c0_94, %c0_95], %111 {strides = array<i32>} : memref<1x128xf32, #tpu.memory_space<vmem>>, vector<1x8xf32>,
    %113 = vector.extract_strided_slice %110 {offsets = [1, 0], sizes = [1, 8], strides = [1, 1]} : vector<16x8xf32> to vector<1x8xf32>
    %c0_96 = arith.constant 0 : index
    %c8_97 = arith.constant 8 : index
    %114 = vector.load %arg19[%c0_96, %c8_97] : memref<1x128xf32, #tpu.memory_space<vmem>>, vector<1x8xf32>
    tpu.vector_store %arg19[%c0_96, %c8_97], %113 {strides = array<i32>} : memref<1x128xf32, #tpu.memory_space<vmem>>, vector<1x8xf32>,
    %115 = vector.extract_strided_slice %110 {offsets = [2, 0], sizes = [1, 8], strides = [1, 1]} : vector<16x8xf32> to vector<1x8xf32>
    %c0_98 = arith.constant 0 : index
    %c16_99 = arith.constant 16 : index
    %116 = vector.load %arg19[%c0_98, %c16_99] : memref<1x128xf32, #tpu.memory_space<vmem>>, vector<1x8xf32>
    tpu.vector_store %arg19[%c0_98, %c16_99], %115 {strides = array<i32>} : memref<1x128xf32, #tpu.memory_space<vmem>>, vector<1x8xf32>,
    %117 = vector.extract_strided_slice %110 {offsets = [3, 0], sizes = [1, 8], strides = [1, 1]} : vector<16x8xf32> to vector<1x8xf32>
    %c0_100 = arith.constant 0 : index
    %c24_101 = arith.constant 24 : index
    %118 = vector.load %arg19[%c0_100, %c24_101] : memref<1x128xf32, #tpu.memory_space<vmem>>, vector<1x8xf32>
    tpu.vector_store %arg19[%c0_100, %c24_101], %117 {strides = array<i32>} : memref<1x128xf32, #tpu.memory_space<vmem>>, vector<1x8xf32>,
    %119 = vector.extract_strided_slice %110 {offsets = [4, 0], sizes = [1, 8], strides = [1, 1]} : vector<16x8xf32> to vector<1x8xf32>
    %c0_102 = arith.constant 0 : index
    %c32_103 = arith.constant 32 : index
    %120 = vector.load %arg19[%c0_102, %c32_103] : memref<1x128xf32, #tpu.memory_space<vmem>>, vector<1x8xf32>
    tpu.vector_store %arg19[%c0_102, %c32_103], %119 {strides = array<i32>} : memref<1x128xf32, #tpu.memory_space<vmem>>, vector<1x8xf32>,
    %121 = vector.extract_strided_slice %110 {offsets = [5, 0], sizes = [1, 8], strides = [1, 1]} : vector<16x8xf32> to vector<1x8xf32>
    %c0_104 = arith.constant 0 : index
    %c40_105 = arith.constant 40 : index
    %122 = vector.load %arg19[%c0_104, %c40_105] : memref<1x128xf32, #tpu.memory_space<vmem>>, vector<1x8xf32>
    tpu.vector_store %arg19[%c0_104, %c40_105], %121 {strides = array<i32>} : memref<1x128xf32, #tpu.memory_space<vmem>>, vector<1x8xf32>,
    %123 = vector.extract_strided_slice %110 {offsets = [6, 0], sizes = [1, 8], strides = [1, 1]} : vector<16x8xf32> to vector<1x8xf32>
    %c0_106 = arith.constant 0 : index
    %c48_107 = arith.constant 48 : index
    %124 = vector.load %arg19[%c0_106, %c48_107] : memref<1x128xf32, #tpu.memory_space<vmem>>, vector<1x8xf32>
    tpu.vector_store %arg19[%c0_106, %c48_107], %123 {strides = array<i32>} : memref<1x128xf32, #tpu.memory_space<vmem>>, vector<1x8xf32>,
    %125 = vector.extract_strided_slice %110 {offsets = [7, 0], sizes = [1, 8], strides = [1, 1]} : vector<16x8xf32> to vector<1x8xf32>
    %c0_108 = arith.constant 0 : index
    %c56_109 = arith.constant 56 : index
    %126 = vector.load %arg19[%c0_108, %c56_109] : memref<1x128xf32, #tpu.memory_space<vmem>>, vector<1x8xf32>
    tpu.vector_store %arg19[%c0_108, %c56_109], %125 {strides = array<i32>} : memref<1x128xf32, #tpu.memory_space<vmem>>, vector<1x8xf32>,
    %127 = vector.extract_strided_slice %110 {offsets = [8, 0], sizes = [1, 8], strides = [1, 1]} : vector<16x8xf32> to vector<1x8xf32>
    %c0_110 = arith.constant 0 : index
    %c64_111 = arith.constant 64 : index
    %128 = vector.load %arg19[%c0_110, %c64_111] : memref<1x128xf32, #tpu.memory_space<vmem>>, vector<1x8xf32>
    tpu.vector_store %arg19[%c0_110, %c64_111], %127 {strides = array<i32>} : memref<1x128xf32, #tpu.memory_space<vmem>>, vector<1x8xf32>,
    %129 = vector.extract_strided_slice %110 {offsets = [9, 0], sizes = [1, 8], strides = [1, 1]} : vector<16x8xf32> to vector<1x8xf32>
    %c0_112 = arith.constant 0 : index
    %c72 = arith.constant 72 : index
    %130 = vector.load %arg19[%c0_112, %c72] : memref<1x128xf32, #tpu.memory_space<vmem>>, vector<1x8xf32>
    tpu.vector_store %arg19[%c0_112, %c72], %129 {strides = array<i32>} : memref<1x128xf32, #tpu.memory_space<vmem>>, vector<1x8xf32>,
    %131 = vector.extract_strided_slice %110 {offsets = [10, 0], sizes = [1, 8], strides = [1, 1]} : vector<16x8xf32> to vector<1x8xf32>
    %c0_113 = arith.constant 0 : index
    %c80 = arith.constant 80 : index
    %132 = vector.load %arg19[%c0_113, %c80] : memref<1x128xf32, #tpu.memory_space<vmem>>, vector<1x8xf32>
    tpu.vector_store %arg19[%c0_113, %c80], %131 {strides = array<i32>} : memref<1x128xf32, #tpu.memory_space<vmem>>, vector<1x8xf32>,
    %133 = vector.extract_strided_slice %110 {offsets = [11, 0], sizes = [1, 8], strides = [1, 1]} : vector<16x8xf32> to vector<1x8xf32>
    %c0_114 = arith.constant 0 : index
    %c88 = arith.constant 88 : index
    %134 = vector.load %arg19[%c0_114, %c88] : memref<1x128xf32, #tpu.memory_space<vmem>>, vector<1x8xf32>
    tpu.vector_store %arg19[%c0_114, %c88], %133 {strides = array<i32>} : memref<1x128xf32, #tpu.memory_space<vmem>>, vector<1x8xf32>,
    %135 = vector.extract_strided_slice %110 {offsets = [12, 0], sizes = [1, 8], strides = [1, 1]} : vector<16x8xf32> to vector<1x8xf32>
    %c0_115 = arith.constant 0 : index
    %c96 = arith.constant 96 : index
    %136 = vector.load %arg19[%c0_115, %c96] : memref<1x128xf32, #tpu.memory_space<vmem>>, vector<1x8xf32>
    tpu.vector_store %arg19[%c0_115, %c96], %135 {strides = array<i32>} : memref<1x128xf32, #tpu.memory_space<vmem>>, vector<1x8xf32>,
    %137 = vector.extract_strided_slice %110 {offsets = [13, 0], sizes = [1, 8], strides = [1, 1]} : vector<16x8xf32> to vector<1x8xf32>
    %c0_116 = arith.constant 0 : index
    %c104 = arith.constant 104 : index
    %138 = vector.load %arg19[%c0_116, %c104] : memref<1x128xf32, #tpu.memory_space<vmem>>, vector<1x8xf32>
    tpu.vector_store %arg19[%c0_116, %c104], %137 {strides = array<i32>} : memref<1x128xf32, #tpu.memory_space<vmem>>, vector<1x8xf32>,
    %139 = vector.extract_strided_slice %110 {offsets = [14, 0], sizes = [1, 8], strides = [1, 1]} : vector<16x8xf32> to vector<1x8xf32>
    %c0_117 = arith.constant 0 : index
    %c112 = arith.constant 112 : index
    %140 = vector.load %arg19[%c0_117, %c112] : memref<1x128xf32, #tpu.memory_space<vmem>>, vector<1x8xf32>
    tpu.vector_store %arg19[%c0_117, %c112], %139 {strides = array<i32>} : memref<1x128xf32, #tpu.memory_space<vmem>>, vector<1x8xf32>,
    %141 = vector.extract_strided_slice %110 {offsets = [15, 0], sizes = [1, 8], strides = [1, 1]} : vector<16x8xf32> to vector<1x8xf32>
    %c0_118 = arith.constant 0 : index
    %c120 = arith.constant 120 : index
    %142 = vector.load %arg19[%c0_118, %c120] : memref<1x128xf32, #tpu.memory_space<vmem>>, vector<1x8xf32>
    tpu.vector_store %arg19[%c0_118, %c120], %141 {strides = array<i32>} : memref<1x128xf32, #tpu.memory_space<vmem>>, vector<1x8xf32>,
    %c0_119 = arith.constant 0 : index
    %c0_120 = arith.constant 0 : index
    %143 = vector.load %arg19[%c0_119, %c0_120] : memref<1x128xf32, #tpu.memory_space<vmem>>, vector<1x128xf32>
    %c0_121 = arith.constant 0 : index
    %c0_122 = arith.constant 0 : index
    %144 = vector.load %arg8[%c0_121, %c0_122] : memref<128x32xf32, #tpu.memory_space<vmem>>, vector<128x32xf32>
    %cst_123 = arith.constant dense<0.000000e+00> : vector<1x32xf32>
    %145 = tpu.matmul %143, %144, %cst_123 {dimension_numbers = #tpu.dot_dimension_numbers<[1], [0], [0], [1], [0, 0, 1, 1], [], []>} : vector<1x128xf32>, vector<128x32xf32>, vector<1x32xf32> -> vector<1x32xf32>
    %c0_124 = arith.constant 0 : index
    %c0_125 = arith.constant 0 : index
    %146 = vector.load %arg9[%c0_124, %c0_125] : memref<1x32xf32, #tpu.memory_space<vmem>>, vector<1x32xf32>
    %147 = arith.addf %145, %146 : vector<1x32xf32>
    %cst_126 = arith.constant 0.000000e+00 : f32
    %148 = vector.broadcast %cst_126 : f32 to vector<1x32xf32>
    %149 = arith.cmpf ogt, %147, %148 : vector<1x32xf32>
    %cst_127 = arith.constant 0.00999999977 : f32
    %150 = vector.broadcast %cst_127 : f32 to vector<1x32xf32>
    %151 = arith.mulf %150, %147 : vector<1x32xf32>
    %152 = arith.select %149, %147, %151 : vector<1x32xi1>, vector<1x32xf32>
    %c0_128 = arith.constant 0 : index
    %c0_129 = arith.constant 0 : index
    %153 = vector.load %arg10[%c0_128, %c0_129] : memref<32x1xf32, #tpu.memory_space<vmem>>, vector<32x1xf32>
    %cst_130 = arith.constant dense<0.000000e+00> : vector<1x1xf32>
    %154 = tpu.matmul %152, %153, %cst_130 {dimension_numbers = #tpu.dot_dimension_numbers<[1], [0], [0], [1], [0, 0, 1, 1], [], []>} : vector<1x32xf32>, vector<32x1xf32>, vector<1x1xf32> -> vector<1x1xf32>
    %c0_131 = arith.constant 0 : index
    %c0_132 = arith.constant 0 : index
    %155 = vector.load %arg11[%c0_131, %c0_132] : memref<1x1xf32, #tpu.memory_space<vmem>>, vector<1x1xf32>
    %156 = arith.addf %154, %155 : vector<1x1xf32>
    %cst_133 = arith.constant 0.000000e+00 : f32
    %157 = vector.broadcast %cst_133 : f32 to vector<1x1xf32>
    %158 = arith.subf %157, %156 : vector<1x1xf32>
    %159 = math.exp %158 : vector<1x1xf32>
    %cst_134 = arith.constant 1.000000e+00 : f32
    %160 = vector.broadcast %cst_134 : f32 to vector<1x1xf32>
    %161 = arith.addf %160, %159 : vector<1x1xf32>
    %cst_135 = arith.constant 1.000000e+00 : f32
    %162 = vector.broadcast %cst_135 : f32 to vector<1x1xf32>
    %163 = arith.divf %162, %161 : vector<1x1xf32>
    %c0_136 = arith.constant 0 : index
    %c0_137 = arith.constant 0 : index
    %c0_138 = arith.constant 0 : index
    %164 = vector.load %arg12[%c0_136, %c0_137, %c0_138] : memref<1x1x1xf32, #tpu.memory_space<vmem>>, vector<1x1x1xf32>
    %165 = vector.shape_cast %164 : vector<1x1x1xf32> to vector<1x1xf32>
    %166 = vector.shape_cast %163 : vector<1x1xf32> to vector<1x1x1xf32>
    tpu.vector_store %arg12[%c0_136, %c0_137, %c0_138], %166 {strides = array<i32>} : memref<1x1x1xf32, #tpu.memory_space<vmem>>, vector<1x1x1xf32>,
    return
  }
  func.func @transform_0(%arg0: i32) -> (i32, i32, i32, i32) {
    %c0_i32 = arith.constant 0 : i32
    %c0_i32_0 = arith.constant 0 : i32
    %c0_i32_1 = arith.constant 0 : i32
    %c0_i32_2 = arith.constant 0 : i32
    return %arg0, %c0_i32, %c0_i32_0, %c0_i32_1 : i32, i32, i32, i32
  }
  func.func @transform_1(%arg0: i32) -> (i32, i32) {
    %c0_i32 = arith.constant 0 : i32
    %c0_i32_0 = arith.constant 0 : i32
    %c0_i32_1 = arith.constant 0 : i32
    return %c0_i32, %c0_i32_0 : i32, i32
  }
  func.func @transform_2(%arg0: i32) -> (i32, i32) {
    %c0_i32 = arith.constant 0 : i32
    %c0_i32_0 = arith.constant 0 : i32
    %c0_i32_1 = arith.constant 0 : i32
    return %c0_i32, %c0_i32_0 : i32, i32
  }
  func.func @transform_3(%arg0: i32) -> (i32, i32) {
    %c0_i32 = arith.constant 0 : i32
    %c0_i32_0 = arith.constant 0 : i32
    %c0_i32_1 = arith.constant 0 : i32
    return %c0_i32, %c0_i32_0 : i32, i32
  }
  func.func @transform_4(%arg0: i32) -> (i32, i32) {
    %c0_i32 = arith.constant 0 : i32
    %c0_i32_0 = arith.constant 0 : i32
    %c0_i32_1 = arith.constant 0 : i32
    return %c0_i32, %c0_i32_0 : i32, i32
  }
  func.func @transform_5(%arg0: i32) -> (i32, i32) {
    %c0_i32 = arith.constant 0 : i32
    %c0_i32_0 = arith.constant 0 : i32
    %c0_i32_1 = arith.constant 0 : i32
    return %c0_i32, %c0_i32_0 : i32, i32
  }
  func.func @transform_6(%arg0: i32) -> (i32, i32) {
    %c0_i32 = arith.constant 0 : i32
    %c0_i32_0 = arith.constant 0 : i32
    %c0_i32_1 = arith.constant 0 : i32
    return %c0_i32, %c0_i32_0 : i32, i32
  }
  func.func @transform_7(%arg0: i32) -> (i32, i32) {
    %c0_i32 = arith.constant 0 : i32
    %c0_i32_0 = arith.constant 0 : i32
    %c0_i32_1 = arith.constant 0 : i32
    return %c0_i32, %c0_i32_0 : i32, i32
  }
  func.func @transform_8(%arg0: i32) -> (i32, i32) {
    %c0_i32 = arith.constant 0 : i32
    %c0_i32_0 = arith.constant 0 : i32
    %c0_i32_1 = arith.constant 0 : i32
    return %c0_i32, %c0_i32_0 : i32, i32
  }
  func.func @transform_9(%arg0: i32) -> (i32, i32) {
    %c0_i32 = arith.constant 0 : i32
    %c0_i32_0 = arith.constant 0 : i32
    %c0_i32_1 = arith.constant 0 : i32
    return %c0_i32, %c0_i32_0 : i32, i32
  }
  func.func @transform_10(%arg0: i32) -> (i32, i32) {
    %c0_i32 = arith.constant 0 : i32
    %c0_i32_0 = arith.constant 0 : i32
    %c0_i32_1 = arith.constant 0 : i32
    return %c0_i32, %c0_i32_0 : i32, i32
  }
  func.func @transform_11(%arg0: i32) -> (i32, i32, i32) {
    %c0_i32 = arith.constant 0 : i32
    %c0_i32_0 = arith.constant 0 : i32
    %c0_i32_1 = arith.constant 0 : i32
    return %arg0, %c0_i32, %c0_i32_0 : i32, i32, i32
  }
}

</mosaic_0001>

<llo_original>
// kernel: tpu_custom_call.1
$region0: #{tpu_custom_call.1}
  #allocation0 [shape = 'u32[]', space=smem, size = 0x4, offset = 0x4, fixed_abs, tag = 'smem constant byte address 0x4 - core index']
  #allocation1 [shape = 'u32[144,128]{1,0:T(1,128)}', space=vmem, size = 0x12000, scoped, tag = 'internal scratch']
  #allocation2 [shape = 'f32[18,18,3]{2,1,0:T(8,128)}', space=vmem, size = 0x36000, scoped, tag = 'scratch operand']
  #allocation3 [shape = 'f32[256,27]{1,0:T(8,128)}', space=vmem, size = 0x20000, scoped, tag = 'scratch operand']
  #allocation4 [shape = 'f32[16,16,8]{2,1,0:T(8,128)}', space=vmem, size = 0x20000, scoped, tag = 'scratch operand']
  #allocation5 [shape = 'f32[10,10,8]{2,1,0:T(8,128)}', space=vmem, size = 0x14000, scoped, tag = 'scratch operand']
  #allocation6 [shape = 'f32[64,72]{1,0:T(8,128)}', space=vmem, size = 0x8000, scoped, tag = 'scratch operand']
  #allocation7 [shape = 'f32[8,8,8]{2,1,0:T(8,128)}', space=vmem, size = 0x8000, scoped, tag = 'scratch operand']
  #allocation8 [shape = 'f32[1,128]{1,0:T(1,128)}', space=vmem, size = 0x200, scoped, tag = 'scratch operand']
  #allocation9 [shape = 'f32[1,1]{1,0:T(1,128)S(1)}', space=vmem, size = 0x200, scoped, tag = 'scoped memory for tpu_custom_call.1']
  %s0 = inlined_call_operand.vmem [shape: f32[2,16,16,3], index: 0, kind: input, shape index: {}]
  %s1 = inlined_call_operand.vmem [shape: f32[27,8], index: 1, kind: input, shape index: {}]
  %s2 = inlined_call_operand.vmem [shape: f32[1,8], index: 2, kind: input, shape index: {}]
  %s3 = inlined_call_operand.vmem [shape: f32[1,8], index: 3, kind: input, shape index: {}]
  %s4 = inlined_call_operand.vmem [shape: f32[72,8], index: 4, kind: input, shape index: {}]
  %s5 = inlined_call_operand.vmem [shape: f32[1,8], index: 5, kind: input, shape index: {}]
  %s6 = inlined_call_operand.vmem [shape: f32[1,8], index: 6, kind: input, shape index: {}]
  %s7 = inlined_call_operand.vmem [shape: f32[128,32], index: 7, kind: input, shape index: {}]
  %s8 = inlined_call_operand.vmem [shape: f32[1,32], index: 8, kind: input, shape index: {}]
  %s9 = inlined_call_operand.vmem [shape: f32[32,1], index: 9, kind: input, shape index: {}]
  %s10 = inlined_call_operand.<no memory space> [shape: f32[1,1], index: 10, kind: input, shape index: {}]
  %s11 = inlined_call_operand.vmem [shape: f32[2,1,1], index: 11, kind: output, shape index: {}]
  %s12 = sld [smem:[#allocation0]]
  $region77: #{tpu_custom_call.1} parent=0
    _
  %s14 = ssub.s32 1, %s12
  %s15 = scalar_select 0, %s14, %s12
  %v16 = vstv %s10
  %17 = vst [vmem:[#allocation9] sm:$0x1] %v16
  loop: start=0, step=1, limit=4
  $region2: #{tpu_custom_call.1} parent=0 // loop_pre_header
    _
  $region3: #{tpu_custom_call.1} parent=0 // loop_header
    %s19 = sphi 0, %s23
    %p20 = scmp.ge.s32.totalorder %s19, 4
    %s29 = sphi 0, %s31
    %s32 = sphi 0, %s29
    %s33 = sphi 0, %s32
    %s49 = sphi 0, %s33
    %s53 = sphi 0, %s53
    %s55 = sphi 0, %s53
    %s56 = sphi 0, %s55
    %s70 = sphi 0, %s56
    %s74 = sphi 0, %s74
    %s76 = sphi 0, %s74
    %s77 = sphi 0, %s76
    %s91 = sphi 0, %s77
    %s95 = sphi 0, %s95
    %s97 = sphi 0, %s95
    %s98 = sphi 0, %s97
    %s112 = sphi 0, %s98
    %s116 = sphi 0, %s116
    %s118 = sphi 0, %s116
    %s119 = sphi 0, %s118
    %s133 = sphi 0, %s119
    %s137 = sphi 0, %s137
    %s139 = sphi 0, %s137
    %s140 = sphi 0, %s139
    %s154 = sphi 0, %s140
    %s158 = sphi 0, %s158
    %s160 = sphi 0, %s158
    %s161 = sphi 0, %s160
    %s175 = sphi 0, %s161
    %s179 = sphi 0, %s179
    %s181 = sphi 0, %s179
    %s182 = sphi 0, %s181
    %s196 = sphi 0, %s182
    %s200 = sphi 0, %s200
    %s202 = sphi 0, %s200
    %s203 = sphi 0, %s202
    %s217 = sphi 0, %s203
    %s221 = sphi 0, %s221
    %s223 = sphi 0, %s221
    %s224 = sphi 0, %s223
    %s238 = sphi 0, %s224
    %s242 = sphi 0, %s242
    %s244 = sphi 0, %s242
    %s245 = sphi 0, %s244
    %s259 = sphi 0, %s245
    %s265 = sphi 0, %s267
    %s268 = sphi 0, %s265
    %s269 = sphi 0, %s268
    %s285 = sphi 0, %s269
  $region4: #{tpu_custom_call.1} parent=0 // loop_header_branch
    %22 = sbr.rel (%p20) target = $region8
  $region5: #{tpu_custom_call.1} parent=0 // loop_body
    %s24 = ssub.s32 %s19, 1
    %s25 = ssub.s32 %s19, 2
    %s26 = sadd.s32 %s19, 1
    %s27 = ssub.s32 %s19, %s26
    %p28 = scmp.eq.s32.totalorder %s27, 0
    %s30 = sadd.s32 %s29, 1
    %s31 = scalar_select %p28, %s29, %s30
    %p34 = pneg %p28
    %p35 = scmp.eq.s32.totalorder %s19, 1
    %p36 = por %p34, %p35
    %p37 = scmp.ne.s32.totalorder %s29, %s32
    %p38 = scmp.eq.s32.totalorder %s19, 0
    %p39 = por %p37, %p38
    %p40 = scmp.ne.s32.totalorder %s29, %s32
    %p41 = scmp.eq.s32.totalorder %s24, 1
    %p42 = por %p40, %p41
    %p43 = scmp.ne.s32.totalorder %s32, %s33
    %p44 = scmp.eq.s32.totalorder %s24, 0
    %p45 = por %p43, %p44
    %p46 = scmp.ne.s32.totalorder %s32, %s33
    %p47 = scmp.eq.s32.totalorder %s25, 1
    %p48 = por %p46, %p47
    %p50 = scmp.ne.s32.totalorder %s33, %s49
    %p51 = scmp.eq.s32.totalorder %s25, 0
    %p52 = por %p50, %p51
    %s54 = sadd.s32 %s53, 1
    %p57 = scmp.eq.s32.totalorder %s19, 1
    %p58 = scmp.ne.s32.totalorder %s53, %s55
    %p59 = scmp.eq.s32.totalorder %s19, 0
    %p60 = por %p58, %p59
    %p61 = scmp.ne.s32.totalorder %s53, %s55
    %p62 = scmp.eq.s32.totalorder %s24, 1
    %p63 = por %p61, %p62
    %p64 = scmp.ne.s32.totalorder %s55, %s56
    %p65 = scmp.eq.s32.totalorder %s24, 0
    %p66 = por %p64, %p65
    %p67 = scmp.ne.s32.totalorder %s55, %s56
    %p68 = scmp.eq.s32.totalorder %s25, 1
    %p69 = por %p67, %p68
    %p71 = scmp.ne.s32.totalorder %s56, %s70
    %p72 = scmp.eq.s32.totalorder %s25, 0
    %p73 = por %p71, %p72
    %s75 = sadd.s32 %s74, 1
    %p78 = scmp.eq.s32.totalorder %s19, 1
    %p79 = scmp.ne.s32.totalorder %s74, %s76
    %p80 = scmp.eq.s32.totalorder %s19, 0
    %p81 = por %p79, %p80
    %p82 = scmp.ne.s32.totalorder %s74, %s76
    %p83 = scmp.eq.s32.totalorder %s24, 1
    %p84 = por %p82, %p83
    %p85 = scmp.ne.s32.totalorder %s76, %s77
    %p86 = scmp.eq.s32.totalorder %s24, 0
    %p87 = por %p85, %p86
    %p88 = scmp.ne.s32.totalorder %s76, %s77
    %p89 = scmp.eq.s32.totalorder %s25, 1
    %p90 = por %p88, %p89
    %p92 = scmp.ne.s32.totalorder %s77, %s91
    %p93 = scmp.eq.s32.totalorder %s25, 0
    %p94 = por %p92, %p93
    %s96 = sadd.s32 %s95, 1
    %p99 = scmp.eq.s32.totalorder %s19, 1
    %p100 = scmp.ne.s32.totalorder %s95, %s97
    %p101 = scmp.eq.s32.totalorder %s19, 0
    %p102 = por %p100, %p101
    %p103 = scmp.ne.s32.totalorder %s95, %s97
    %p104 = scmp.eq.s32.totalorder %s24, 1
    %p105 = por %p103, %p104
    %p106 = scmp.ne.s32.totalorder %s97, %s98
    %p107 = scmp.eq.s32.totalorder %s24, 0
    %p108 = por %p106, %p107
    %p109 = scmp.ne.s32.totalorder %s97, %s98
    %p110 = scmp.eq.s32.totalorder %s25, 1
    %p111 = por %p109, %p110
    %p113 = scmp.ne.s32.totalorder %s98, %s112
    %p114 = scmp.eq.s32.totalorder %s25, 0
    %p115 = por %p113, %p114
    %s117 = sadd.s32 %s116, 1
    %p120 = scmp.eq.s32.totalorder %s19, 1
    %p121 = scmp.ne.s32.totalorder %s116, %s118
    %p122 = scmp.eq.s32.totalorder %s19, 0
    %p123 = por %p121, %p122
    %p124 = scmp.ne.s32.totalorder %s116, %s118
    %p125 = scmp.eq.s32.totalorder %s24, 1
    %p126 = por %p124, %p125
    %p127 = scmp.ne.s32.totalorder %s118, %s119
    %p128 = scmp.eq.s32.totalorder %s24, 0
    %p129 = por %p127, %p128
    %p130 = scmp.ne.s32.totalorder %s118, %s119
    %p131 = scmp.eq.s32.totalorder %s25, 1
    %p132 = por %p130, %p131
    %p134 = scmp.ne.s32.totalorder %s119, %s133
    %p135 = scmp.eq.s32.totalorder %s25, 0
    %p136 = por %p134, %p135
    %s138 = sadd.s32 %s137, 1
    %p141 = scmp.eq.s32.totalorder %s19, 1
    %p142 = scmp.ne.s32.totalorder %s137, %s139
    %p143 = scmp.eq.s32.totalorder %s19, 0
    %p144 = por %p142, %p143
    %p145 = scmp.ne.s32.totalorder %s137, %s139
    %p146 = scmp.eq.s32.totalorder %s24, 1
    %p147 = por %p145, %p146
    %p148 = scmp.ne.s32.totalorder %s139, %s140
    %p149 = scmp.eq.s32.totalorder %s24, 0
    %p150 = por %p148, %p149
    %p151 = scmp.ne.s32.totalorder %s139, %s140
    %p152 = scmp.eq.s32.totalorder %s25, 1
    %p153 = por %p151, %p152
    %p155 = scmp.ne.s32.totalorder %s140, %s154
    %p156 = scmp.eq.s32.totalorder %s25, 0
    %p157 = por %p155, %p156
    %s159 = sadd.s32 %s158, 1
    %p162 = scmp.eq.s32.totalorder %s19, 1
    %p163 = scmp.ne.s32.totalorder %s158, %s160
    %p164 = scmp.eq.s32.totalorder %s19, 0
    %p165 = por %p163, %p164
    %p166 = scmp.ne.s32.totalorder %s158, %s160
    %p167 = scmp.eq.s32.totalorder %s24, 1
    %p168 = por %p166, %p167
    %p169 = scmp.ne.s32.totalorder %s160, %s161
    %p170 = scmp.eq.s32.totalorder %s24, 0
    %p171 = por %p169, %p170
    %p172 = scmp.ne.s32.totalorder %s160, %s161
    %p173 = scmp.eq.s32.totalorder %s25, 1
    %p174 = por %p172, %p173
    %p176 = scmp.ne.s32.totalorder %s161, %s175
    %p177 = scmp.eq.s32.totalorder %s25, 0
    %p178 = por %p176, %p177
    %s180 = sadd.s32 %s179, 1
    %p183 = scmp.eq.s32.totalorder %s19, 1
    %p184 = scmp.ne.s32.totalorder %s179, %s181
    %p185 = scmp.eq.s32.totalorder %s19, 0
    %p186 = por %p184, %p185
    %p187 = scmp.ne.s32.totalorder %s179, %s181
    %p188 = scmp.eq.s32.totalorder %s24, 1
    %p189 = por %p187, %p188
    %p190 = scmp.ne.s32.totalorder %s181, %s182
    %p191 = scmp.eq.s32.totalorder %s24, 0
    %p192 = por %p190, %p191
    %p193 = scmp.ne.s32.totalorder %s181, %s182
    %p194 = scmp.eq.s32.totalorder %s25, 1
    %p195 = por %p193, %p194
    %p197 = scmp.ne.s32.totalorder %s182, %s196
    %p198 = scmp.eq.s32.totalorder %s25, 0
    %p199 = por %p197, %p198
    %s201 = sadd.s32 %s200, 1
    %p204 = scmp.eq.s32.totalorder %s19, 1
    %p205 = scmp.ne.s32.totalorder %s200, %s202
    %p206 = scmp.eq.s32.totalorder %s19, 0
    %p207 = por %p205, %p206
    %p208 = scmp.ne.s32.totalorder %s200, %s202
    %p209 = scmp.eq.s32.totalorder %s24, 1
    %p210 = por %p208, %p209
    %p211 = scmp.ne.s32.totalorder %s202, %s203
    %p212 = scmp.eq.s32.totalorder %s24, 0
    %p213 = por %p211, %p212
    %p214 = scmp.ne.s32.totalorder %s202, %s203
    %p215 = scmp.eq.s32.totalorder %s25, 1
    %p216 = por %p214, %p215
    %p218 = scmp.ne.s32.totalorder %s203, %s217
    %p219 = scmp.eq.s32.totalorder %s25, 0
    %p220 = por %p218, %p219
    %s222 = sadd.s32 %s221, 1
    %p225 = scmp.eq.s32.totalorder %s19, 1
    %p226 = scmp.ne.s32.totalorder %s221, %s223
    %p227 = scmp.eq.s32.totalorder %s19, 0
    %p228 = por %p226, %p227
    %p229 = scmp.ne.s32.totalorder %s221, %s223
    %p230 = scmp.eq.s32.totalorder %s24, 1
    %p231 = por %p229, %p230
    %p232 = scmp.ne.s32.totalorder %s223, %s224
    %p233 = scmp.eq.s32.totalorder %s24, 0
    %p234 = por %p232, %p233
    %p235 = scmp.ne.s32.totalorder %s223, %s224
    %p236 = scmp.eq.s32.totalorder %s25, 1
    %p237 = por %p235, %p236
    %p239 = scmp.ne.s32.totalorder %s224, %s238
    %p240 = scmp.eq.s32.totalorder %s25, 0
    %p241 = por %p239, %p240
    %s243 = sadd.s32 %s242, 1
    %p246 = scmp.eq.s32.totalorder %s19, 1
    %p247 = scmp.ne.s32.totalorder %s242, %s244
    %p248 = scmp.eq.s32.totalorder %s19, 0
    %p249 = por %p247, %p248
    %p250 = scmp.ne.s32.totalorder %s242, %s244
    %p251 = scmp.eq.s32.totalorder %s24, 1
    %p252 = por %p250, %p251
    %p253 = scmp.ne.s32.totalorder %s244, %s245
    %p254 = scmp.eq.s32.totalorder %s24, 0
    %p255 = por %p253, %p254
    %p256 = scmp.ne.s32.totalorder %s244, %s245
    %p257 = scmp.eq.s32.totalorder %s25, 1
    %p258 = por %p256, %p257
    %p260 = scmp.ne.s32.totalorder %s245, %s259
    %p261 = scmp.eq.s32.totalorder %s25, 0
    %p262 = por %p260, %p261
    %s263 = ssub.s32 %s19, %s26
    %p264 = scmp.eq.s32.totalorder %s263, 0
    %s266 = sadd.s32 %s265, 1
    %s267 = scalar_select %p264, %s265, %s266
    %p270 = pneg %p264
    %p271 = scmp.eq.s32.totalorder %s19, 1
    %p272 = por %p270, %p271
    %p273 = scmp.ne.s32.totalorder %s265, %s268
    %p274 = scmp.eq.s32.totalorder %s19, 0
    %p275 = por %p273, %p274
    %p276 = scmp.ne.s32.totalorder %s265, %s268
    %p277 = scmp.eq.s32.totalorder %s24, 1
    %p278 = por %p276, %p277
    %p279 = scmp.ne.s32.totalorder %s268, %s269
    %p280 = scmp.eq.s32.totalorder %s24, 0
    %p281 = por %p279, %p280
    %p282 = scmp.ne.s32.totalorder %s268, %s269
    %p283 = scmp.eq.s32.totalorder %s25, 1
    %p284 = por %p282, %p283
    %p286 = scmp.ne.s32.totalorder %s269, %s285
    %p287 = scmp.eq.s32.totalorder %s25, 0
    %p288 = por %p286, %p287
    %p289 = scmp.le.s32.totalorder 1, %s19
    %p290 = scmp.lt.s32.totalorder %s19, 3
    %p291 = pnand %p289, %p290
    %p292 = pneg %p291
    // Predicated region
    $region9: #{tpu_custom_call.1} parent=5 // pred_check
      _
    $region10: #{tpu_custom_call.1} parent=5 // pred_check_branch
      %294 = sbr.rel (%p291) target = $region12
    $region11: #{tpu_custom_call.1} parent=5 // pred_region
      %s295 = ssub.s32 %s19, 1
      // Predicated region
      $region13: #{tpu_custom_call.1} parent=11 // pred_check
        %p296 = pneg %p66
      $region14: #{tpu_custom_call.1} parent=11 // pred_check_branch
        %298 = sbr.rel (%p296) target = $region16
      $region15: #{tpu_custom_call.1} parent=11 // pred_region
        _
      $region16: #{tpu_custom_call.1} parent=11 // pred_fallthru
        _
      // Predicated region
      $region17: #{tpu_custom_call.1} parent=11 // pred_check
        %p299 = pneg %p87
      $region18: #{tpu_custom_call.1} parent=11 // pred_check_branch
        %301 = sbr.rel (%p299) target = $region20
      $region19: #{tpu_custom_call.1} parent=11 // pred_region
        _
      $region20: #{tpu_custom_call.1} parent=11 // pred_fallthru
        _
      // Predicated region
      $region21: #{tpu_custom_call.1} parent=11 // pred_check
        %p302 = pneg %p108
      $region22: #{tpu_custom_call.1} parent=11 // pred_check_branch
        %304 = sbr.rel (%p302) target = $region24
      $region23: #{tpu_custom_call.1} parent=11 // pred_region
        _
      $region24: #{tpu_custom_call.1} parent=11 // pred_fallthru
        _
      // Predicated region
      $region25: #{tpu_custom_call.1} parent=11 // pred_check
        %p305 = pneg %p129
      $region26: #{tpu_custom_call.1} parent=11 // pred_check_branch
        %307 = sbr.rel (%p305) target = $region28
      $region27: #{tpu_custom_call.1} parent=11 // pred_region
        _
      $region28: #{tpu_custom_call.1} parent=11 // pred_fallthru
        _
      // Predicated region
      $region29: #{tpu_custom_call.1} parent=11 // pred_check
        %p308 = pneg %p150
      $region30: #{tpu_custom_call.1} parent=11 // pred_check_branch
        %310 = sbr.rel (%p308) target = $region32
      $region31: #{tpu_custom_call.1} parent=11 // pred_region
        _
      $region32: #{tpu_custom_call.1} parent=11 // pred_fallthru
        _
      // Predicated region
      $region33: #{tpu_custom_call.1} parent=11 // pred_check
        %p311 = pneg %p171
      $region34: #{tpu_custom_call.1} parent=11 // pred_check_branch
        %313 = sbr.rel (%p311) target = $region36
      $region35: #{tpu_custom_call.1} parent=11 // pred_region
        _
      $region36: #{tpu_custom_call.1} parent=11 // pred_fallthru
        _
      // Predicated region
      $region37: #{tpu_custom_call.1} parent=11 // pred_check
        %p314 = pneg %p192
      $region38: #{tpu_custom_call.1} parent=11 // pred_check_branch
        %316 = sbr.rel (%p314) target = $region40
      $region39: #{tpu_custom_call.1} parent=11 // pred_region
        _
      $region40: #{tpu_custom_call.1} parent=11 // pred_fallthru
        _
      // Predicated region
      $region41: #{tpu_custom_call.1} parent=11 // pred_check
        %p317 = pneg %p213
      $region42: #{tpu_custom_call.1} parent=11 // pred_check_branch
        %319 = sbr.rel (%p317) target = $region44
      $region43: #{tpu_custom_call.1} parent=11 // pred_region
        _
      $region44: #{tpu_custom_call.1} parent=11 // pred_fallthru
        _
      // Predicated region
      $region45: #{tpu_custom_call.1} parent=11 // pred_check
        %p320 = pneg %p234
      $region46: #{tpu_custom_call.1} parent=11 // pred_check_branch
        %322 = sbr.rel (%p320) target = $region48
      $region47: #{tpu_custom_call.1} parent=11 // pred_region
        _
      $region48: #{tpu_custom_call.1} parent=11 // pred_fallthru
        _
      // Predicated region
      $region49: #{tpu_custom_call.1} parent=11 // pred_check
        %p323 = pneg %p255
      $region50: #{tpu_custom_call.1} parent=11 // pred_check_branch
        %325 = sbr.rel (%p323) target = $region52
      $region51: #{tpu_custom_call.1} parent=11 // pred_region
        _
      $region52: #{tpu_custom_call.1} parent=11 // pred_fallthru
        _
    $region12: #{tpu_custom_call.1} parent=5 // pred_fallthru
      _
    %p326 = scmp.lt.s32.totalorder %s19, 2
    // Predicated region
    $region53: #{tpu_custom_call.1} parent=5 // pred_check
      %p327 = pneg %p326
    $region54: #{tpu_custom_call.1} parent=5 // pred_check_branch
      %329 = sbr.rel (%p327) target = $region56
    $region55: #{tpu_custom_call.1} parent=5 // pred_region
      // Predicated region
      $region57: #{tpu_custom_call.1} parent=55 // pred_check
        %p330 = pneg %p39
      $region58: #{tpu_custom_call.1} parent=55 // pred_check_branch
        %332 = sbr.rel (%p330) target = $region60
      $region59: #{tpu_custom_call.1} parent=55 // pred_region
        %p333 = scmp.lt.s32.totalorder %s19, 1
        %s334 = scalar_select %p333, %s19, 1
        %s335 = smul.addr %s334, 32
        %s336 = smul.addr %s335, 8
        %s337 = scalar_lea.vmem %s0, %s336
      $region60: #{tpu_custom_call.1} parent=55 // pred_fallthru
        _
    $region56: #{tpu_custom_call.1} parent=5 // pred_fallthru
      _
    %p338 = scmp.le.s32.totalorder 1, %s19
    %p339 = scmp.lt.s32.totalorder %s19, 3
    %p340 = pnand %p338, %p339
    %p341 = pneg %p340
    // Predicated region
    $region61: #{tpu_custom_call.1} parent=5 // pred_check
      _
    $region62: #{tpu_custom_call.1} parent=5 // pred_check_branch
      %343 = sbr.rel (%p340) target = $region64
    $region63: #{tpu_custom_call.1} parent=5 // pred_region
      %s344 = ssub.s32 %s19, 1
      %p345 = scmp.lt.s32.totalorder %s24, 1
      %s346 = scalar_select %p345, %s24, 1
      %s347 = smul.addr %s346, 32
      %s348 = smul.addr %s347, 8
      %s349 = scalar_lea.vmem %s0, %s348
      %p350 = pneg %p45
      %p351 = pneg %p42
      %p352 = pneg %p66
      %p353 = pneg %p63
      %p354 = pneg %p87
      %p355 = pneg %p84
      %p356 = pneg %p108
      %p357 = pneg %p105
      %p358 = pneg %p129
      %p359 = pneg %p126
      %p360 = pneg %p150
      %p361 = pneg %p147
      %p362 = pneg %p171
      %p363 = pneg %p168
      %p364 = pneg %p192
      %p365 = pneg %p189
      %p366 = pneg %p213
      %p367 = pneg %p210
      %p368 = pneg %p234
      %p369 = pneg %p231
      %p370 = pneg %p255
      %p371 = pneg %p252
      %p372 = pneg %p281
      %p373 = pneg %p278
      %p374 = scmp.lt.s32.totalorder %s24, 1
      %s375 = scalar_select %p374, %s24, 1
      %s376 = scalar_lea.vmem %s11, %s375
      %p377 = scmp.lt.s32.totalorder %s24, 1
      %s378 = scalar_select %p377, %s24, 1
      %s379 = smul.addr %s378, 32
      %s380 = smul.addr %s379, 8
      %s381 = scalar_lea.vmem %s0, %s380
      %p382 = scmp.lt.s32.totalorder %s24, 1
      %s383 = scalar_select %p382, %s24, 1
      %s384 = scalar_lea.vmem %s11, %s383
      %v385 = vld [vmem:[%s381] sm:$0xff]
      %v386 = vld [vmem:[%s381 + $0x8] sm:$0xff]
      %v387 = vld [vmem:[%s381 + $0x10] sm:$0xff]
      %v388 = vld [vmem:[%s381 + $0x18] sm:$0xff]
      %v389 = vld [vmem:[%s381 + $0x20] sm:$0xff]
      %v390 = vld [vmem:[%s381 + $0x28] sm:$0xff]
      %v391 = vld [vmem:[%s381 + $0x30] sm:$0xff]
      %v392 = vld [vmem:[%s381 + $0x38] sm:$0xff]
      %v393 = vld [vmem:[%s381 + $0x40] sm:$0xff]
      %v394 = vld [vmem:[%s381 + $0x48] sm:$0xff]
      %v395 = vld [vmem:[%s381 + $0x50] sm:$0xff]
      %v396 = vld [vmem:[%s381 + $0x58] sm:$0xff]
      %v397 = vld [vmem:[%s381 + $0x60] sm:$0xff]
      %v398 = vld [vmem:[%s381 + $0x68] sm:$0xff]
      %v399 = vld [vmem:[%s381 + $0x70] sm:$0xff]
      %v400 = vld [vmem:[%s381 + $0x78] sm:$0xff]
      %v401 = vld [vmem:[%s381 + $0x80] sm:$0xff]
      %v402 = vld [vmem:[%s381 + $0x88] sm:$0xff]
      %v403 = vld [vmem:[%s381 + $0x90] sm:$0xff]
      %v404 = vld [vmem:[%s381 + $0x98] sm:$0xff]
      %v405 = vld [vmem:[%s381 + $0xa0] sm:$0xff]
      %v406 = vld [vmem:[%s381 + $0xa8] sm:$0xff]
      %v407 = vld [vmem:[%s381 + $0xb0] sm:$0xff]
      %v408 = vld [vmem:[%s381 + $0xb8] sm:$0xff]
      %v409 = vld [vmem:[%s381 + $0xc0] sm:$0xff]
      %v410 = vld [vmem:[%s381 + $0xc8] sm:$0xff]
      %v411 = vld [vmem:[%s381 + $0xd0] sm:$0xff]
      %v412 = vld [vmem:[%s381 + $0xd8] sm:$0xff]
      %v413 = vld [vmem:[%s381 + $0xe0] sm:$0xff]
      %v414 = vld [vmem:[%s381 + $0xe8] sm:$0xff]
      %v415 = vld [vmem:[%s381 + $0xf0] sm:$0xff]
      %v416 = vld [vmem:[%s381 + $0xf8] sm:$0xff]
      %vm417 = vcmask 23552
      %418 = vst.msk [vmem:[#allocation2] sm:$0xff] %vm417, 0.0
      %419 = vst.msk [vmem:[#allocation2 + $0x8] sm:$0xff] %vm417, 0.0
      %vm420 = vcmask 17408
      %421 = vst.msk [vmem:[#allocation2 + $0x10] sm:$0x3] %vm420, 0.0
      %422 = vst.msk [vmem:[#allocation2 + $0x18] sm:$0xff] %vm417, 0.0
      %423 = vst.msk [vmem:[#allocation2 + $0x20] sm:$0xff] %vm417, 0.0
      %424 = vst.msk [vmem:[#allocation2 + $0x28] sm:$0x3] %vm420, 0.0
      %425 = vst.msk [vmem:[#allocation2 + $0x30] sm:$0xff] %vm417, 0.0
      %426 = vst.msk [vmem:[#allocation2 + $0x38] sm:$0xff] %vm417, 0.0
      %427 = vst.msk [vmem:[#allocation2 + $0x40] sm:$0x3] %vm420, 0.0
      %428 = vst.msk [vmem:[#allocation2 + $0x48] sm:$0xff] %vm417, 0.0
      %429 = vst.msk [vmem:[#allocation2 + $0x50] sm:$0xff] %vm417, 0.0
      %430 = vst.msk [vmem:[#allocation2 + $0x58] sm:$0x3] %vm420, 0.0
      %431 = vst.msk [vmem:[#allocation2 + $0x60] sm:$0xff] %vm417, 0.0
      %432 = vst.msk [vmem:[#allocation2 + $0x68] sm:$0xff] %vm417, 0.0
      %433 = vst.msk [vmem:[#allocation2 + $0x70] sm:$0x3] %vm420, 0.0
      %434 = vst.msk [vmem:[#allocation2 + $0x78] sm:$0xff] %vm417, 0.0
      %435 = vst.msk [vmem:[#allocation2 + $0x80] sm:$0xff] %vm417, 0.0
      %436 = vst.msk [vmem:[#allocation2 + $0x88] sm:$0x3] %vm420, 0.0
      %437 = vst.msk [vmem:[#allocation2 + $0x90] sm:$0xff] %vm417, 0.0
      %438 = vst.msk [vmem:[#allocation2 + $0x98] sm:$0xff] %vm417, 0.0
      %439 = vst.msk [vmem:[#allocation2 + $0xa0] sm:$0x3] %vm420, 0.0
      %440 = vst.msk [vmem:[#allocation2 + $0xa8] sm:$0xff] %vm417, 0.0
      %441 = vst.msk [vmem:[#allocation2 + $0xb0] sm:$0xff] %vm417, 0.0
      %442 = vst.msk [vmem:[#allocation2 + $0xb8] sm:$0x3] %vm420, 0.0
      %443 = vst.msk [vmem:[#allocation2 + $0xc0] sm:$0xff] %vm417, 0.0
      %444 = vst.msk [vmem:[#allocation2 + $0xc8] sm:$0xff] %vm417, 0.0
      %445 = vst.msk [vmem:[#allocation2 + $0xd0] sm:$0x3] %vm420, 0.0
      %446 = vst.msk [vmem:[#allocation2 + $0xd8] sm:$0xff] %vm417, 0.0
      %447 = vst.msk [vmem:[#allocation2 + $0xe0] sm:$0xff] %vm417, 0.0
      %448 = vst.msk [vmem:[#allocation2 + $0xe8] sm:$0x3] %vm420, 0.0
      %449 = vst.msk [vmem:[#allocation2 + $0xf0] sm:$0xff] %vm417, 0.0
      %450 = vst.msk [vmem:[#allocation2 + $0xf8] sm:$0xff] %vm417, 0.0
      %451 = vst.msk [vmem:[#allocation2 + $0x100] sm:$0x3] %vm420, 0.0
      %452 = vst.msk [vmem:[#allocation2 + $0x108] sm:$0xff] %vm417, 0.0
      %453 = vst.msk [vmem:[#allocation2 + $0x110] sm:$0xff] %vm417, 0.0
      %454 = vst.msk [vmem:[#allocation2 + $0x118] sm:$0x3] %vm420, 0.0
      %455 = vst.msk [vmem:[#allocation2 + $0x120] sm:$0xff] %vm417, 0.0
      %456 = vst.msk [vmem:[#allocation2 + $0x128] sm:$0xff] %vm417, 0.0
      %457 = vst.msk [vmem:[#allocation2 + $0x130] sm:$0x3] %vm420, 0.0
      %458 = vst.msk [vmem:[#allocation2 + $0x138] sm:$0xff] %vm417, 0.0
      %459 = vst.msk [vmem:[#allocation2 + $0x140] sm:$0xff] %vm417, 0.0
      %460 = vst.msk [vmem:[#allocation2 + $0x148] sm:$0x3] %vm420, 0.0
      %461 = vst.msk [vmem:[#allocation2 + $0x150] sm:$0xff] %vm417, 0.0
      %462 = vst.msk [vmem:[#allocation2 + $0x158] sm:$0xff] %vm417, 0.0
      %463 = vst.msk [vmem:[#allocation2 + $0x160] sm:$0x3] %vm420, 0.0
      %464 = vst.msk [vmem:[#allocation2 + $0x168] sm:$0xff] %vm417, 0.0
      %465 = vst.msk [vmem:[#allocation2 + $0x170] sm:$0xff] %vm417, 0.0
      %466 = vst.msk [vmem:[#allocation2 + $0x178] sm:$0x3] %vm420, 0.0
      %467 = vst.msk [vmem:[#allocation2 + $0x180] sm:$0xff] %vm417, 0.0
      %468 = vst.msk [vmem:[#allocation2 + $0x188] sm:$0xff] %vm417, 0.0
      %469 = vst.msk [vmem:[#allocation2 + $0x190] sm:$0x3] %vm420, 0.0
      %470 = vst.msk [vmem:[#allocation2 + $0x198] sm:$0xff] %vm417, 0.0
      %471 = vst.msk [vmem:[#allocation2 + $0x1a0] sm:$0xff] %vm417, 0.0
      %472 = vst.msk [vmem:[#allocation2 + $0x1a8] sm:$0x3] %vm420, 0.0
      %s473 = scalar_lea.vmem [#allocation2], 24
      %474 = vst.msk [vmem:[%s473 + $0x1] sm:$0xff] %vm417, %v385
      %475 = vst.msk [vmem:[%s473 + $0x9] sm:$0xff] %vm417, %v386
      %476 = vst.msk [vmem:[%s473 + $0x19] sm:$0xff] %vm417, %v387
      %477 = vst.msk [vmem:[%s473 + $0x21] sm:$0xff] %vm417, %v388
      %478 = vst.msk [vmem:[%s473 + $0x31] sm:$0xff] %vm417, %v389
      %479 = vst.msk [vmem:[%s473 + $0x39] sm:$0xff] %vm417, %v390
      %480 = vst.msk [vmem:[%s473 + $0x49] sm:$0xff] %vm417, %v391
      %481 = vst.msk [vmem:[%s473 + $0x51] sm:$0xff] %vm417, %v392
      %482 = vst.msk [vmem:[%s473 + $0x61] sm:$0xff] %vm417, %v393
      %483 = vst.msk [vmem:[%s473 + $0x69] sm:$0xff] %vm417, %v394
      %484 = vst.msk [vmem:[%s473 + $0x79] sm:$0xff] %vm417, %v395
      %485 = vst.msk [vmem:[%s473 + $0x81] sm:$0xff] %vm417, %v396
      %486 = vst.msk [vmem:[%s473 + $0x91] sm:$0xff] %vm417, %v397
      %487 = vst.msk [vmem:[%s473 + $0x99] sm:$0xff] %vm417, %v398
      %488 = vst.msk [vmem:[%s473 + $0xa9] sm:$0xff] %vm417, %v399
      %489 = vst.msk [vmem:[%s473 + $0xb1] sm:$0xff] %vm417, %v400
      %490 = vst.msk [vmem:[%s473 + $0xc1] sm:$0xff] %vm417, %v401
      %491 = vst.msk [vmem:[%s473 + $0xc9] sm:$0xff] %vm417, %v402
      %492 = vst.msk [vmem:[%s473 + $0xd9] sm:$0xff] %vm417, %v403
      %493 = vst.msk [vmem:[%s473 + $0xe1] sm:$0xff] %vm417, %v404
      %494 = vst.msk [vmem:[%s473 + $0xf1] sm:$0xff] %vm417, %v405
      %495 = vst.msk [vmem:[%s473 + $0xf9] sm:$0xff] %vm417, %v406
      %496 = vst.msk [vmem:[%s473 + $0x109] sm:$0xff] %vm417, %v407
      %497 = vst.msk [vmem:[%s473 + $0x111] sm:$0xff] %vm417, %v408
      %498 = vst.msk [vmem:[%s473 + $0x121] sm:$0xff] %vm417, %v409
      %499 = vst.msk [vmem:[%s473 + $0x129] sm:$0xff] %vm417, %v410
      %500 = vst.msk [vmem:[%s473 + $0x139] sm:$0xff] %vm417, %v411
      %501 = vst.msk [vmem:[%s473 + $0x141] sm:$0xff] %vm417, %v412
      %502 = vst.msk [vmem:[%s473 + $0x151] sm:$0xff] %vm417, %v413
      %503 = vst.msk [vmem:[%s473 + $0x159] sm:$0xff] %vm417, %v414
      %504 = vst.msk [vmem:[%s473 + $0x169] sm:$0xff] %vm417, %v415
      %505 = vst.msk [vmem:[%s473 + $0x171] sm:$0xff] %vm417, %v416
      %v506 = vld [vmem:[#allocation2] sm:$0xff]
      %v507 = vld [vmem:[#allocation2 + $0x8] sm:$0xff]
      %v508 = vld [vmem:[#allocation2 + $0x10] sm:$0x3]
      %v509 = vld [vmem:[#allocation2 + $0x18] sm:$0xff]
      %v510 = vld [vmem:[#allocation2 + $0x20] sm:$0xff]
      %v511 = vld [vmem:[#allocation2 + $0x28] sm:$0x3]
      %v512 = vld [vmem:[#allocation2 + $0x30] sm:$0xff]
      %v513 = vld [vmem:[#allocation2 + $0x38] sm:$0xff]
      %v514 = vld [vmem:[#allocation2 + $0x40] sm:$0x3]
      %v515 = vld [vmem:[#allocation2 + $0x48] sm:$0xff]
      %v516 = vld [vmem:[#allocation2 + $0x50] sm:$0xff]
      %v517 = vld [vmem:[#allocation2 + $0x58] sm:$0x3]
      %v518 = vld [vmem:[#allocation2 + $0x60] sm:$0xff]
      %v519 = vld [vmem:[#allocation2 + $0x68] sm:$0xff]
      %v520 = vld [vmem:[#allocation2 + $0x70] sm:$0x3]
      %v521 = vld [vmem:[#allocation2 + $0x78] sm:$0xff]
      %v522 = vld [vmem:[#allocation2 + $0x80] sm:$0xff]
      %v523 = vld [vmem:[#allocation2 + $0x88] sm:$0x3]
      %v524 = vld [vmem:[#allocation2 + $0x90] sm:$0xff]
      %v525 = vld [vmem:[#allocation2 + $0x98] sm:$0xff]
      %v526 = vld [vmem:[#allocation2 + $0xa0] sm:$0x3]
      %v527 = vld [vmem:[#allocation2 + $0xa8] sm:$0xff]
      %v528 = vld [vmem:[#allocation2 + $0xb0] sm:$0xff]
      %v529 = vld [vmem:[#allocation2 + $0xb8] sm:$0x3]
      %v530 = vld [vmem:[#allocation2 + $0xc0] sm:$0xff]
      %v531 = vld [vmem:[#allocation2 + $0xc8] sm:$0xff]
      %v532 = vld [vmem:[#allocation2 + $0xd0] sm:$0x3]
      %v533 = vld [vmem:[#allocation2 + $0xd8] sm:$0xff]
      %v534 = vld [vmem:[#allocation2 + $0xe0] sm:$0xff]
      %v535 = vld [vmem:[#allocation2 + $0xe8] sm:$0x3]
      %v536 = vld [vmem:[#allocation2 + $0xf0] sm:$0xff]
      %v537 = vld [vmem:[#allocation2 + $0xf8] sm:$0xff]
      %v538 = vld [vmem:[#allocation2 + $0x100] sm:$0x3]
      %v539 = vld [vmem:[#allocation2 + $0x108] sm:$0xff]
      %v540 = vld [vmem:[#allocation2 + $0x110] sm:$0xff]
      %v541 = vld [vmem:[#allocation2 + $0x118] sm:$0x3]
      %v542 = vld [vmem:[#allocation2 + $0x120] sm:$0xff]
      %v543 = vld [vmem:[#allocation2 + $0x128] sm:$0xff]
      %v544 = vld [vmem:[#allocation2 + $0x130] sm:$0x3]
      %v545 = vld [vmem:[#allocation2 + $0x138] sm:$0xff]
      %v546 = vld [vmem:[#allocation2 + $0x140] sm:$0xff]
      %v547 = vld [vmem:[#allocation2 + $0x148] sm:$0x3]
      %v548 = vld [vmem:[#allocation2 + $0x150] sm:$0xff]
      %v549 = vld [vmem:[#allocation2 + $0x158] sm:$0xff]
      %v550 = vld [vmem:[#allocation2 + $0x160] sm:$0x3]
      %v551 = vld [vmem:[#allocation2 + $0x168] sm:$0xff]
      %v552 = vld [vmem:[#allocation2 + $0x170] sm:$0xff]
      %v553 = vld [vmem:[#allocation2 + $0x178] sm:$0x3]
      %v554 = vld [vmem:[#allocation2 + $0x180] sm:$0xff]
      %v555 = vld [vmem:[#allocation2 + $0x188] sm:$0xff]
      %v556 = vld [vmem:[#allocation2 + $0x190] sm:$0x3]
      %v557 = vld [vmem:[#allocation2 + $0x198] sm:$0xff]
      %v558 = vld [vmem:[#allocation2 + $0x1a0] sm:$0xff]
      %v559 = vld [vmem:[#allocation2 + $0x1a8] sm:$0x3]
      %560 = vst.msk [vmem:[#allocation3] sm:$0xff] %vm417, %v506
      %561 = vst.msk [vmem:[#allocation3 + $0x8] sm:$0xff] %vm417, %v507
      %562 = vst.msk [vmem:[#allocation3 + $0x10] sm:$0xff] %vm417, %v509
      %563 = vst.msk [vmem:[#allocation3 + $0x18] sm:$0xff] %vm417, %v510
      %564 = vst.msk [vmem:[#allocation3 + $0x20] sm:$0xff] %vm417, %v512
      %565 = vst.msk [vmem:[#allocation3 + $0x28] sm:$0xff] %vm417, %v513
      %566 = vst.msk [vmem:[#allocation3 + $0x30] sm:$0xff] %vm417, %v515
      %567 = vst.msk [vmem:[#allocation3 + $0x38] sm:$0xff] %vm417, %v516
      %568 = vst.msk [vmem:[#allocation3 + $0x40] sm:$0xff] %vm417, %v518
      %569 = vst.msk [vmem:[#allocation3 + $0x48] sm:$0xff] %vm417, %v519
      %570 = vst.msk [vmem:[#allocation3 + $0x50] sm:$0xff] %vm417, %v521
      %571 = vst.msk [vmem:[#allocation3 + $0x58] sm:$0xff] %vm417, %v522
      %572 = vst.msk [vmem:[#allocation3 + $0x60] sm:$0xff] %vm417, %v524
      %573 = vst.msk [vmem:[#allocation3 + $0x68] sm:$0xff] %vm417, %v525
      %574 = vst.msk [vmem:[#allocation3 + $0x70] sm:$0xff] %vm417, %v527
      %575 = vst.msk [vmem:[#allocation3 + $0x78] sm:$0xff] %vm417, %v528
      %576 = vst.msk [vmem:[#allocation3 + $0x80] sm:$0xff] %vm417, %v530
      %577 = vst.msk [vmem:[#allocation3 + $0x88] sm:$0xff] %vm417, %v531
      %578 = vst.msk [vmem:[#allocation3 + $0x90] sm:$0xff] %vm417, %v533
      %579 = vst.msk [vmem:[#allocation3 + $0x98] sm:$0xff] %vm417, %v534
      %580 = vst.msk [vmem:[#allocation3 + $0xa0] sm:$0xff] %vm417, %v536
      %581 = vst.msk [vmem:[#allocation3 + $0xa8] sm:$0xff] %vm417, %v537
      %582 = vst.msk [vmem:[#allocation3 + $0xb0] sm:$0xff] %vm417, %v539
      %583 = vst.msk [vmem:[#allocation3 + $0xb8] sm:$0xff] %vm417, %v540
      %584 = vst.msk [vmem:[#allocation3 + $0xc0] sm:$0xff] %vm417, %v542
      %585 = vst.msk [vmem:[#allocation3 + $0xc8] sm:$0xff] %vm417, %v543
      %586 = vst.msk [vmem:[#allocation3 + $0xd0] sm:$0xff] %vm417, %v545
      %587 = vst.msk [vmem:[#allocation3 + $0xd8] sm:$0xff] %vm417, %v546
      %588 = vst.msk [vmem:[#allocation3 + $0xe0] sm:$0xff] %vm417, %v548
      %589 = vst.msk [vmem:[#allocation3 + $0xe8] sm:$0xff] %vm417, %v549
      %590 = vst.msk [vmem:[#allocation3 + $0xf0] sm:$0xff] %vm417, %v551
      %591 = vst.msk [vmem:[#allocation3 + $0xf8] sm:$0xff] %vm417, %v552
      %vm640 = vcmask 1046528
      %v641 = vrot.slane %v506, 1
      %v642 = vrot.slane %v507, 1
      %v643 = vsel %vm640, %v641, %v642
      %v644 = vrot.slane %v508, 1
      %v645 = vsel %vm640, %v642, %v644
      %v646 = vrot.slane %v509, 1
      %v647 = vrot.slane %v510, 1
      %v648 = vsel %vm640, %v646, %v647
      %v649 = vrot.slane %v511, 1
      %v650 = vsel %vm640, %v647, %v649
      %v651 = vrot.slane %v512, 1
      %v652 = vrot.slane %v513, 1
      %v653 = vsel %vm640, %v651, %v652
      %v654 = vrot.slane %v514, 1
      %v655 = vsel %vm640, %v652, %v654
      %v656 = vrot.slane %v515, 1
      %v657 = vrot.slane %v516, 1
      %v658 = vsel %vm640, %v656, %v657
      %v659 = vrot.slane %v517, 1
      %v660 = vsel %vm640, %v657, %v659
      %v661 = vrot.slane %v518, 1
      %v662 = vrot.slane %v519, 1
      %v663 = vsel %vm640, %v661, %v662
      %v664 = vrot.slane %v520, 1
      %v665 = vsel %vm640, %v662, %v664
      %v666 = vrot.slane %v521, 1
      %v667 = vrot.slane %v522, 1
      %v668 = vsel %vm640, %v666, %v667
      %v669 = vrot.slane %v523, 1
      %v670 = vsel %vm640, %v667, %v669
      %v671 = vrot.slane %v524, 1
      %v672 = vrot.slane %v525, 1
      %v673 = vsel %vm640, %v671, %v672
      %v674 = vrot.slane %v526, 1
      %v675 = vsel %vm640, %v672, %v674
      %v676 = vrot.slane %v527, 1
      %v677 = vrot.slane %v528, 1
      %v678 = vsel %vm640, %v676, %v677
      %v679 = vrot.slane %v529, 1
      %v680 = vsel %vm640, %v677, %v679
      %v681 = vrot.slane %v530, 1
      %v682 = vrot.slane %v531, 1
      %v683 = vsel %vm640, %v681, %v682
      %v684 = vrot.slane %v532, 1
      %v685 = vsel %vm640, %v682, %v684
      %v686 = vrot.slane %v533, 1
      %v687 = vrot.slane %v534, 1
      %v688 = vsel %vm640, %v686, %v687
      %v689 = vrot.slane %v535, 1
      %v690 = vsel %vm640, %v687, %v689
      %v691 = vrot.slane %v536, 1
      %v692 = vrot.slane %v537, 1
      %v693 = vsel %vm640, %v691, %v692
      %v694 = vrot.slane %v538, 1
      %v695 = vsel %vm640, %v692, %v694
      %v696 = vrot.slane %v539, 1
      %v697 = vrot.slane %v540, 1
      %v698 = vsel %vm640, %v696, %v697
      %v699 = vrot.slane %v541, 1
      %v700 = vsel %vm640, %v697, %v699
      %v701 = vrot.slane %v542, 1
      %v702 = vrot.slane %v543, 1
      %v703 = vsel %vm640, %v701, %v702
      %v704 = vrot.slane %v544, 1
      %v705 = vsel %vm640, %v702, %v704
      %v706 = vrot.slane %v545, 1
      %v707 = vrot.slane %v546, 1
      %v708 = vsel %vm640, %v706, %v707
      %v709 = vrot.slane %v547, 1
      %v710 = vsel %vm640, %v707, %v709
      %v711 = vrot.slane %v548, 1
      %v712 = vrot.slane %v549, 1
      %v713 = vsel %vm640, %v711, %v712
      %v714 = vrot.slane %v550, 1
      %v715 = vsel %vm640, %v712, %v714
      %v716 = vrot.slane %v551, 1
      %v717 = vrot.slane %v552, 1
      %v718 = vsel %vm640, %v716, %v717
      %v719 = vrot.slane %v553, 1
      %v720 = vsel %vm640, %v717, %v719
      %721 = vrot.lane.b32.xlu0 %v643, 3
      %v722 = vpop.permute.xlu0 %721
      %723 = vrot.lane.b32.xlu0 %v645, 3
      %v724 = vpop.permute.xlu0 %723
      %725 = vrot.lane.b32.xlu0 %v648, 3
      %v726 = vpop.permute.xlu0 %725
      %727 = vrot.lane.b32.xlu0 %v650, 3
      %v728 = vpop.permute.xlu0 %727
      %729 = vrot.lane.b32.xlu0 %v653, 3
      %v730 = vpop.permute.xlu0 %729
      %731 = vrot.lane.b32.xlu0 %v655, 3
      %v732 = vpop.permute.xlu0 %731
      %733 = vrot.lane.b32.xlu0 %v658, 3
      %v734 = vpop.permute.xlu0 %733
      %735 = vrot.lane.b32.xlu0 %v660, 3
      %v736 = vpop.permute.xlu0 %735
      %737 = vrot.lane.b32.xlu0 %v663, 3
      %v738 = vpop.permute.xlu0 %737
      %739 = vrot.lane.b32.xlu0 %v665, 3
      %v740 = vpop.permute.xlu0 %739
      %741 = vrot.lane.b32.xlu0 %v668, 3
      %v742 = vpop.permute.xlu0 %741
      %743 = vrot.lane.b32.xlu0 %v670, 3
      %v744 = vpop.permute.xlu0 %743
      %745 = vrot.lane.b32.xlu0 %v673, 3
      %v746 = vpop.permute.xlu0 %745
      %747 = vrot.lane.b32.xlu0 %v675, 3
      %v748 = vpop.permute.xlu0 %747
      %749 = vrot.lane.b32.xlu0 %v678, 3
      %v750 = vpop.permute.xlu0 %749
      %751 = vrot.lane.b32.xlu0 %v680, 3
      %v752 = vpop.permute.xlu0 %751
      %753 = vrot.lane.b32.xlu0 %v683, 3
      %v754 = vpop.permute.xlu0 %753
      %755 = vrot.lane.b32.xlu0 %v685, 3
      %v756 = vpop.permute.xlu0 %755
      %757 = vrot.lane.b32.xlu0 %v688, 3
      %v758 = vpop.permute.xlu0 %757
      %759 = vrot.lane.b32.xlu0 %v690, 3
      %v760 = vpop.permute.xlu0 %759
      %761 = vrot.lane.b32.xlu0 %v693, 3
      %v762 = vpop.permute.xlu0 %761
      %763 = vrot.lane.b32.xlu0 %v695, 3
      %v764 = vpop.permute.xlu0 %763
      %765 = vrot.lane.b32.xlu0 %v698, 3
      %v766 = vpop.permute.xlu0 %765
      %767 = vrot.lane.b32.xlu0 %v700, 3
      %v768 = vpop.permute.xlu0 %767
      %769 = vrot.lane.b32.xlu0 %v703, 3
      %v770 = vpop.permute.xlu0 %769
      %771 = vrot.lane.b32.xlu0 %v705, 3
      %v772 = vpop.permute.xlu0 %771
      %773 = vrot.lane.b32.xlu0 %v708, 3
      %v774 = vpop.permute.xlu0 %773
      %775 = vrot.lane.b32.xlu0 %v710, 3
      %v776 = vpop.permute.xlu0 %775
      %777 = vrot.lane.b32.xlu0 %v713, 3
      %v778 = vpop.permute.xlu0 %777
      %779 = vrot.lane.b32.xlu0 %v715, 3
      %v780 = vpop.permute.xlu0 %779
      %781 = vrot.lane.b32.xlu0 %v718, 3
      %v782 = vpop.permute.xlu0 %781
      %783 = vrot.lane.b32.xlu0 %v720, 3
      %v784 = vpop.permute.xlu0 %783
      %vm817 = vcmask 48152
      %818 = vst.msk [vmem:[#allocation3] sm:$0xff] %vm817, %v722
      %819 = vst.msk [vmem:[#allocation3 + $0x8] sm:$0xff] %vm817, %v724
      %820 = vst.msk [vmem:[#allocation3 + $0x10] sm:$0xff] %vm817, %v726
      %821 = vst.msk [vmem:[#allocation3 + $0x18] sm:$0xff] %vm817, %v728
      %822 = vst.msk [vmem:[#allocation3 + $0x20] sm:$0xff] %vm817, %v730
      %823 = vst.msk [vmem:[#allocation3 + $0x28] sm:$0xff] %vm817, %v732
      %824 = vst.msk [vmem:[#allocation3 + $0x30] sm:$0xff] %vm817, %v734
      %825 = vst.msk [vmem:[#allocation3 + $0x38] sm:$0xff] %vm817, %v736
      %826 = vst.msk [vmem:[#allocation3 + $0x40] sm:$0xff] %vm817, %v738
      %827 = vst.msk [vmem:[#allocation3 + $0x48] sm:$0xff] %vm817, %v740
      %828 = vst.msk [vmem:[#allocation3 + $0x50] sm:$0xff] %vm817, %v742
      %829 = vst.msk [vmem:[#allocation3 + $0x58] sm:$0xff] %vm817, %v744
      %830 = vst.msk [vmem:[#allocation3 + $0x60] sm:$0xff] %vm817, %v746
      %831 = vst.msk [vmem:[#allocation3 + $0x68] sm:$0xff] %vm817, %v748
      %832 = vst.msk [vmem:[#allocation3 + $0x70] sm:$0xff] %vm817, %v750
      %833 = vst.msk [vmem:[#allocation3 + $0x78] sm:$0xff] %vm817, %v752
      %834 = vst.msk [vmem:[#allocation3 + $0x80] sm:$0xff] %vm817, %v754
      %835 = vst.msk [vmem:[#allocation3 + $0x88] sm:$0xff] %vm817, %v756
      %836 = vst.msk [vmem:[#allocation3 + $0x90] sm:$0xff] %vm817, %v758
      %837 = vst.msk [vmem:[#allocation3 + $0x98] sm:$0xff] %vm817, %v760
      %838 = vst.msk [vmem:[#allocation3 + $0xa0] sm:$0xff] %vm817, %v762
      %839 = vst.msk [vmem:[#allocation3 + $0xa8] sm:$0xff] %vm817, %v764
      %840 = vst.msk [vmem:[#allocation3 + $0xb0] sm:$0xff] %vm817, %v766
      %841 = vst.msk [vmem:[#allocation3 + $0xb8] sm:$0xff] %vm817, %v768
      %842 = vst.msk [vmem:[#allocation3 + $0xc0] sm:$0xff] %vm817, %v770
      %843 = vst.msk [vmem:[#allocation3 + $0xc8] sm:$0xff] %vm817, %v772
      %844 = vst.msk [vmem:[#allocation3 + $0xd0] sm:$0xff] %vm817, %v774
      %845 = vst.msk [vmem:[#allocation3 + $0xd8] sm:$0xff] %vm817, %v776
      %846 = vst.msk [vmem:[#allocation3 + $0xe0] sm:$0xff] %vm817, %v778
      %847 = vst.msk [vmem:[#allocation3 + $0xe8] sm:$0xff] %vm817, %v780
      %848 = vst.msk [vmem:[#allocation3 + $0xf0] sm:$0xff] %vm817, %v782
      %849 = vst.msk [vmem:[#allocation3 + $0xf8] sm:$0xff] %vm817, %v784
      %vm850 = vcmask 1045504
      %v851 = vrot.slane %v506, 2
      %v852 = vrot.slane %v507, 2
      %v853 = vsel %vm850, %v851, %v852
      %v854 = vrot.slane %v508, 2
      %v855 = vsel %vm850, %v852, %v854
      %v856 = vrot.slane %v509, 2
      %v857 = vrot.slane %v510, 2
      %v858 = vsel %vm850, %v856, %v857
      %v859 = vrot.slane %v511, 2
      %v860 = vsel %vm850, %v857, %v859
      %v861 = vrot.slane %v512, 2
      %v862 = vrot.slane %v513, 2
      %v863 = vsel %vm850, %v861, %v862
      %v864 = vrot.slane %v514, 2
      %v865 = vsel %vm850, %v862, %v864
      %v866 = vrot.slane %v515, 2
      %v867 = vrot.slane %v516, 2
      %v868 = vsel %vm850, %v866, %v867
      %v869 = vrot.slane %v517, 2
      %v870 = vsel %vm850, %v867, %v869
      %v871 = vrot.slane %v518, 2
      %v872 = vrot.slane %v519, 2
      %v873 = vsel %vm850, %v871, %v872
      %v874 = vrot.slane %v520, 2
      %v875 = vsel %vm850, %v872, %v874
      %v876 = vrot.slane %v521, 2
      %v877 = vrot.slane %v522, 2
      %v878 = vsel %vm850, %v876, %v877
      %v879 = vrot.slane %v523, 2
      %v880 = vsel %vm850, %v877, %v879
      %v881 = vrot.slane %v524, 2
      %v882 = vrot.slane %v525, 2
      %v883 = vsel %vm850, %v881, %v882
      %v884 = vrot.slane %v526, 2
      %v885 = vsel %vm850, %v882, %v884
      %v886 = vrot.slane %v527, 2
      %v887 = vrot.slane %v528, 2
      %v888 = vsel %vm850, %v886, %v887
      %v889 = vrot.slane %v529, 2
      %v890 = vsel %vm850, %v887, %v889
      %v891 = vrot.slane %v530, 2
      %v892 = vrot.slane %v531, 2
      %v893 = vsel %vm850, %v891, %v892
      %v894 = vrot.slane %v532, 2
      %v895 = vsel %vm850, %v892, %v894
      %v896 = vrot.slane %v533, 2
      %v897 = vrot.slane %v534, 2
      %v898 = vsel %vm850, %v896, %v897
      %v899 = vrot.slane %v535, 2
      %v900 = vsel %vm850, %v897, %v899
      %v901 = vrot.slane %v536, 2
      %v902 = vrot.slane %v537, 2
      %v903 = vsel %vm850, %v901, %v902
      %v904 = vrot.slane %v538, 2
      %v905 = vsel %vm850, %v902, %v904
      %v906 = vrot.slane %v539, 2
      %v907 = vrot.slane %v540, 2
      %v908 = vsel %vm850, %v906, %v907
      %v909 = vrot.slane %v541, 2
      %v910 = vsel %vm850, %v907, %v909
      %v911 = vrot.slane %v542, 2
      %v912 = vrot.slane %v543, 2
      %v913 = vsel %vm850, %v911, %v912
      %v914 = vrot.slane %v544, 2
      %v915 = vsel %vm850, %v912, %v914
      %v916 = vrot.slane %v545, 2
      %v917 = vrot.slane %v546, 2
      %v918 = vsel %vm850, %v916, %v917
      %v919 = vrot.slane %v547, 2
      %v920 = vsel %vm850, %v917, %v919
      %v921 = vrot.slane %v548, 2
      %v922 = vrot.slane %v549, 2
      %v923 = vsel %vm850, %v921, %v922
      %v924 = vrot.slane %v550, 2
      %v925 = vsel %vm850, %v922, %v924
      %v926 = vrot.slane %v551, 2
      %v927 = vrot.slane %v552, 2
      %v928 = vsel %vm850, %v926, %v927
      %v929 = vrot.slane %v553, 2
      %v930 = vsel %vm850, %v927, %v929
      %931 = vrot.lane.b32.xlu0 %v853, 6
      %v932 = vpop.permute.xlu0 %931
      %933 = vrot.lane.b32.xlu0 %v855, 6
      %v934 = vpop.permute.xlu0 %933
      %935 = vrot.lane.b32.xlu0 %v858, 6
      %v936 = vpop.permute.xlu0 %935
      %937 = vrot.lane.b32.xlu0 %v860, 6
      %v938 = vpop.permute.xlu0 %937
      %939 = vrot.lane.b32.xlu0 %v863, 6
      %v940 = vpop.permute.xlu0 %939
      %941 = vrot.lane.b32.xlu0 %v865, 6
      %v942 = vpop.permute.xlu0 %941
      %943 = vrot.lane.b32.xlu0 %v868, 6
      %v944 = vpop.permute.xlu0 %943
      %945 = vrot.lane.b32.xlu0 %v870, 6
      %v946 = vpop.permute.xlu0 %945
      %947 = vrot.lane.b32.xlu0 %v873, 6
      %v948 = vpop.permute.xlu0 %947
      %949 = vrot.lane.b32.xlu0 %v875, 6
      %v950 = vpop.permute.xlu0 %949
      %951 = vrot.lane.b32.xlu0 %v878, 6
      %v952 = vpop.permute.xlu0 %951
      %953 = vrot.lane.b32.xlu0 %v880, 6
      %v954 = vpop.permute.xlu0 %953
      %955 = vrot.lane.b32.xlu0 %v883, 6
      %v956 = vpop.permute.xlu0 %955
      %957 = vrot.lane.b32.xlu0 %v885, 6
      %v958 = vpop.permute.xlu0 %957
      %959 = vrot.lane.b32.xlu0 %v888, 6
      %v960 = vpop.permute.xlu0 %959
      %961 = vrot.lane.b32.xlu0 %v890, 6
      %v962 = vpop.permute.xlu0 %961
      %963 = vrot.lane.b32.xlu0 %v893, 6
      %v964 = vpop.permute.xlu0 %963
      %965 = vrot.lane.b32.xlu0 %v895, 6
      %v966 = vpop.permute.xlu0 %965
      %967 = vrot.lane.b32.xlu0 %v898, 6
      %v968 = vpop.permute.xlu0 %967
      %969 = vrot.lane.b32.xlu0 %v900, 6
      %v970 = vpop.permute.xlu0 %969
      %971 = vrot.lane.b32.xlu0 %v903, 6
      %v972 = vpop.permute.xlu0 %971
      %973 = vrot.lane.b32.xlu0 %v905, 6
      %v974 = vpop.permute.xlu0 %973
      %975 = vrot.lane.b32.xlu0 %v908, 6
      %v976 = vpop.permute.xlu0 %975
      %977 = vrot.lane.b32.xlu0 %v910, 6
      %v978 = vpop.permute.xlu0 %977
      %979 = vrot.lane.b32.xlu0 %v913, 6
      %v980 = vpop.permute.xlu0 %979
      %981 = vrot.lane.b32.xlu0 %v915, 6
      %v982 = vpop.permute.xlu0 %981
      %983 = vrot.lane.b32.xlu0 %v918, 6
      %v984 = vpop.permute.xlu0 %983
      %985 = vrot.lane.b32.xlu0 %v920, 6
      %v986 = vpop.permute.xlu0 %985
      %987 = vrot.lane.b32.xlu0 %v923, 6
      %v988 = vpop.permute.xlu0 %987
      %989 = vrot.lane.b32.xlu0 %v925, 6
      %v990 = vpop.permute.xlu0 %989
      %991 = vrot.lane.b32.xlu0 %v928, 6
      %v992 = vpop.permute.xlu0 %991
      %993 = vrot.lane.b32.xlu0 %v930, 6
      %v994 = vpop.permute.xlu0 %993
      %vm1027 = vcmask 72752
      %1028 = vst.msk [vmem:[#allocation3] sm:$0xff] %vm1027, %v932
      %1029 = vst.msk [vmem:[#allocation3 + $0x8] sm:$0xff] %vm1027, %v934
      %1030 = vst.msk [vmem:[#allocation3 + $0x10] sm:$0xff] %vm1027, %v936
      %1031 = vst.msk [vmem:[#allocation3 + $0x18] sm:$0xff] %vm1027, %v938
      %1032 = vst.msk [vmem:[#allocation3 + $0x20] sm:$0xff] %vm1027, %v940
      %1033 = vst.msk [vmem:[#allocation3 + $0x28] sm:$0xff] %vm1027, %v942
      %1034 = vst.msk [vmem:[#allocation3 + $0x30] sm:$0xff] %vm1027, %v944
      %1035 = vst.msk [vmem:[#allocation3 + $0x38] sm:$0xff] %vm1027, %v946
      %1036 = vst.msk [vmem:[#allocation3 + $0x40] sm:$0xff] %vm1027, %v948
      %1037 = vst.msk [vmem:[#allocation3 + $0x48] sm:$0xff] %vm1027, %v950
      %1038 = vst.msk [vmem:[#allocation3 + $0x50] sm:$0xff] %vm1027, %v952
      %1039 = vst.msk [vmem:[#allocation3 + $0x58] sm:$0xff] %vm1027, %v954
      %1040 = vst.msk [vmem:[#allocation3 + $0x60] sm:$0xff] %vm1027, %v956
      %1041 = vst.msk [vmem:[#allocation3 + $0x68] sm:$0xff] %vm1027, %v958
      %1042 = vst.msk [vmem:[#allocation3 + $0x70] sm:$0xff] %vm1027, %v960
      %1043 = vst.msk [vmem:[#allocation3 + $0x78] sm:$0xff] %vm1027, %v962
      %1044 = vst.msk [vmem:[#allocation3 + $0x80] sm:$0xff] %vm1027, %v964
      %1045 = vst.msk [vmem:[#allocation3 + $0x88] sm:$0xff] %vm1027, %v966
      %1046 = vst.msk [vmem:[#allocation3 + $0x90] sm:$0xff] %vm1027, %v968
      %1047 = vst.msk [vmem:[#allocation3 + $0x98] sm:$0xff] %vm1027, %v970
      %1048 = vst.msk [vmem:[#allocation3 + $0xa0] sm:$0xff] %vm1027, %v972
      %1049 = vst.msk [vmem:[#allocation3 + $0xa8] sm:$0xff] %vm1027, %v974
      %1050 = vst.msk [vmem:[#allocation3 + $0xb0] sm:$0xff] %vm1027, %v976
      %1051 = vst.msk [vmem:[#allocation3 + $0xb8] sm:$0xff] %vm1027, %v978
      %1052 = vst.msk [vmem:[#allocation3 + $0xc0] sm:$0xff] %vm1027, %v980
      %1053 = vst.msk [vmem:[#allocation3 + $0xc8] sm:$0xff] %vm1027, %v982
      %1054 = vst.msk [vmem:[#allocation3 + $0xd0] sm:$0xff] %vm1027, %v984
      %1055 = vst.msk [vmem:[#allocation3 + $0xd8] sm:$0xff] %vm1027, %v986
      %1056 = vst.msk [vmem:[#allocation3 + $0xe0] sm:$0xff] %vm1027, %v988
      %1057 = vst.msk [vmem:[#allocation3 + $0xe8] sm:$0xff] %vm1027, %v990
      %1058 = vst.msk [vmem:[#allocation3 + $0xf0] sm:$0xff] %vm1027, %v992
      %1059 = vst.msk [vmem:[#allocation3 + $0xf8] sm:$0xff] %vm1027, %v994
      %1062 = vrot.lane.b32.xlu0 %v509, 9
      %v1063 = vpop.permute.xlu0 %1062
      %1064 = vrot.lane.b32.xlu0 %v510, 9
      %v1065 = vpop.permute.xlu0 %1064
      %1066 = vrot.lane.b32.xlu0 %v512, 9
      %v1067 = vpop.permute.xlu0 %1066
      %1068 = vrot.lane.b32.xlu0 %v513, 9
      %v1069 = vpop.permute.xlu0 %1068
      %1070 = vrot.lane.b32.xlu0 %v515, 9
      %v1071 = vpop.permute.xlu0 %1070
      %1072 = vrot.lane.b32.xlu0 %v516, 9
      %v1073 = vpop.permute.xlu0 %1072
      %1074 = vrot.lane.b32.xlu0 %v518, 9
      %v1075 = vpop.permute.xlu0 %1074
      %1076 = vrot.lane.b32.xlu0 %v519, 9
      %v1077 = vpop.permute.xlu0 %1076
      %1078 = vrot.lane.b32.xlu0 %v521, 9
      %v1079 = vpop.permute.xlu0 %1078
      %1080 = vrot.lane.b32.xlu0 %v522, 9
      %v1081 = vpop.permute.xlu0 %1080
      %1082 = vrot.lane.b32.xlu0 %v524, 9
      %v1083 = vpop.permute.xlu0 %1082
      %1084 = vrot.lane.b32.xlu0 %v525, 9
      %v1085 = vpop.permute.xlu0 %1084
      %1086 = vrot.lane.b32.xlu0 %v527, 9
      %v1087 = vpop.permute.xlu0 %1086
      %1088 = vrot.lane.b32.xlu0 %v528, 9
      %v1089 = vpop.permute.xlu0 %1088
      %1090 = vrot.lane.b32.xlu0 %v530, 9
      %v1091 = vpop.permute.xlu0 %1090
      %1092 = vrot.lane.b32.xlu0 %v531, 9
      %v1093 = vpop.permute.xlu0 %1092
      %1094 = vrot.lane.b32.xlu0 %v533, 9
      %v1095 = vpop.permute.xlu0 %1094
      %1096 = vrot.lane.b32.xlu0 %v534, 9
      %v1097 = vpop.permute.xlu0 %1096
      %1098 = vrot.lane.b32.xlu0 %v536, 9
      %v1099 = vpop.permute.xlu0 %1098
      %1100 = vrot.lane.b32.xlu0 %v537, 9
      %v1101 = vpop.permute.xlu0 %1100
      %1102 = vrot.lane.b32.xlu0 %v539, 9
      %v1103 = vpop.permute.xlu0 %1102
      %1104 = vrot.lane.b32.xlu0 %v540, 9
      %v1105 = vpop.permute.xlu0 %1104
      %1106 = vrot.lane.b32.xlu0 %v542, 9
      %v1107 = vpop.permute.xlu0 %1106
      %1108 = vrot.lane.b32.xlu0 %v543, 9
      %v1109 = vpop.permute.xlu0 %1108
      %1110 = vrot.lane.b32.xlu0 %v545, 9
      %v1111 = vpop.permute.xlu0 %1110
      %1112 = vrot.lane.b32.xlu0 %v546, 9
      %v1113 = vpop.permute.xlu0 %1112
      %1114 = vrot.lane.b32.xlu0 %v548, 9
      %v1115 = vpop.permute.xlu0 %1114
      %1116 = vrot.lane.b32.xlu0 %v549, 9
      %v1117 = vpop.permute.xlu0 %1116
      %1118 = vrot.lane.b32.xlu0 %v551, 9
      %v1119 = vpop.permute.xlu0 %1118
      %1120 = vrot.lane.b32.xlu0 %v552, 9
      %v1121 = vpop.permute.xlu0 %1120
      %1122 = vrot.lane.b32.xlu0 %v554, 9
      %v1123 = vpop.permute.xlu0 %1122
      %1124 = vrot.lane.b32.xlu0 %v555, 9
      %v1125 = vpop.permute.xlu0 %1124
      %vm1158 = vcmask 97352
      %1159 = vst.msk [vmem:[#allocation3] sm:$0xff] %vm1158, %v1063
      %1160 = vst.msk [vmem:[#allocation3 + $0x8] sm:$0xff] %vm1158, %v1065
      %1161 = vst.msk [vmem:[#allocation3 + $0x10] sm:$0xff] %vm1158, %v1067
      %1162 = vst.msk [vmem:[#allocation3 + $0x18] sm:$0xff] %vm1158, %v1069
      %1163 = vst.msk [vmem:[#allocation3 + $0x20] sm:$0xff] %vm1158, %v1071
      %1164 = vst.msk [vmem:[#allocation3 + $0x28] sm:$0xff] %vm1158, %v1073
      %1165 = vst.msk [vmem:[#allocation3 + $0x30] sm:$0xff] %vm1158, %v1075
      %1166 = vst.msk [vmem:[#allocation3 + $0x38] sm:$0xff] %vm1158, %v1077
      %1167 = vst.msk [vmem:[#allocation3 + $0x40] sm:$0xff] %vm1158, %v1079
      %1168 = vst.msk [vmem:[#allocation3 + $0x48] sm:$0xff] %vm1158, %v1081
      %1169 = vst.msk [vmem:[#allocation3 + $0x50] sm:$0xff] %vm1158, %v1083
      %1170 = vst.msk [vmem:[#allocation3 + $0x58] sm:$0xff] %vm1158, %v1085
      %1171 = vst.msk [vmem:[#allocation3 + $0x60] sm:$0xff] %vm1158, %v1087
      %1172 = vst.msk [vmem:[#allocation3 + $0x68] sm:$0xff] %vm1158, %v1089
      %1173 = vst.msk [vmem:[#allocation3 + $0x70] sm:$0xff] %vm1158, %v1091
      %1174 = vst.msk [vmem:[#allocation3 + $0x78] sm:$0xff] %vm1158, %v1093
      %1175 = vst.msk [vmem:[#allocation3 + $0x80] sm:$0xff] %vm1158, %v1095
      %1176 = vst.msk [vmem:[#allocation3 + $0x88] sm:$0xff] %vm1158, %v1097
      %1177 = vst.msk [vmem:[#allocation3 + $0x90] sm:$0xff] %vm1158, %v1099
      %1178 = vst.msk [vmem:[#allocation3 + $0x98] sm:$0xff] %vm1158, %v1101
      %1179 = vst.msk [vmem:[#allocation3 + $0xa0] sm:$0xff] %vm1158, %v1103
      %1180 = vst.msk [vmem:[#allocation3 + $0xa8] sm:$0xff] %vm1158, %v1105
      %1181 = vst.msk [vmem:[#allocation3 + $0xb0] sm:$0xff] %vm1158, %v1107
      %1182 = vst.msk [vmem:[#allocation3 + $0xb8] sm:$0xff] %vm1158, %v1109
      %1183 = vst.msk [vmem:[#allocation3 + $0xc0] sm:$0xff] %vm1158, %v1111
      %1184 = vst.msk [vmem:[#allocation3 + $0xc8] sm:$0xff] %vm1158, %v1113
      %1185 = vst.msk [vmem:[#allocation3 + $0xd0] sm:$0xff] %vm1158, %v1115
      %1186 = vst.msk [vmem:[#allocation3 + $0xd8] sm:$0xff] %vm1158, %v1117
      %1187 = vst.msk [vmem:[#allocation3 + $0xe0] sm:$0xff] %vm1158, %v1119
      %1188 = vst.msk [vmem:[#allocation3 + $0xe8] sm:$0xff] %vm1158, %v1121
      %1189 = vst.msk [vmem:[#allocation3 + $0xf0] sm:$0xff] %vm1158, %v1123
      %1190 = vst.msk [vmem:[#allocation3 + $0xf8] sm:$0xff] %vm1158, %v1125
      %v1192 = vrot.slane %v554, 1
      %v1193 = vrot.slane %v555, 1
      %v1194 = vsel %vm640, %v1192, %v1193
      %v1195 = vrot.slane %v556, 1
      %v1196 = vsel %vm640, %v1193, %v1195
      %1197 = vrot.lane.b32.xlu0 %v648, 12
      %v1198 = vpop.permute.xlu0 %1197
      %1199 = vrot.lane.b32.xlu0 %v650, 12
      %v1200 = vpop.permute.xlu0 %1199
      %1201 = vrot.lane.b32.xlu0 %v653, 12
      %v1202 = vpop.permute.xlu0 %1201
      %1203 = vrot.lane.b32.xlu0 %v655, 12
      %v1204 = vpop.permute.xlu0 %1203
      %1205 = vrot.lane.b32.xlu0 %v658, 12
      %v1206 = vpop.permute.xlu0 %1205
      %1207 = vrot.lane.b32.xlu0 %v660, 12
      %v1208 = vpop.permute.xlu0 %1207
      %1209 = vrot.lane.b32.xlu0 %v663, 12
      %v1210 = vpop.permute.xlu0 %1209
      %1211 = vrot.lane.b32.xlu0 %v665, 12
      %v1212 = vpop.permute.xlu0 %1211
      %1213 = vrot.lane.b32.xlu0 %v668, 12
      %v1214 = vpop.permute.xlu0 %1213
      %1215 = vrot.lane.b32.xlu0 %v670, 12
      %v1216 = vpop.permute.xlu0 %1215
      %1217 = vrot.lane.b32.xlu0 %v673, 12
      %v1218 = vpop.permute.xlu0 %1217
      %1219 = vrot.lane.b32.xlu0 %v675, 12
      %v1220 = vpop.permute.xlu0 %1219
      %1221 = vrot.lane.b32.xlu0 %v678, 12
      %v1222 = vpop.permute.xlu0 %1221
      %1223 = vrot.lane.b32.xlu0 %v680, 12
      %v1224 = vpop.permute.xlu0 %1223
      %1225 = vrot.lane.b32.xlu0 %v683, 12
      %v1226 = vpop.permute.xlu0 %1225
      %1227 = vrot.lane.b32.xlu0 %v685, 12
      %v1228 = vpop.permute.xlu0 %1227
      %1229 = vrot.lane.b32.xlu0 %v688, 12
      %v1230 = vpop.permute.xlu0 %1229
      %1231 = vrot.lane.b32.xlu0 %v690, 12
      %v1232 = vpop.permute.xlu0 %1231
      %1233 = vrot.lane.b32.xlu0 %v693, 12
      %v1234 = vpop.permute.xlu0 %1233
      %1235 = vrot.lane.b32.xlu0 %v695, 12
      %v1236 = vpop.permute.xlu0 %1235
      %1237 = vrot.lane.b32.xlu0 %v698, 12
      %v1238 = vpop.permute.xlu0 %1237
      %1239 = vrot.lane.b32.xlu0 %v700, 12
      %v1240 = vpop.permute.xlu0 %1239
      %1241 = vrot.lane.b32.xlu0 %v703, 12
      %v1242 = vpop.permute.xlu0 %1241
      %1243 = vrot.lane.b32.xlu0 %v705, 12
      %v1244 = vpop.permute.xlu0 %1243
      %1245 = vrot.lane.b32.xlu0 %v708, 12
      %v1246 = vpop.permute.xlu0 %1245
      %1247 = vrot.lane.b32.xlu0 %v710, 12
      %v1248 = vpop.permute.xlu0 %1247
      %1249 = vrot.lane.b32.xlu0 %v713, 12
      %v1250 = vpop.permute.xlu0 %1249
      %1251 = vrot.lane.b32.xlu0 %v715, 12
      %v1252 = vpop.permute.xlu0 %1251
      %1253 = vrot.lane.b32.xlu0 %v718, 12
      %v1254 = vpop.permute.xlu0 %1253
      %1255 = vrot.lane.b32.xlu0 %v720, 12
      %v1256 = vpop.permute.xlu0 %1255
      %1257 = vrot.lane.b32.xlu0 %v1194, 12
      %v1258 = vpop.permute.xlu0 %1257
      %1259 = vrot.lane.b32.xlu0 %v1196, 12
      %v1260 = vpop.permute.xlu0 %1259
      %vm1293 = vcmask 121952
      %1294 = vst.msk [vmem:[#allocation3] sm:$0xff] %vm1293, %v1198
      %1295 = vst.msk [vmem:[#allocation3 + $0x8] sm:$0xff] %vm1293, %v1200
      %1296 = vst.msk [vmem:[#allocation3 + $0x10] sm:$0xff] %vm1293, %v1202
      %1297 = vst.msk [vmem:[#allocation3 + $0x18] sm:$0xff] %vm1293, %v1204
      %1298 = vst.msk [vmem:[#allocation3 + $0x20] sm:$0xff] %vm1293, %v1206
      %1299 = vst.msk [vmem:[#allocation3 + $0x28] sm:$0xff] %vm1293, %v1208
      %1300 = vst.msk [vmem:[#allocation3 + $0x30] sm:$0xff] %vm1293, %v1210
      %1301 = vst.msk [vmem:[#allocation3 + $0x38] sm:$0xff] %vm1293, %v1212
      %1302 = vst.msk [vmem:[#allocation3 + $0x40] sm:$0xff] %vm1293, %v1214
      %1303 = vst.msk [vmem:[#allocation3 + $0x48] sm:$0xff] %vm1293, %v1216
      %1304 = vst.msk [vmem:[#allocation3 + $0x50] sm:$0xff] %vm1293, %v1218
      %1305 = vst.msk [vmem:[#allocation3 + $0x58] sm:$0xff] %vm1293, %v1220
      %1306 = vst.msk [vmem:[#allocation3 + $0x60] sm:$0xff] %vm1293, %v1222
      %1307 = vst.msk [vmem:[#allocation3 + $0x68] sm:$0xff] %vm1293, %v1224
      %1308 = vst.msk [vmem:[#allocation3 + $0x70] sm:$0xff] %vm1293, %v1226
      %1309 = vst.msk [vmem:[#allocation3 + $0x78] sm:$0xff] %vm1293, %v1228
      %1310 = vst.msk [vmem:[#allocation3 + $0x80] sm:$0xff] %vm1293, %v1230
      %1311 = vst.msk [vmem:[#allocation3 + $0x88] sm:$0xff] %vm1293, %v1232
      %1312 = vst.msk [vmem:[#allocation3 + $0x90] sm:$0xff] %vm1293, %v1234
      %1313 = vst.msk [vmem:[#allocation3 + $0x98] sm:$0xff] %vm1293, %v1236
      %1314 = vst.msk [vmem:[#allocation3 + $0xa0] sm:$0xff] %vm1293, %v1238
      %1315 = vst.msk [vmem:[#allocation3 + $0xa8] sm:$0xff] %vm1293, %v1240
      %1316 = vst.msk [vmem:[#allocation3 + $0xb0] sm:$0xff] %vm1293, %v1242
      %1317 = vst.msk [vmem:[#allocation3 + $0xb8] sm:$0xff] %vm1293, %v1244
      %1318 = vst.msk [vmem:[#allocation3 + $0xc0] sm:$0xff] %vm1293, %v1246
      %1319 = vst.msk [vmem:[#allocation3 + $0xc8] sm:$0xff] %vm1293, %v1248
      %1320 = vst.msk [vmem:[#allocation3 + $0xd0] sm:$0xff] %vm1293, %v1250
      %1321 = vst.msk [vmem:[#allocation3 + $0xd8] sm:$0xff] %vm1293, %v1252
      %1322 = vst.msk [vmem:[#allocation3 + $0xe0] sm:$0xff] %vm1293, %v1254
      %1323 = vst.msk [vmem:[#allocation3 + $0xe8] sm:$0xff] %vm1293, %v1256
      %1324 = vst.msk [vmem:[#allocation3 + $0xf0] sm:$0xff] %vm1293, %v1258
      %1325 = vst.msk [vmem:[#allocation3 + $0xf8] sm:$0xff] %vm1293, %v1260
      %v1326 = vrot.slane %v554, 2
      %v1327 = vrot.slane %v555, 2
      %v1328 = vsel %vm850, %v1326, %v1327
      %v1329 = vrot.slane %v556, 2
      %v1330 = vsel %vm850, %v1327, %v1329
      %1331 = vrot.lane.b32.xlu0 %v858, 15
      %v1332 = vpop.permute.xlu0 %1331
      %1333 = vrot.lane.b32.xlu0 %v860, 15
      %v1334 = vpop.permute.xlu0 %1333
      %1335 = vrot.lane.b32.xlu0 %v863, 15
      %v1336 = vpop.permute.xlu0 %1335
      %1337 = vrot.lane.b32.xlu0 %v865, 15
      %v1338 = vpop.permute.xlu0 %1337
      %1339 = vrot.lane.b32.xlu0 %v868, 15
      %v1340 = vpop.permute.xlu0 %1339
      %1341 = vrot.lane.b32.xlu0 %v870, 15
      %v1342 = vpop.permute.xlu0 %1341
      %1343 = vrot.lane.b32.xlu0 %v873, 15
      %v1344 = vpop.permute.xlu0 %1343
      %1345 = vrot.lane.b32.xlu0 %v875, 15
      %v1346 = vpop.permute.xlu0 %1345
      %1347 = vrot.lane.b32.xlu0 %v878, 15
      %v1348 = vpop.permute.xlu0 %1347
      %1349 = vrot.lane.b32.xlu0 %v880, 15
      %v1350 = vpop.permute.xlu0 %1349
      %1351 = vrot.lane.b32.xlu0 %v883, 15
      %v1352 = vpop.permute.xlu0 %1351
      %1353 = vrot.lane.b32.xlu0 %v885, 15
      %v1354 = vpop.permute.xlu0 %1353
      %1355 = vrot.lane.b32.xlu0 %v888, 15
      %v1356 = vpop.permute.xlu0 %1355
      %1357 = vrot.lane.b32.xlu0 %v890, 15
      %v1358 = vpop.permute.xlu0 %1357
      %1359 = vrot.lane.b32.xlu0 %v893, 15
      %v1360 = vpop.permute.xlu0 %1359
      %1361 = vrot.lane.b32.xlu0 %v895, 15
      %v1362 = vpop.permute.xlu0 %1361
      %1363 = vrot.lane.b32.xlu0 %v898, 15
      %v1364 = vpop.permute.xlu0 %1363
      %1365 = vrot.lane.b32.xlu0 %v900, 15
      %v1366 = vpop.permute.xlu0 %1365
      %1367 = vrot.lane.b32.xlu0 %v903, 15
      %v1368 = vpop.permute.xlu0 %1367
      %1369 = vrot.lane.b32.xlu0 %v905, 15
      %v1370 = vpop.permute.xlu0 %1369
      %1371 = vrot.lane.b32.xlu0 %v908, 15
      %v1372 = vpop.permute.xlu0 %1371
      %1373 = vrot.lane.b32.xlu0 %v910, 15
      %v1374 = vpop.permute.xlu0 %1373
      %1375 = vrot.lane.b32.xlu0 %v913, 15
      %v1376 = vpop.permute.xlu0 %1375
      %1377 = vrot.lane.b32.xlu0 %v915, 15
      %v1378 = vpop.permute.xlu0 %1377
      %1379 = vrot.lane.b32.xlu0 %v918, 15
      %v1380 = vpop.permute.xlu0 %1379
      %1381 = vrot.lane.b32.xlu0 %v920, 15
      %v1382 = vpop.permute.xlu0 %1381
      %1383 = vrot.lane.b32.xlu0 %v923, 15
      %v1384 = vpop.permute.xlu0 %1383
      %1385 = vrot.lane.b32.xlu0 %v925, 15
      %v1386 = vpop.permute.xlu0 %1385
      %1387 = vrot.lane.b32.xlu0 %v928, 15
      %v1388 = vpop.permute.xlu0 %1387
      %1389 = vrot.lane.b32.xlu0 %v930, 15
      %v1390 = vpop.permute.xlu0 %1389
      %1391 = vrot.lane.b32.xlu0 %v1328, 15
      %v1392 = vpop.permute.xlu0 %1391
      %1393 = vrot.lane.b32.xlu0 %v1330, 15
      %v1394 = vpop.permute.xlu0 %1393
      %vm1427 = vcmask 146552
      %1428 = vst.msk [vmem:[#allocation3] sm:$0xff] %vm1427, %v1332
      %1429 = vst.msk [vmem:[#allocation3 + $0x8] sm:$0xff] %vm1427, %v1334
      %1430 = vst.msk [vmem:[#allocation3 + $0x10] sm:$0xff] %vm1427, %v1336
      %1431 = vst.msk [vmem:[#allocation3 + $0x18] sm:$0xff] %vm1427, %v1338
      %1432 = vst.msk [vmem:[#allocation3 + $0x20] sm:$0xff] %vm1427, %v1340
      %1433 = vst.msk [vmem:[#allocation3 + $0x28] sm:$0xff] %vm1427, %v1342
      %1434 = vst.msk [vmem:[#allocation3 + $0x30] sm:$0xff] %vm1427, %v1344
      %1435 = vst.msk [vmem:[#allocation3 + $0x38] sm:$0xff] %vm1427, %v1346
      %1436 = vst.msk [vmem:[#allocation3 + $0x40] sm:$0xff] %vm1427, %v1348
      %1437 = vst.msk [vmem:[#allocation3 + $0x48] sm:$0xff] %vm1427, %v1350
      %1438 = vst.msk [vmem:[#allocation3 + $0x50] sm:$0xff] %vm1427, %v1352
      %1439 = vst.msk [vmem:[#allocation3 + $0x58] sm:$0xff] %vm1427, %v1354
      %1440 = vst.msk [vmem:[#allocation3 + $0x60] sm:$0xff] %vm1427, %v1356
      %1441 = vst.msk [vmem:[#allocation3 + $0x68] sm:$0xff] %vm1427, %v1358
      %1442 = vst.msk [vmem:[#allocation3 + $0x70] sm:$0xff] %vm1427, %v1360
      %1443 = vst.msk [vmem:[#allocation3 + $0x78] sm:$0xff] %vm1427, %v1362
      %1444 = vst.msk [vmem:[#allocation3 + $0x80] sm:$0xff] %vm1427, %v1364
      %1445 = vst.msk [vmem:[#allocation3 + $0x88] sm:$0xff] %vm1427, %v1366
      %1446 = vst.msk [vmem:[#allocation3 + $0x90] sm:$0xff] %vm1427, %v1368
      %1447 = vst.msk [vmem:[#allocation3 + $0x98] sm:$0xff] %vm1427, %v1370
      %1448 = vst.msk [vmem:[#allocation3 + $0xa0] sm:$0xff] %vm1427, %v1372
      %1449 = vst.msk [vmem:[#allocation3 + $0xa8] sm:$0xff] %vm1427, %v1374
      %1450 = vst.msk [vmem:[#allocation3 + $0xb0] sm:$0xff] %vm1427, %v1376
      %1451 = vst.msk [vmem:[#allocation3 + $0xb8] sm:$0xff] %vm1427, %v1378
      %1452 = vst.msk [vmem:[#allocation3 + $0xc0] sm:$0xff] %vm1427, %v1380
      %1453 = vst.msk [vmem:[#allocation3 + $0xc8] sm:$0xff] %vm1427, %v1382
      %1454 = vst.msk [vmem:[#allocation3 + $0xd0] sm:$0xff] %vm1427, %v1384
      %1455 = vst.msk [vmem:[#allocation3 + $0xd8] sm:$0xff] %vm1427, %v1386
      %1456 = vst.msk [vmem:[#allocation3 + $0xe0] sm:$0xff] %vm1427, %v1388
      %1457 = vst.msk [vmem:[#allocation3 + $0xe8] sm:$0xff] %vm1427, %v1390
      %1458 = vst.msk [vmem:[#allocation3 + $0xf0] sm:$0xff] %vm1427, %v1392
      %1459 = vst.msk [vmem:[#allocation3 + $0xf8] sm:$0xff] %vm1427, %v1394
      %1462 = vrot.lane.b32.xlu0 %v512, 18
      %v1463 = vpop.permute.xlu0 %1462
      %1464 = vrot.lane.b32.xlu0 %v513, 18
      %v1465 = vpop.permute.xlu0 %1464
      %1466 = vrot.lane.b32.xlu0 %v515, 18
      %v1467 = vpop.permute.xlu0 %1466
      %1468 = vrot.lane.b32.xlu0 %v516, 18
      %v1469 = vpop.permute.xlu0 %1468
      %1470 = vrot.lane.b32.xlu0 %v518, 18
      %v1471 = vpop.permute.xlu0 %1470
      %1472 = vrot.lane.b32.xlu0 %v519, 18
      %v1473 = vpop.permute.xlu0 %1472
      %1474 = vrot.lane.b32.xlu0 %v521, 18
      %v1475 = vpop.permute.xlu0 %1474
      %1476 = vrot.lane.b32.xlu0 %v522, 18
      %v1477 = vpop.permute.xlu0 %1476
      %1478 = vrot.lane.b32.xlu0 %v524, 18
      %v1479 = vpop.permute.xlu0 %1478
      %1480 = vrot.lane.b32.xlu0 %v525, 18
      %v1481 = vpop.permute.xlu0 %1480
      %1482 = vrot.lane.b32.xlu0 %v527, 18
      %v1483 = vpop.permute.xlu0 %1482
      %1484 = vrot.lane.b32.xlu0 %v528, 18
      %v1485 = vpop.permute.xlu0 %1484
      %1486 = vrot.lane.b32.xlu0 %v530, 18
      %v1487 = vpop.permute.xlu0 %1486
      %1488 = vrot.lane.b32.xlu0 %v531, 18
      %v1489 = vpop.permute.xlu0 %1488
      %1490 = vrot.lane.b32.xlu0 %v533, 18
      %v1491 = vpop.permute.xlu0 %1490
      %1492 = vrot.lane.b32.xlu0 %v534, 18
      %v1493 = vpop.permute.xlu0 %1492
      %1494 = vrot.lane.b32.xlu0 %v536, 18
      %v1495 = vpop.permute.xlu0 %1494
      %1496 = vrot.lane.b32.xlu0 %v537, 18
      %v1497 = vpop.permute.xlu0 %1496
      %1498 = vrot.lane.b32.xlu0 %v539, 18
      %v1499 = vpop.permute.xlu0 %1498
      %1500 = vrot.lane.b32.xlu0 %v540, 18
      %v1501 = vpop.permute.xlu0 %1500
      %1502 = vrot.lane.b32.xlu0 %v542, 18
      %v1503 = vpop.permute.xlu0 %1502
      %1504 = vrot.lane.b32.xlu0 %v543, 18
      %v1505 = vpop.permute.xlu0 %1504
      %1506 = vrot.lane.b32.xlu0 %v545, 18
      %v1507 = vpop.permute.xlu0 %1506
      %1508 = vrot.lane.b32.xlu0 %v546, 18
      %v1509 = vpop.permute.xlu0 %1508
      %1510 = vrot.lane.b32.xlu0 %v548, 18
      %v1511 = vpop.permute.xlu0 %1510
      %1512 = vrot.lane.b32.xlu0 %v549, 18
      %v1513 = vpop.permute.xlu0 %1512
      %1514 = vrot.lane.b32.xlu0 %v551, 18
      %v1515 = vpop.permute.xlu0 %1514
      %1516 = vrot.lane.b32.xlu0 %v552, 18
      %v1517 = vpop.permute.xlu0 %1516
      %1518 = vrot.lane.b32.xlu0 %v554, 18
      %v1519 = vpop.permute.xlu0 %1518
      %1520 = vrot.lane.b32.xlu0 %v555, 18
      %v1521 = vpop.permute.xlu0 %1520
      %1522 = vrot.lane.b32.xlu0 %v557, 18
      %v1523 = vpop.permute.xlu0 %1522
      %1524 = vrot.lane.b32.xlu0 %v558, 18
      %v1525 = vpop.permute.xlu0 %1524
      %vm1558 = vcmask 171152
      %1559 = vst.msk [vmem:[#allocation3] sm:$0xff] %vm1558, %v1463
      %1560 = vst.msk [vmem:[#allocation3 + $0x8] sm:$0xff] %vm1558, %v1465
      %1561 = vst.msk [vmem:[#allocation3 + $0x10] sm:$0xff] %vm1558, %v1467
      %1562 = vst.msk [vmem:[#allocation3 + $0x18] sm:$0xff] %vm1558, %v1469
      %1563 = vst.msk [vmem:[#allocation3 + $0x20] sm:$0xff] %vm1558, %v1471
      %1564 = vst.msk [vmem:[#allocation3 + $0x28] sm:$0xff] %vm1558, %v1473
      %1565 = vst.msk [vmem:[#allocation3 + $0x30] sm:$0xff] %vm1558, %v1475
      %1566 = vst.msk [vmem:[#allocation3 + $0x38] sm:$0xff] %vm1558, %v1477
      %1567 = vst.msk [vmem:[#allocation3 + $0x40] sm:$0xff] %vm1558, %v1479
      %1568 = vst.msk [vmem:[#allocation3 + $0x48] sm:$0xff] %vm1558, %v1481
      %1569 = vst.msk [vmem:[#allocation3 + $0x50] sm:$0xff] %vm1558, %v1483
      %1570 = vst.msk [vmem:[#allocation3 + $0x58] sm:$0xff] %vm1558, %v1485
      %1571 = vst.msk [vmem:[#allocation3 + $0x60] sm:$0xff] %vm1558, %v1487
      %1572 = vst.msk [vmem:[#allocation3 + $0x68] sm:$0xff] %vm1558, %v1489
      %1573 = vst.msk [vmem:[#allocation3 + $0x70] sm:$0xff] %vm1558, %v1491
      %1574 = vst.msk [vmem:[#allocation3 + $0x78] sm:$0xff] %vm1558, %v1493
      %1575 = vst.msk [vmem:[#allocation3 + $0x80] sm:$0xff] %vm1558, %v1495
      %1576 = vst.msk [vmem:[#allocation3 + $0x88] sm:$0xff] %vm1558, %v1497
      %1577 = vst.msk [vmem:[#allocation3 + $0x90] sm:$0xff] %vm1558, %v1499
      %1578 = vst.msk [vmem:[#allocation3 + $0x98] sm:$0xff] %vm1558, %v1501
      %1579 = vst.msk [vmem:[#allocation3 + $0xa0] sm:$0xff] %vm1558, %v1503
      %1580 = vst.msk [vmem:[#allocation3 + $0xa8] sm:$0xff] %vm1558, %v1505
      %1581 = vst.msk [vmem:[#allocation3 + $0xb0] sm:$0xff] %vm1558, %v1507
      %1582 = vst.msk [vmem:[#allocation3 + $0xb8] sm:$0xff] %vm1558, %v1509
      %1583 = vst.msk [vmem:[#allocation3 + $0xc0] sm:$0xff] %vm1558, %v1511
      %1584 = vst.msk [vmem:[#allocation3 + $0xc8] sm:$0xff] %vm1558, %v1513
      %1585 = vst.msk [vmem:[#allocation3 + $0xd0] sm:$0xff] %vm1558, %v1515
      %1586 = vst.msk [vmem:[#allocation3 + $0xd8] sm:$0xff] %vm1558, %v1517
      %1587 = vst.msk [vmem:[#allocation3 + $0xe0] sm:$0xff] %vm1558, %v1519
      %1588 = vst.msk [vmem:[#allocation3 + $0xe8] sm:$0xff] %vm1558, %v1521
      %1589 = vst.msk [vmem:[#allocation3 + $0xf0] sm:$0xff] %vm1558, %v1523
      %1590 = vst.msk [vmem:[#allocation3 + $0xf8] sm:$0xff] %vm1558, %v1525
      %v1592 = vrot.slane %v557, 1
      %v1593 = vrot.slane %v558, 1
      %v1594 = vsel %vm640, %v1592, %v1593
      %v1595 = vrot.slane %v559, 1
      %v1596 = vsel %vm640, %v1593, %v1595
      %1597 = vrot.lane.b32.xlu0 %v653, 21
      %v1598 = vpop.permute.xlu0 %1597
      %1599 = vrot.lane.b32.xlu0 %v655, 21
      %v1600 = vpop.permute.xlu0 %1599
      %1601 = vrot.lane.b32.xlu0 %v658, 21
      %v1602 = vpop.permute.xlu0 %1601
      %1603 = vrot.lane.b32.xlu0 %v660, 21
      %v1604 = vpop.permute.xlu0 %1603
      %1605 = vrot.lane.b32.xlu0 %v663, 21
      %v1606 = vpop.permute.xlu0 %1605
      %1607 = vrot.lane.b32.xlu0 %v665, 21
      %v1608 = vpop.permute.xlu0 %1607
      %1609 = vrot.lane.b32.xlu0 %v668, 21
      %v1610 = vpop.permute.xlu0 %1609
      %1611 = vrot.lane.b32.xlu0 %v670, 21
      %v1612 = vpop.permute.xlu0 %1611
      %1613 = vrot.lane.b32.xlu0 %v673, 21
      %v1614 = vpop.permute.xlu0 %1613
      %1615 = vrot.lane.b32.xlu0 %v675, 21
      %v1616 = vpop.permute.xlu0 %1615
      %1617 = vrot.lane.b32.xlu0 %v678, 21
      %v1618 = vpop.permute.xlu0 %1617
      %1619 = vrot.lane.b32.xlu0 %v680, 21
      %v1620 = vpop.permute.xlu0 %1619
      %1621 = vrot.lane.b32.xlu0 %v683, 21
      %v1622 = vpop.permute.xlu0 %1621
      %1623 = vrot.lane.b32.xlu0 %v685, 21
      %v1624 = vpop.permute.xlu0 %1623
      %1625 = vrot.lane.b32.xlu0 %v688, 21
      %v1626 = vpop.permute.xlu0 %1625
      %1627 = vrot.lane.b32.xlu0 %v690, 21
      %v1628 = vpop.permute.xlu0 %1627
      %1629 = vrot.lane.b32.xlu0 %v693, 21
      %v1630 = vpop.permute.xlu0 %1629
      %1631 = vrot.lane.b32.xlu0 %v695, 21
      %v1632 = vpop.permute.xlu0 %1631
      %1633 = vrot.lane.b32.xlu0 %v698, 21
      %v1634 = vpop.permute.xlu0 %1633
      %1635 = vrot.lane.b32.xlu0 %v700, 21
      %v1636 = vpop.permute.xlu0 %1635
      %1637 = vrot.lane.b32.xlu0 %v703, 21
      %v1638 = vpop.permute.xlu0 %1637
      %1639 = vrot.lane.b32.xlu0 %v705, 21
      %v1640 = vpop.permute.xlu0 %1639
      %1641 = vrot.lane.b32.xlu0 %v708, 21
      %v1642 = vpop.permute.xlu0 %1641
      %1643 = vrot.lane.b32.xlu0 %v710, 21
      %v1644 = vpop.permute.xlu0 %1643
      %1645 = vrot.lane.b32.xlu0 %v713, 21
      %v1646 = vpop.permute.xlu0 %1645
      %1647 = vrot.lane.b32.xlu0 %v715, 21
      %v1648 = vpop.permute.xlu0 %1647
      %1649 = vrot.lane.b32.xlu0 %v718, 21
      %v1650 = vpop.permute.xlu0 %1649
      %1651 = vrot.lane.b32.xlu0 %v720, 21
      %v1652 = vpop.permute.xlu0 %1651
      %1653 = vrot.lane.b32.xlu0 %v1194, 21
      %v1654 = vpop.permute.xlu0 %1653
      %1655 = vrot.lane.b32.xlu0 %v1196, 21
      %v1656 = vpop.permute.xlu0 %1655
      %1657 = vrot.lane.b32.xlu0 %v1594, 21
      %v1658 = vpop.permute.xlu0 %1657
      %1659 = vrot.lane.b32.xlu0 %v1596, 21
      %v1660 = vpop.permute.xlu0 %1659
      %vm1693 = vcmask 195752
      %1694 = vst.msk [vmem:[#allocation3] sm:$0xff] %vm1693, %v1598
      %1695 = vst.msk [vmem:[#allocation3 + $0x8] sm:$0xff] %vm1693, %v1600
      %1696 = vst.msk [vmem:[#allocation3 + $0x10] sm:$0xff] %vm1693, %v1602
      %1697 = vst.msk [vmem:[#allocation3 + $0x18] sm:$0xff] %vm1693, %v1604
      %1698 = vst.msk [vmem:[#allocation3 + $0x20] sm:$0xff] %vm1693, %v1606
      %1699 = vst.msk [vmem:[#allocation3 + $0x28] sm:$0xff] %vm1693, %v1608
      %1700 = vst.msk [vmem:[#allocation3 + $0x30] sm:$0xff] %vm1693, %v1610
      %1701 = vst.msk [vmem:[#allocation3 + $0x38] sm:$0xff] %vm1693, %v1612
      %1702 = vst.msk [vmem:[#allocation3 + $0x40] sm:$0xff] %vm1693, %v1614
      %1703 = vst.msk [vmem:[#allocation3 + $0x48] sm:$0xff] %vm1693, %v1616
      %1704 = vst.msk [vmem:[#allocation3 + $0x50] sm:$0xff] %vm1693, %v1618
      %1705 = vst.msk [vmem:[#allocation3 + $0x58] sm:$0xff] %vm1693, %v1620
      %1706 = vst.msk [vmem:[#allocation3 + $0x60] sm:$0xff] %vm1693, %v1622
      %1707 = vst.msk [vmem:[#allocation3 + $0x68] sm:$0xff] %vm1693, %v1624
      %1708 = vst.msk [vmem:[#allocation3 + $0x70] sm:$0xff] %vm1693, %v1626
      %1709 = vst.msk [vmem:[#allocation3 + $0x78] sm:$0xff] %vm1693, %v1628
      %1710 = vst.msk [vmem:[#allocation3 + $0x80] sm:$0xff] %vm1693, %v1630
      %1711 = vst.msk [vmem:[#allocation3 + $0x88] sm:$0xff] %vm1693, %v1632
      %1712 = vst.msk [vmem:[#allocation3 + $0x90] sm:$0xff] %vm1693, %v1634
      %1713 = vst.msk [vmem:[#allocation3 + $0x98] sm:$0xff] %vm1693, %v1636
      %1714 = vst.msk [vmem:[#allocation3 + $0xa0] sm:$0xff] %vm1693, %v1638
      %1715 = vst.msk [vmem:[#allocation3 + $0xa8] sm:$0xff] %vm1693, %v1640
      %1716 = vst.msk [vmem:[#allocation3 + $0xb0] sm:$0xff] %vm1693, %v1642
      %1717 = vst.msk [vmem:[#allocation3 + $0xb8] sm:$0xff] %vm1693, %v1644
      %1718 = vst.msk [vmem:[#allocation3 + $0xc0] sm:$0xff] %vm1693, %v1646
      %1719 = vst.msk [vmem:[#allocation3 + $0xc8] sm:$0xff] %vm1693, %v1648
      %1720 = vst.msk [vmem:[#allocation3 + $0xd0] sm:$0xff] %vm1693, %v1650
      %1721 = vst.msk [vmem:[#allocation3 + $0xd8] sm:$0xff] %vm1693, %v1652
      %1722 = vst.msk [vmem:[#allocation3 + $0xe0] sm:$0xff] %vm1693, %v1654
      %1723 = vst.msk [vmem:[#allocation3 + $0xe8] sm:$0xff] %vm1693, %v1656
      %1724 = vst.msk [vmem:[#allocation3 + $0xf0] sm:$0xff] %vm1693, %v1658
      %1725 = vst.msk [vmem:[#allocation3 + $0xf8] sm:$0xff] %vm1693, %v1660
      %v1726 = vrot.slane %v557, 2
      %v1727 = vrot.slane %v558, 2
      %v1728 = vsel %vm850, %v1726, %v1727
      %v1729 = vrot.slane %v559, 2
      %v1730 = vsel %vm850, %v1727, %v1729
      %1731 = vrot.lane.b32.xlu0 %v863, 24
      %v1732 = vpop.permute.xlu0 %1731
      %1733 = vrot.lane.b32.xlu0 %v865, 24
      %v1734 = vpop.permute.xlu0 %1733
      %1735 = vrot.lane.b32.xlu0 %v868, 24
      %v1736 = vpop.permute.xlu0 %1735
      %1737 = vrot.lane.b32.xlu0 %v870, 24
      %v1738 = vpop.permute.xlu0 %1737
      %1739 = vrot.lane.b32.xlu0 %v873, 24
      %v1740 = vpop.permute.xlu0 %1739
      %1741 = vrot.lane.b32.xlu0 %v875, 24
      %v1742 = vpop.permute.xlu0 %1741
      %1743 = vrot.lane.b32.xlu0 %v878, 24
      %v1744 = vpop.permute.xlu0 %1743
      %1745 = vrot.lane.b32.xlu0 %v880, 24
      %v1746 = vpop.permute.xlu0 %1745
      %1747 = vrot.lane.b32.xlu0 %v883, 24
      %v1748 = vpop.permute.xlu0 %1747
      %1749 = vrot.lane.b32.xlu0 %v885, 24
      %v1750 = vpop.permute.xlu0 %1749
      %1751 = vrot.lane.b32.xlu0 %v888, 24
      %v1752 = vpop.permute.xlu0 %1751
      %1753 = vrot.lane.b32.xlu0 %v890, 24
      %v1754 = vpop.permute.xlu0 %1753
      %1755 = vrot.lane.b32.xlu0 %v893, 24
      %v1756 = vpop.permute.xlu0 %1755
      %1757 = vrot.lane.b32.xlu0 %v895, 24
      %v1758 = vpop.permute.xlu0 %1757
      %1759 = vrot.lane.b32.xlu0 %v898, 24
      %v1760 = vpop.permute.xlu0 %1759
      %1761 = vrot.lane.b32.xlu0 %v900, 24
      %v1762 = vpop.permute.xlu0 %1761
      %1763 = vrot.lane.b32.xlu0 %v903, 24
      %v1764 = vpop.permute.xlu0 %1763
      %1765 = vrot.lane.b32.xlu0 %v905, 24
      %v1766 = vpop.permute.xlu0 %1765
      %1767 = vrot.lane.b32.xlu0 %v908, 24
      %v1768 = vpop.permute.xlu0 %1767
      %1769 = vrot.lane.b32.xlu0 %v910, 24
      %v1770 = vpop.permute.xlu0 %1769
      %1771 = vrot.lane.b32.xlu0 %v913, 24
      %v1772 = vpop.permute.xlu0 %1771
      %1773 = vrot.lane.b32.xlu0 %v915, 24
      %v1774 = vpop.permute.xlu0 %1773
      %1775 = vrot.lane.b32.xlu0 %v918, 24
      %v1776 = vpop.permute.xlu0 %1775
      %1777 = vrot.lane.b32.xlu0 %v920, 24
      %v1778 = vpop.permute.xlu0 %1777
      %1779 = vrot.lane.b32.xlu0 %v923, 24
      %v1780 = vpop.permute.xlu0 %1779
      %1781 = vrot.lane.b32.xlu0 %v925, 24
      %v1782 = vpop.permute.xlu0 %1781
      %1783 = vrot.lane.b32.xlu0 %v928, 24
      %v1784 = vpop.permute.xlu0 %1783
      %1785 = vrot.lane.b32.xlu0 %v930, 24
      %v1786 = vpop.permute.xlu0 %1785
      %1787 = vrot.lane.b32.xlu0 %v1328, 24
      %v1788 = vpop.permute.xlu0 %1787
      %1789 = vrot.lane.b32.xlu0 %v1330, 24
      %v1790 = vpop.permute.xlu0 %1789
      %1791 = vrot.lane.b32.xlu0 %v1728, 24
      %v1792 = vpop.permute.xlu0 %1791
      %1793 = vrot.lane.b32.xlu0 %v1730, 24
      %v1794 = vpop.permute.xlu0 %1793
      %vm1827 = vcmask 220352
      %1828 = vst.msk [vmem:[#allocation3] sm:$0xff] %vm1827, %v1732
      %1829 = vst.msk [vmem:[#allocation3 + $0x8] sm:$0xff] %vm1827, %v1734
      %1830 = vst.msk [vmem:[#allocation3 + $0x10] sm:$0xff] %vm1827, %v1736
      %1831 = vst.msk [vmem:[#allocation3 + $0x18] sm:$0xff] %vm1827, %v1738
      %1832 = vst.msk [vmem:[#allocation3 + $0x20] sm:$0xff] %vm1827, %v1740
      %1833 = vst.msk [vmem:[#allocation3 + $0x28] sm:$0xff] %vm1827, %v1742
      %1834 = vst.msk [vmem:[#allocation3 + $0x30] sm:$0xff] %vm1827, %v1744
      %1835 = vst.msk [vmem:[#allocation3 + $0x38] sm:$0xff] %vm1827, %v1746
      %1836 = vst.msk [vmem:[#allocation3 + $0x40] sm:$0xff] %vm1827, %v1748
      %1837 = vst.msk [vmem:[#allocation3 + $0x48] sm:$0xff] %vm1827, %v1750
      %1838 = vst.msk [vmem:[#allocation3 + $0x50] sm:$0xff] %vm1827, %v1752
      %1839 = vst.msk [vmem:[#allocation3 + $0x58] sm:$0xff] %vm1827, %v1754
      %1840 = vst.msk [vmem:[#allocation3 + $0x60] sm:$0xff] %vm1827, %v1756
      %1841 = vst.msk [vmem:[#allocation3 + $0x68] sm:$0xff] %vm1827, %v1758
      %1842 = vst.msk [vmem:[#allocation3 + $0x70] sm:$0xff] %vm1827, %v1760
      %1843 = vst.msk [vmem:[#allocation3 + $0x78] sm:$0xff] %vm1827, %v1762
      %1844 = vst.msk [vmem:[#allocation3 + $0x80] sm:$0xff] %vm1827, %v1764
      %1845 = vst.msk [vmem:[#allocation3 + $0x88] sm:$0xff] %vm1827, %v1766
      %1846 = vst.msk [vmem:[#allocation3 + $0x90] sm:$0xff] %vm1827, %v1768
      %1847 = vst.msk [vmem:[#allocation3 + $0x98] sm:$0xff] %vm1827, %v1770
      %1848 = vst.msk [vmem:[#allocation3 + $0xa0] sm:$0xff] %vm1827, %v1772
      %1849 = vst.msk [vmem:[#allocation3 + $0xa8] sm:$0xff] %vm1827, %v1774
      %1850 = vst.msk [vmem:[#allocation3 + $0xb0] sm:$0xff] %vm1827, %v1776
      %1851 = vst.msk [vmem:[#allocation3 + $0xb8] sm:$0xff] %vm1827, %v1778
      %1852 = vst.msk [vmem:[#allocation3 + $0xc0] sm:$0xff] %vm1827, %v1780
      %1853 = vst.msk [vmem:[#allocation3 + $0xc8] sm:$0xff] %vm1827, %v1782
      %1854 = vst.msk [vmem:[#allocation3 + $0xd0] sm:$0xff] %vm1827, %v1784
      %1855 = vst.msk [vmem:[#allocation3 + $0xd8] sm:$0xff] %vm1827, %v1786
      %1856 = vst.msk [vmem:[#allocation3 + $0xe0] sm:$0xff] %vm1827, %v1788
      %1857 = vst.msk [vmem:[#allocation3 + $0xe8] sm:$0xff] %vm1827, %v1790
      %1858 = vst.msk [vmem:[#allocation3 + $0xf0] sm:$0xff] %vm1827, %v1792
      %1859 = vst.msk [vmem:[#allocation3 + $0xf8] sm:$0xff] %vm1827, %v1794
      %v1860 = vld [vmem:[#allocation3] sm:$0xff]
      %v1861 = vld [vmem:[#allocation3 + $0x8] sm:$0xff]
      %v1862 = vld [vmem:[#allocation3 + $0x10] sm:$0xff]
      %v1863 = vld [vmem:[#allocation3 + $0x18] sm:$0xff]
      %v1864 = vld [vmem:[#allocation3 + $0x20] sm:$0xff]
      %v1865 = vld [vmem:[#allocation3 + $0x28] sm:$0xff]
      %v1866 = vld [vmem:[#allocation3 + $0x30] sm:$0xff]
      %v1867 = vld [vmem:[#allocation3 + $0x38] sm:$0xff]
      %v1868 = vld [vmem:[#allocation3 + $0x40] sm:$0xff]
      %v1869 = vld [vmem:[#allocation3 + $0x48] sm:$0xff]
      %v1870 = vld [vmem:[#allocation3 + $0x50] sm:$0xff]
      %v1871 = vld [vmem:[#allocation3 + $0x58] sm:$0xff]
      %v1872 = vld [vmem:[#allocation3 + $0x60] sm:$0xff]
      %v1873 = vld [vmem:[#allocation3 + $0x68] sm:$0xff]
      %v1874 = vld [vmem:[#allocation3 + $0x70] sm:$0xff]
      %v1875 = vld [vmem:[#allocation3 + $0x78] sm:$0xff]
      %v1876 = vld [vmem:[#allocation3 + $0x80] sm:$0xff]
      %v1877 = vld [vmem:[#allocation3 + $0x88] sm:$0xff]
      %v1878 = vld [vmem:[#allocation3 + $0x90] sm:$0xff]
      %v1879 = vld [vmem:[#allocation3 + $0x98] sm:$0xff]
      %v1880 = vld [vmem:[#allocation3 + $0xa0] sm:$0xff]
      %v1881 = vld [vmem:[#allocation3 + $0xa8] sm:$0xff]
      %v1882 = vld [vmem:[#allocation3 + $0xb0] sm:$0xff]
      %v1883 = vld [vmem:[#allocation3 + $0xb8] sm:$0xff]
      %v1884 = vld [vmem:[#allocation3 + $0xc0] sm:$0xff]
      %v1885 = vld [vmem:[#allocation3 + $0xc8] sm:$0xff]
      %v1886 = vld [vmem:[#allocation3 + $0xd0] sm:$0xff]
      %v1887 = vld [vmem:[#allocation3 + $0xd8] sm:$0xff]
      %v1888 = vld [vmem:[#allocation3 + $0xe0] sm:$0xff]
      %v1889 = vld [vmem:[#allocation3 + $0xe8] sm:$0xff]
      %v1890 = vld [vmem:[#allocation3 + $0xf0] sm:$0xff]
      %v1891 = vld [vmem:[#allocation3 + $0xf8] sm:$0xff]
      %v1892 = vld [vmem:[%s1] sm:$0xff]
      %v1893 = vld [vmem:[%s1 + $0x8] sm:$0xff]
      %v1894 = vld [vmem:[%s1 + $0x10] sm:$0xff]
      %v1895 = vld [vmem:[%s1 + $0x18] sm:$0x7]
      %vm1896 = vcmask 220160
      %v1898 = vsel %vm1896, %v1860, 0
      %v1901 = vsel %vm1896, %v1861, 0
      %v1904 = vsel %vm1896, %v1862, 0
      %v1907 = vsel %vm1896, %v1863, 0
      %v1910 = vsel %vm1896, %v1864, 0
      %v1913 = vsel %vm1896, %v1865, 0
      %v1916 = vsel %vm1896, %v1866, 0
      %v1919 = vsel %vm1896, %v1867, 0
      %v1922 = vsel %vm1896, %v1868, 0
      %v1925 = vsel %vm1896, %v1869, 0
      %v1928 = vsel %vm1896, %v1870, 0
      %v1931 = vsel %vm1896, %v1871, 0
      %v1934 = vsel %vm1896, %v1872, 0
      %v1937 = vsel %vm1896, %v1873, 0
      %v1940 = vsel %vm1896, %v1874, 0
      %v1943 = vsel %vm1896, %v1875, 0
      %v1946 = vsel %vm1896, %v1876, 0
      %v1949 = vsel %vm1896, %v1877, 0
      %v1952 = vsel %vm1896, %v1878, 0
      %v1955 = vsel %vm1896, %v1879, 0
      %v1958 = vsel %vm1896, %v1880, 0
      %v1961 = vsel %vm1896, %v1881, 0
      %v1964 = vsel %vm1896, %v1882, 0
      %v1967 = vsel %vm1896, %v1883, 0
      %v1970 = vsel %vm1896, %v1884, 0
      %v1973 = vsel %vm1896, %v1885, 0
      %v1976 = vsel %vm1896, %v1886, 0
      %v1979 = vsel %vm1896, %v1887, 0
      %v1982 = vsel %vm1896, %v1888, 0
      %v1985 = vsel %vm1896, %v1889, 0
      %v1988 = vsel %vm1896, %v1890, 0
      %v1991 = vsel %vm1896, %v1891, 0
      %vm1993 = vcmask 1042432
      %v1995 = vsel %vm1993, %v1895, 0
      %1997 = vmatprep.subr.mxu0 0.0
      %1998 = vmatpush1.msra.mxu0 0.0
      %1999 = vmatprep.subr.mxu0 0.0
      %2000 = vmatpush1.msra.mxu0 0.0
      %2001 = vmatprep.subr.mxu0 0.0
      %2002 = vmatpush1.msra.mxu0 0.0
      %2003 = vmatprep.subr.mxu0 0.0
      %2004 = vmatpush1.msra.mxu0 0.0
      %2005 = vmatprep.subr.mxu0 0.0
      %2006 = vmatpush1.msra.mxu0 0.0
      %2007 = vmatprep.subr.mxu0 0.0
      %2008 = vmatpush1.msra.mxu0 0.0
      %2009 = vmatprep.subr.mxu0 0.0
      %2010 = vmatpush1.msra.mxu0 0.0
      %2011 = vmatprep.subr.mxu0 0.0
      %2012 = vmatpush1.msra.mxu0 0.0
      %2013 = vmatprep.subr.mxu0 0.0
      %2014 = vmatpush1.msra.mxu0 0.0
      %2015 = vmatprep.subr.mxu0 0.0
      %2016 = vmatpush1.msra.mxu0 0.0
      %2017 = vmatprep.subr.mxu0 0.0
      %2018 = vmatpush1.msra.mxu0 0.0
      %2019 = vmatprep.subr.mxu0 0.0
      %2020 = vmatpush1.msra.mxu0 0.0
      %2021 = vmatprep.subr.mxu0 0.0
      %2022 = vmatpush1.msra.mxu0 %v1995
      %2023 = vmatprep.subr.mxu0 0.0
      %2024 = vmatpush1.msra.mxu0 %v1894
      %2025 = vmatprep.subr.mxu0 0.0
      %2026 = vmatpush1.msra.mxu0 %v1893
      %2027 = vmatprep.subr.mxu0 0.0
      %2028 = vmatpush1.msra.mxu0 %v1892
      %2029 = vmatprep.subr.mxu0 0.0
      %2030 = vmatpush2.msra.mxu0 0.0
      %2031 = vmatprep.subr.mxu0 0.0
      %2032 = vmatpush2.msra.mxu0 0.0
      %2033 = vmatprep.subr.mxu0 0.0
      %2034 = vmatpush2.msra.mxu0 0.0
      %2035 = vmatprep.subr.mxu0 0.0
      %2036 = vmatpush2.msra.mxu0 0.0
      %2037 = vmatprep.subr.mxu0 0.0
      %2038 = vmatpush2.msra.mxu0 0.0
      %2039 = vmatprep.subr.mxu0 0.0
      %2040 = vmatpush2.msra.mxu0 0.0
      %2041 = vmatprep.subr.mxu0 0.0
      %2042 = vmatpush2.msra.mxu0 0.0
      %2043 = vmatprep.subr.mxu0 0.0
      %2044 = vmatpush2.msra.mxu0 0.0
      %2045 = vmatprep.subr.mxu0 0.0
      %2046 = vmatpush2.msra.mxu0 0.0
      %2047 = vmatprep.subr.mxu0 0.0
      %2048 = vmatpush2.msra.mxu0 0.0
      %2049 = vmatprep.subr.mxu0 0.0
      %2050 = vmatpush2.msra.mxu0 0.0
      %2051 = vmatprep.subr.mxu0 0.0
      %2052 = vmatpush2.msra.mxu0 0.0
      %2053 = vmatprep.subr.mxu0 0.0
      %2054 = vmatpush2.msra.mxu0 0.0
      %2055 = vmatprep.subr.mxu0 0.0
      %2056 = vmatpush2.msra.mxu0 0.0
      %2057 = vmatprep.subr.mxu0 0.0
      %2058 = vmatpush2.msra.mxu0 0.0
      %2059 = vmatprep.subr.mxu0 0.0
      %2060 = vmatpush2.msra.mxu0 0.0
      %2061 = vmatprep.mubr.f32.mxu0 0.0
      %2062 = vmatmul.mubr.f32.gmra.mxu0 %v1898
      %v2063 = vpop.f32.mrf.mxu0
      %v2064 = vadd.f32 0.0, %v2063
      %v2065 = vpop.f32.mrf.mxu0
      %2066 = vmatprep.mubr.f32.mxu0 0.0
      %2067 = vmatmul.mubr.f32.gmra.mxu0 %v1901
      %v2068 = vpop.f32.mrf.mxu0
      %v2069 = vadd.f32 0.0, %v2068
      %v2070 = vpop.f32.mrf.mxu0
      %2071 = vmatprep.mubr.f32.mxu0 0.0
      %2072 = vmatmul.mubr.f32.gmra.mxu0 %v1904
      %v2073 = vpop.f32.mrf.mxu0
      %v2074 = vadd.f32 0.0, %v2073
      %v2075 = vpop.f32.mrf.mxu0
      %2076 = vmatprep.mubr.f32.mxu0 0.0
      %2077 = vmatmul.mubr.f32.gmra.mxu0 %v1907
      %v2078 = vpop.f32.mrf.mxu0
      %v2079 = vadd.f32 0.0, %v2078
      %v2080 = vpop.f32.mrf.mxu0
      %2081 = vmatprep.mubr.f32.mxu0 0.0
      %2082 = vmatmul.mubr.f32.gmra.mxu0 %v1910
      %v2083 = vpop.f32.mrf.mxu0
      %v2084 = vadd.f32 0.0, %v2083
      %v2085 = vpop.f32.mrf.mxu0
      %2086 = vmatprep.mubr.f32.mxu0 0.0
      %2087 = vmatmul.mubr.f32.gmra.mxu0 %v1913
      %v2088 = vpop.f32.mrf.mxu0
      %v2089 = vadd.f32 0.0, %v2088
      %v2090 = vpop.f32.mrf.mxu0
      %2091 = vmatprep.mubr.f32.mxu0 0.0
      %2092 = vmatmul.mubr.f32.gmra.mxu0 %v1916
      %v2093 = vpop.f32.mrf.mxu0
      %v2094 = vadd.f32 0.0, %v2093
      %v2095 = vpop.f32.mrf.mxu0
      %2096 = vmatprep.mubr.f32.mxu0 0.0
      %2097 = vmatmul.mubr.f32.gmra.mxu0 %v1919
      %v2098 = vpop.f32.mrf.mxu0
      %v2099 = vadd.f32 0.0, %v2098
      %v2100 = vpop.f32.mrf.mxu0
      %2101 = vmatprep.mubr.f32.mxu0 0.0
      %2102 = vmatmul.mubr.f32.gmra.mxu0 %v1922
      %v2103 = vpop.f32.mrf.mxu0
      %v2104 = vadd.f32 0.0, %v2103
      %v2105 = vpop.f32.mrf.mxu0
      %2106 = vmatprep.mubr.f32.mxu0 0.0
      %2107 = vmatmul.mubr.f32.gmra.mxu0 %v1925
      %v2108 = vpop.f32.mrf.mxu0
      %v2109 = vadd.f32 0.0, %v2108
      %v2110 = vpop.f32.mrf.mxu0
      %2111 = vmatprep.mubr.f32.mxu0 0.0
      %2112 = vmatmul.mubr.f32.gmra.mxu0 %v1928
      %v2113 = vpop.f32.mrf.mxu0
      %v2114 = vadd.f32 0.0, %v2113
      %v2115 = vpop.f32.mrf.mxu0
      %2116 = vmatprep.mubr.f32.mxu0 0.0
      %2117 = vmatmul.mubr.f32.gmra.mxu0 %v1931
      %v2118 = vpop.f32.mrf.mxu0
      %v2119 = vadd.f32 0.0, %v2118
      %v2120 = vpop.f32.mrf.mxu0
      %2121 = vmatprep.mubr.f32.mxu0 0.0
      %2122 = vmatmul.mubr.f32.gmra.mxu0 %v1934
      %v2123 = vpop.f32.mrf.mxu0
      %v2124 = vadd.f32 0.0, %v2123
      %v2125 = vpop.f32.mrf.mxu0
      %2126 = vmatprep.mubr.f32.mxu0 0.0
      %2127 = vmatmul.mubr.f32.gmra.mxu0 %v1937
      %v2128 = vpop.f32.mrf.mxu0
      %v2129 = vadd.f32 0.0, %v2128
      %v2130 = vpop.f32.mrf.mxu0
      %2131 = vmatprep.mubr.f32.mxu0 0.0
      %2132 = vmatmul.mubr.f32.gmra.mxu0 %v1940
      %v2133 = vpop.f32.mrf.mxu0
      %v2134 = vadd.f32 0.0, %v2133
      %v2135 = vpop.f32.mrf.mxu0
      %2136 = vmatprep.mubr.f32.mxu0 0.0
      %2137 = vmatmul.mubr.f32.gmra.mxu0 %v1943
      %v2138 = vpop.f32.mrf.mxu0
      %v2139 = vadd.f32 0.0, %v2138
      %v2140 = vpop.f32.mrf.mxu0
      %2141 = vmatprep.mubr.f32.mxu0 0.0
      %2142 = vmatmul.mubr.f32.gmra.mxu0 %v1946
      %v2143 = vpop.f32.mrf.mxu0
      %v2144 = vadd.f32 0.0, %v2143
      %v2145 = vpop.f32.mrf.mxu0
      %2146 = vmatprep.mubr.f32.mxu0 0.0
      %2147 = vmatmul.mubr.f32.gmra.mxu0 %v1949
      %v2148 = vpop.f32.mrf.mxu0
      %v2149 = vadd.f32 0.0, %v2148
      %v2150 = vpop.f32.mrf.mxu0
      %2151 = vmatprep.mubr.f32.mxu0 0.0
      %2152 = vmatmul.mubr.f32.gmra.mxu0 %v1952
      %v2153 = vpop.f32.mrf.mxu0
      %v2154 = vadd.f32 0.0, %v2153
      %v2155 = vpop.f32.mrf.mxu0
      %2156 = vmatprep.mubr.f32.mxu0 0.0
      %2157 = vmatmul.mubr.f32.gmra.mxu0 %v1955
      %v2158 = vpop.f32.mrf.mxu0
      %v2159 = vadd.f32 0.0, %v2158
      %v2160 = vpop.f32.mrf.mxu0
      %2161 = vmatprep.mubr.f32.mxu0 0.0
      %2162 = vmatmul.mubr.f32.gmra.mxu0 %v1958
      %v2163 = vpop.f32.mrf.mxu0
      %v2164 = vadd.f32 0.0, %v2163
      %v2165 = vpop.f32.mrf.mxu0
      %2166 = vmatprep.mubr.f32.mxu0 0.0
      %2167 = vmatmul.mubr.f32.gmra.mxu0 %v1961
      %v2168 = vpop.f32.mrf.mxu0
      %v2169 = vadd.f32 0.0, %v2168
      %v2170 = vpop.f32.mrf.mxu0
      %2171 = vmatprep.mubr.f32.mxu0 0.0
      %2172 = vmatmul.mubr.f32.gmra.mxu0 %v1964
      %v2173 = vpop.f32.mrf.mxu0
      %v2174 = vadd.f32 0.0, %v2173
      %v2175 = vpop.f32.mrf.mxu0
      %2176 = vmatprep.mubr.f32.mxu0 0.0
      %2177 = vmatmul.mubr.f32.gmra.mxu0 %v1967
      %v2178 = vpop.f32.mrf.mxu0
      %v2179 = vadd.f32 0.0, %v2178
      %v2180 = vpop.f32.mrf.mxu0
      %2181 = vmatprep.mubr.f32.mxu0 0.0
      %2182 = vmatmul.mubr.f32.gmra.mxu0 %v1970
      %v2183 = vpop.f32.mrf.mxu0
      %v2184 = vadd.f32 0.0, %v2183
      %v2185 = vpop.f32.mrf.mxu0
      %2186 = vmatprep.mubr.f32.mxu0 0.0
      %2187 = vmatmul.mubr.f32.gmra.mxu0 %v1973
      %v2188 = vpop.f32.mrf.mxu0
      %v2189 = vadd.f32 0.0, %v2188
      %v2190 = vpop.f32.mrf.mxu0
      %2191 = vmatprep.mubr.f32.mxu0 0.0
      %2192 = vmatmul.mubr.f32.gmra.mxu0 %v1976
      %v2193 = vpop.f32.mrf.mxu0
      %v2194 = vadd.f32 0.0, %v2193
      %v2195 = vpop.f32.mrf.mxu0
      %2196 = vmatprep.mubr.f32.mxu0 0.0
      %2197 = vmatmul.mubr.f32.gmra.mxu0 %v1979
      %v2198 = vpop.f32.mrf.mxu0
      %v2199 = vadd.f32 0.0, %v2198
      %v2200 = vpop.f32.mrf.mxu0
      %2201 = vmatprep.mubr.f32.mxu0 0.0
      %2202 = vmatmul.mubr.f32.gmra.mxu0 %v1982
      %v2203 = vpop.f32.mrf.mxu0
      %v2204 = vadd.f32 0.0, %v2203
      %v2205 = vpop.f32.mrf.mxu0
      %2206 = vmatprep.mubr.f32.mxu0 0.0
      %2207 = vmatmul.mubr.f32.gmra.mxu0 %v1985
      %v2208 = vpop.f32.mrf.mxu0
      %v2209 = vadd.f32 0.0, %v2208
      %v2210 = vpop.f32.mrf.mxu0
      %2211 = vmatprep.mubr.f32.mxu0 0.0
      %2212 = vmatmul.mubr.f32.gmra.mxu0 %v1988
      %v2213 = vpop.f32.mrf.mxu0
      %v2214 = vadd.f32 0.0, %v2213
      %v2215 = vpop.f32.mrf.mxu0
      %2216 = vmatprep.mubr.f32.mxu0 0.0
      %2217 = vmatmul.mubr.f32.gmra.mxu0 %v1991
      %v2218 = vpop.f32.mrf.mxu0
      %v2219 = vadd.f32 0.0, %v2218
      %v2220 = vpop.f32.mrf.mxu0
      %2221 = vdwg.mxu0
      %v2222 = vld [vmem:[%s2] sm:$0x1]
      %v2224 = vlaneseq
      %v2225 = vshrl.u32 %v2224, 7
      %v2226 = vsub.s32 0, %v2225
      %v2227 = vrot.slane %v2222, %v2226
      %v2229 = vmul.f32 %v2064, %v2227
      %v2230 = vmul.f32 %v2069, %v2227
      %v2231 = vmul.f32 %v2074, %v2227
      %v2232 = vmul.f32 %v2079, %v2227
      %v2233 = vmul.f32 %v2084, %v2227
      %v2234 = vmul.f32 %v2089, %v2227
      %v2235 = vmul.f32 %v2094, %v2227
      %v2236 = vmul.f32 %v2099, %v2227
      %v2237 = vmul.f32 %v2104, %v2227
      %v2238 = vmul.f32 %v2109, %v2227
      %v2239 = vmul.f32 %v2114, %v2227
      %v2240 = vmul.f32 %v2119, %v2227
      %v2241 = vmul.f32 %v2124, %v2227
      %v2242 = vmul.f32 %v2129, %v2227
      %v2243 = vmul.f32 %v2134, %v2227
      %v2244 = vmul.f32 %v2139, %v2227
      %v2245 = vmul.f32 %v2144, %v2227
      %v2246 = vmul.f32 %v2149, %v2227
      %v2247 = vmul.f32 %v2154, %v2227
      %v2248 = vmul.f32 %v2159, %v2227
      %v2249 = vmul.f32 %v2164, %v2227
      %v2250 = vmul.f32 %v2169, %v2227
      %v2251 = vmul.f32 %v2174, %v2227
      %v2252 = vmul.f32 %v2179, %v2227
      %v2253 = vmul.f32 %v2184, %v2227
      %v2254 = vmul.f32 %v2189, %v2227
      %v2255 = vmul.f32 %v2194, %v2227
      %v2256 = vmul.f32 %v2199, %v2227
      %v2257 = vmul.f32 %v2204, %v2227
      %v2258 = vmul.f32 %v2209, %v2227
      %v2259 = vmul.f32 %v2214, %v2227
      %v2260 = vmul.f32 %v2219, %v2227
      %v2261 = vld [vmem:[%s3] sm:$0x1]
      %v2263 = vlaneseq
      %v2264 = vshrl.u32 %v2263, 7
      %v2265 = vsub.s32 0, %v2264
      %v2266 = vrot.slane %v2261, %v2265
      %v2268 = vadd.f32 %v2229, %v2266
      %v2269 = vadd.f32 %v2230, %v2266
      %v2270 = vadd.f32 %v2231, %v2266
      %v2271 = vadd.f32 %v2232, %v2266
      %v2272 = vadd.f32 %v2233, %v2266
      %v2273 = vadd.f32 %v2234, %v2266
      %v2274 = vadd.f32 %v2235, %v2266
      %v2275 = vadd.f32 %v2236, %v2266
      %v2276 = vadd.f32 %v2237, %v2266
      %v2277 = vadd.f32 %v2238, %v2266
      %v2278 = vadd.f32 %v2239, %v2266
      %v2279 = vadd.f32 %v2240, %v2266
      %v2280 = vadd.f32 %v2241, %v2266
      %v2281 = vadd.f32 %v2242, %v2266
      %v2282 = vadd.f32 %v2243, %v2266
      %v2283 = vadd.f32 %v2244, %v2266
      %v2284 = vadd.f32 %v2245, %v2266
      %v2285 = vadd.f32 %v2246, %v2266
      %v2286 = vadd.f32 %v2247, %v2266
      %v2287 = vadd.f32 %v2248, %v2266
      %v2288 = vadd.f32 %v2249, %v2266
      %v2289 = vadd.f32 %v2250, %v2266
      %v2290 = vadd.f32 %v2251, %v2266
      %v2291 = vadd.f32 %v2252, %v2266
      %v2292 = vadd.f32 %v2253, %v2266
      %v2293 = vadd.f32 %v2254, %v2266
      %v2294 = vadd.f32 %v2255, %v2266
      %v2295 = vadd.f32 %v2256, %v2266
      %v2296 = vadd.f32 %v2257, %v2266
      %v2297 = vadd.f32 %v2258, %v2266
      %v2298 = vadd.f32 %v2259, %v2266
      %v2299 = vadd.f32 %v2260, %v2266
      %vm2300 = vcmp.gt.f32.partialorder %v2268, 0.0
      %vm2301 = vcmp.gt.f32.partialorder %v2269, 0.0
      %vm2302 = vcmp.gt.f32.partialorder %v2270, 0.0
      %vm2303 = vcmp.gt.f32.partialorder %v2271, 0.0
      %vm2304 = vcmp.gt.f32.partialorder %v2272, 0.0
      %vm2305 = vcmp.gt.f32.partialorder %v2273, 0.0
      %vm2306 = vcmp.gt.f32.partialorder %v2274, 0.0
      %vm2307 = vcmp.gt.f32.partialorder %v2275, 0.0
      %vm2308 = vcmp.gt.f32.partialorder %v2276, 0.0
      %vm2309 = vcmp.gt.f32.partialorder %v2277, 0.0
      %vm2310 = vcmp.gt.f32.partialorder %v2278, 0.0
      %vm2311 = vcmp.gt.f32.partialorder %v2279, 0.0
      %vm2312 = vcmp.gt.f32.partialorder %v2280, 0.0
      %vm2313 = vcmp.gt.f32.partialorder %v2281, 0.0
      %vm2314 = vcmp.gt.f32.partialorder %v2282, 0.0
      %vm2315 = vcmp.gt.f32.partialorder %v2283, 0.0
      %vm2316 = vcmp.gt.f32.partialorder %v2284, 0.0
      %vm2317 = vcmp.gt.f32.partialorder %v2285, 0.0
      %vm2318 = vcmp.gt.f32.partialorder %v2286, 0.0
      %vm2319 = vcmp.gt.f32.partialorder %v2287, 0.0
      %vm2320 = vcmp.gt.f32.partialorder %v2288, 0.0
      %vm2321 = vcmp.gt.f32.partialorder %v2289, 0.0
      %vm2322 = vcmp.gt.f32.partialorder %v2290, 0.0
      %vm2323 = vcmp.gt.f32.partialorder %v2291, 0.0
      %vm2324 = vcmp.gt.f32.partialorder %v2292, 0.0
      %vm2325 = vcmp.gt.f32.partialorder %v2293, 0.0
      %vm2326 = vcmp.gt.f32.partialorder %v2294, 0.0
      %vm2327 = vcmp.gt.f32.partialorder %v2295, 0.0
      %vm2328 = vcmp.gt.f32.partialorder %v2296, 0.0
      %vm2329 = vcmp.gt.f32.partialorder %v2297, 0.0
      %vm2330 = vcmp.gt.f32.partialorder %v2298, 0.0
      %vm2331 = vcmp.gt.f32.partialorder %v2299, 0.0
      %v2332 = vmul.f32 %v2268, 0.01
      %v2333 = vmul.f32 %v2269, 0.01
      %v2334 = vmul.f32 %v2270, 0.01
      %v2335 = vmul.f32 %v2271, 0.01
      %v2336 = vmul.f32 %v2272, 0.01
      %v2337 = vmul.f32 %v2273, 0.01
      %v2338 = vmul.f32 %v2274, 0.01
      %v2339 = vmul.f32 %v2275, 0.01
      %v2340 = vmul.f32 %v2276, 0.01
      %v2341 = vmul.f32 %v2277, 0.01
      %v2342 = vmul.f32 %v2278, 0.01
      %v2343 = vmul.f32 %v2279, 0.01
      %v2344 = vmul.f32 %v2280, 0.01
      %v2345 = vmul.f32 %v2281, 0.01
      %v2346 = vmul.f32 %v2282, 0.01
      %v2347 = vmul.f32 %v2283, 0.01
      %v2348 = vmul.f32 %v2284, 0.01
      %v2349 = vmul.f32 %v2285, 0.01
      %v2350 = vmul.f32 %v2286, 0.01
      %v2351 = vmul.f32 %v2287, 0.01
      %v2352 = vmul.f32 %v2288, 0.01
      %v2353 = vmul.f32 %v2289, 0.01
      %v2354 = vmul.f32 %v2290, 0.01
      %v2355 = vmul.f32 %v2291, 0.01
      %v2356 = vmul.f32 %v2292, 0.01
      %v2357 = vmul.f32 %v2293, 0.01
      %v2358 = vmul.f32 %v2294, 0.01
      %v2359 = vmul.f32 %v2295, 0.01
      %v2360 = vmul.f32 %v2296, 0.01
      %v2361 = vmul.f32 %v2297, 0.01
      %v2362 = vmul.f32 %v2298, 0.01
      %v2363 = vmul.f32 %v2299, 0.01
      %v2364 = vsel %vm2300, %v2268, %v2332
      %v2365 = vsel %vm2301, %v2269, %v2333
      %v2366 = vsel %vm2302, %v2270, %v2334
      %v2367 = vsel %vm2303, %v2271, %v2335
      %v2368 = vsel %vm2304, %v2272, %v2336
      %v2369 = vsel %vm2305, %v2273, %v2337
      %v2370 = vsel %vm2306, %v2274, %v2338
      %v2371 = vsel %vm2307, %v2275, %v2339
      %v2372 = vsel %vm2308, %v2276, %v2340
      %v2373 = vsel %vm2309, %v2277, %v2341
      %v2374 = vsel %vm2310, %v2278, %v2342
      %v2375 = vsel %vm2311, %v2279, %v2343
      %v2376 = vsel %vm2312, %v2280, %v2344
      %v2377 = vsel %vm2313, %v2281, %v2345
      %v2378 = vsel %vm2314, %v2282, %v2346
      %v2379 = vsel %vm2315, %v2283, %v2347
      %v2380 = vsel %vm2316, %v2284, %v2348
      %v2381 = vsel %vm2317, %v2285, %v2349
      %v2382 = vsel %vm2318, %v2286, %v2350
      %v2383 = vsel %vm2319, %v2287, %v2351
      %v2384 = vsel %vm2320, %v2288, %v2352
      %v2385 = vsel %vm2321, %v2289, %v2353
      %v2386 = vsel %vm2322, %v2290, %v2354
      %v2387 = vsel %vm2323, %v2291, %v2355
      %v2388 = vsel %vm2324, %v2292, %v2356
      %v2389 = vsel %vm2325, %v2293, %v2357
      %v2390 = vsel %vm2326, %v2294, %v2358
      %v2391 = vsel %vm2327, %v2295, %v2359
      %v2392 = vsel %vm2328, %v2296, %v2360
      %v2393 = vsel %vm2329, %v2297, %v2361
      %v2394 = vsel %vm2330, %v2298, %v2362
      %v2395 = vsel %vm2331, %v2299, %v2363
      %vm2396 = vcmask 64512
      %2397 = vst.msk [vmem:[#allocation4] sm:$0xff] %vm2396, %v2364
      %2398 = vst.msk [vmem:[#allocation4 + $0x8] sm:$0xff] %vm2396, %v2365
      %2399 = vst.msk [vmem:[#allocation4 + $0x10] sm:$0xff] %vm2396, %v2366
      %2400 = vst.msk [vmem:[#allocation4 + $0x18] sm:$0xff] %vm2396, %v2367
      %2401 = vst.msk [vmem:[#allocation4 + $0x20] sm:$0xff] %vm2396, %v2368
      %2402 = vst.msk [vmem:[#allocation4 + $0x28] sm:$0xff] %vm2396, %v2369
      %2403 = vst.msk [vmem:[#allocation4 + $0x30] sm:$0xff] %vm2396, %v2370
      %2404 = vst.msk [vmem:[#allocation4 + $0x38] sm:$0xff] %vm2396, %v2371
      %2405 = vst.msk [vmem:[#allocation4 + $0x40] sm:$0xff] %vm2396, %v2372
      %2406 = vst.msk [vmem:[#allocation4 + $0x48] sm:$0xff] %vm2396, %v2373
      %2407 = vst.msk [vmem:[#allocation4 + $0x50] sm:$0xff] %vm2396, %v2374
      %2408 = vst.msk [vmem:[#allocation4 + $0x58] sm:$0xff] %vm2396, %v2375
      %2409 = vst.msk [vmem:[#allocation4 + $0x60] sm:$0xff] %vm2396, %v2376
      %2410 = vst.msk [vmem:[#allocation4 + $0x68] sm:$0xff] %vm2396, %v2377
      %2411 = vst.msk [vmem:[#allocation4 + $0x70] sm:$0xff] %vm2396, %v2378
      %2412 = vst.msk [vmem:[#allocation4 + $0x78] sm:$0xff] %vm2396, %v2379
      %2413 = vst.msk [vmem:[#allocation4 + $0x80] sm:$0xff] %vm2396, %v2380
      %2414 = vst.msk [vmem:[#allocation4 + $0x88] sm:$0xff] %vm2396, %v2381
      %2415 = vst.msk [vmem:[#allocation4 + $0x90] sm:$0xff] %vm2396, %v2382
      %2416 = vst.msk [vmem:[#allocation4 + $0x98] sm:$0xff] %vm2396, %v2383
      %2417 = vst.msk [vmem:[#allocation4 + $0xa0] sm:$0xff] %vm2396, %v2384
      %2418 = vst.msk [vmem:[#allocation4 + $0xa8] sm:$0xff] %vm2396, %v2385
      %2419 = vst.msk [vmem:[#allocation4 + $0xb0] sm:$0xff] %vm2396, %v2386
      %2420 = vst.msk [vmem:[#allocation4 + $0xb8] sm:$0xff] %vm2396, %v2387
      %2421 = vst.msk [vmem:[#allocation4 + $0xc0] sm:$0xff] %vm2396, %v2388
      %2422 = vst.msk [vmem:[#allocation4 + $0xc8] sm:$0xff] %vm2396, %v2389
      %2423 = vst.msk [vmem:[#allocation4 + $0xd0] sm:$0xff] %vm2396, %v2390
      %2424 = vst.msk [vmem:[#allocation4 + $0xd8] sm:$0xff] %vm2396, %v2391
      %2425 = vst.msk [vmem:[#allocation4 + $0xe0] sm:$0xff] %vm2396, %v2392
      %2426 = vst.msk [vmem:[#allocation4 + $0xe8] sm:$0xff] %vm2396, %v2393
      %2427 = vst.msk [vmem:[#allocation4 + $0xf0] sm:$0xff] %vm2396, %v2394
      %2428 = vst.msk [vmem:[#allocation4 + $0xf8] sm:$0xff] %vm2396, %v2395
      %v2429 = vld [vmem:[#allocation4] ss:$2 sm:$0xff]
      %s2430 = scalar_lea.vmem [#allocation4], 32
      %v2431 = vld [vmem:[%s2430] ss:$2 sm:$0xff]
      %s2432 = scalar_lea.vmem [#allocation4], 64
      %v2433 = vld [vmem:[%s2432] ss:$2 sm:$0xff]
      %s2434 = scalar_lea.vmem [#allocation4], 96
      %v2435 = vld [vmem:[%s2434] ss:$2 sm:$0xff]
      %s2436 = scalar_lea.vmem [#allocation4], 128
      %v2437 = vld [vmem:[%s2436] ss:$2 sm:$0xff]
      %s2438 = scalar_lea.vmem [#allocation4], 160
      %v2439 = vld [vmem:[%s2438] ss:$2 sm:$0xff]
      %s2440 = scalar_lea.vmem [#allocation4], 192
      %v2441 = vld [vmem:[%s2440] ss:$2 sm:$0xff]
      %s2442 = scalar_lea.vmem [#allocation4], 224
      %v2443 = vld [vmem:[%s2442] ss:$2 sm:$0xff]
      %s2444 = scalar_lea.vmem [#allocation4], 1
      %v2445 = vld [vmem:[%s2444] ss:$2 sm:$0xff]
      %s2446 = scalar_lea.vmem [#allocation4], 33
      %v2447 = vld [vmem:[%s2446] ss:$2 sm:$0xff]
      %s2448 = scalar_lea.vmem [#allocation4], 65
      %v2449 = vld [vmem:[%s2448] ss:$2 sm:$0xff]
      %s2450 = scalar_lea.vmem [#allocation4], 97
      %v2451 = vld [vmem:[%s2450] ss:$2 sm:$0xff]
      %s2452 = scalar_lea.vmem [#allocation4], 129
      %v2453 = vld [vmem:[%s2452] ss:$2 sm:$0xff]
      %s2454 = scalar_lea.vmem [#allocation4], 161
      %v2455 = vld [vmem:[%s2454] ss:$2 sm:$0xff]
      %s2456 = scalar_lea.vmem [#allocation4], 193
      %v2457 = vld [vmem:[%s2456] ss:$2 sm:$0xff]
      %s2458 = scalar_lea.vmem [#allocation4], 225
      %v2459 = vld [vmem:[%s2458] ss:$2 sm:$0xff]
      %s2460 = scalar_lea.vmem [#allocation4], 16
      %v2461 = vld [vmem:[%s2460] ss:$2 sm:$0xff]
      %s2462 = scalar_lea.vmem %s2460, 32 [#allocation4]
      %v2463 = vld [vmem:[%s2462] ss:$2 sm:$0xff]
      %s2464 = scalar_lea.vmem %s2460, 64 [#allocation4]
      %v2465 = vld [vmem:[%s2464] ss:$2 sm:$0xff]
      %s2466 = scalar_lea.vmem %s2460, 96 [#allocation4]
      %v2467 = vld [vmem:[%s2466] ss:$2 sm:$0xff]
      %s2468 = scalar_lea.vmem %s2460, 128 [#allocation4]
      %v2469 = vld [vmem:[%s2468] ss:$2 sm:$0xff]
      %s2470 = scalar_lea.vmem %s2460, 160 [#allocation4]
      %v2471 = vld [vmem:[%s2470] ss:$2 sm:$0xff]
      %s2472 = scalar_lea.vmem %s2460, 192 [#allocation4]
      %v2473 = vld [vmem:[%s2472] ss:$2 sm:$0xff]
      %s2474 = scalar_lea.vmem %s2460, 224 [#allocation4]
      %v2475 = vld [vmem:[%s2474] ss:$2 sm:$0xff]
      %s2476 = scalar_lea.vmem %s2460, 1 [#allocation4]
      %v2477 = vld [vmem:[%s2476] ss:$2 sm:$0xff]
      %s2478 = scalar_lea.vmem %s2460, 33 [#allocation4]
      %v2479 = vld [vmem:[%s2478] ss:$2 sm:$0xff]
      %s2480 = scalar_lea.vmem %s2460, 65 [#allocation4]
      %v2481 = vld [vmem:[%s2480] ss:$2 sm:$0xff]
      %s2482 = scalar_lea.vmem %s2460, 97 [#allocation4]
      %v2483 = vld [vmem:[%s2482] ss:$2 sm:$0xff]
      %s2484 = scalar_lea.vmem %s2460, 129 [#allocation4]
      %v2485 = vld [vmem:[%s2484] ss:$2 sm:$0xff]
      %s2486 = scalar_lea.vmem %s2460, 161 [#allocation4]
      %v2487 = vld [vmem:[%s2486] ss:$2 sm:$0xff]
      %s2488 = scalar_lea.vmem %s2460, 193 [#allocation4]
      %v2489 = vld [vmem:[%s2488] ss:$2 sm:$0xff]
      %s2490 = scalar_lea.vmem %s2460, 225 [#allocation4]
      %v2491 = vld [vmem:[%s2490] ss:$2 sm:$0xff]
      %v2492 = vmax.f32 %v2429, %v2445
      %v2493 = vmax.f32 %v2431, %v2447
      %v2494 = vmax.f32 %v2433, %v2449
      %v2495 = vmax.f32 %v2435, %v2451
      %v2496 = vmax.f32 %v2437, %v2453
      %v2497 = vmax.f32 %v2439, %v2455
      %v2498 = vmax.f32 %v2441, %v2457
      %v2499 = vmax.f32 %v2443, %v2459
      %v2500 = vmax.f32 %v2461, %v2477
      %v2501 = vmax.f32 %v2463, %v2479
      %v2502 = vmax.f32 %v2465, %v2481
      %v2503 = vmax.f32 %v2467, %v2483
      %v2504 = vmax.f32 %v2469, %v2485
      %v2505 = vmax.f32 %v2471, %v2487
      %v2506 = vmax.f32 %v2473, %v2489
      %v2507 = vmax.f32 %v2475, %v2491
      %v2508 = vmax.f32 %v2492, %v2500
      %v2509 = vmax.f32 %v2493, %v2501
      %v2510 = vmax.f32 %v2494, %v2502
      %v2511 = vmax.f32 %v2495, %v2503
      %v2512 = vmax.f32 %v2496, %v2504
      %v2513 = vmax.f32 %v2497, %v2505
      %v2514 = vmax.f32 %v2498, %v2506
      %v2515 = vmax.f32 %v2499, %v2507
      %2516 = vst.msk [vmem:[#allocation5] sm:$0xff] %vm2396, 0.0
      %vm2517 = vcmask 58368
      %2518 = vst.msk [vmem:[#allocation5 + $0x8] sm:$0x3] %vm2517, 0.0
      %2519 = vst.msk [vmem:[#allocation5 + $0x10] sm:$0xff] %vm2396, 0.0
      %2520 = vst.msk [vmem:[#allocation5 + $0x18] sm:$0x3] %vm2517, 0.0
      %2521 = vst.msk [vmem:[#allocation5 + $0x20] sm:$0xff] %vm2396, 0.0
      %2522 = vst.msk [vmem:[#allocation5 + $0x28] sm:$0x3] %vm2517, 0.0
      %2523 = vst.msk [vmem:[#allocation5 + $0x30] sm:$0xff] %vm2396, 0.0
      %2524 = vst.msk [vmem:[#allocation5 + $0x38] sm:$0x3] %vm2517, 0.0
      %2525 = vst.msk [vmem:[#allocation5 + $0x40] sm:$0xff] %vm2396, 0.0
      %2526 = vst.msk [vmem:[#allocation5 + $0x48] sm:$0x3] %vm2517, 0.0
      %2527 = vst.msk [vmem:[#allocation5 + $0x50] sm:$0xff] %vm2396, 0.0
      %2528 = vst.msk [vmem:[#allocation5 + $0x58] sm:$0x3] %vm2517, 0.0
      %2529 = vst.msk [vmem:[#allocation5 + $0x60] sm:$0xff] %vm2396, 0.0
      %2530 = vst.msk [vmem:[#allocation5 + $0x68] sm:$0x3] %vm2517, 0.0
      %2531 = vst.msk [vmem:[#allocation5 + $0x70] sm:$0xff] %vm2396, 0.0
      %2532 = vst.msk [vmem:[#allocation5 + $0x78] sm:$0x3] %vm2517, 0.0
      %2533 = vst.msk [vmem:[#allocation5 + $0x80] sm:$0xff] %vm2396, 0.0
      %2534 = vst.msk [vmem:[#allocation5 + $0x88] sm:$0x3] %vm2517, 0.0
      %2535 = vst.msk [vmem:[#allocation5 + $0x90] sm:$0xff] %vm2396, 0.0
      %2536 = vst.msk [vmem:[#allocation5 + $0x98] sm:$0x3] %vm2517, 0.0
      %s2537 = scalar_lea.vmem [#allocation5], 16
      %2538 = vst.msk [vmem:[%s2537 + $0x1] sm:$0xff] %vm2396, %v2508
      %2539 = vst.msk [vmem:[%s2537 + $0x11] sm:$0xff] %vm2396, %v2509
      %2540 = vst.msk [vmem:[%s2537 + $0x21] sm:$0xff] %vm2396, %v2510
      %2541 = vst.msk [vmem:[%s2537 + $0x31] sm:$0xff] %vm2396, %v2511
      %2542 = vst.msk [vmem:[%s2537 + $0x41] sm:$0xff] %vm2396, %v2512
      %2543 = vst.msk [vmem:[%s2537 + $0x51] sm:$0xff] %vm2396, %v2513
      %2544 = vst.msk [vmem:[%s2537 + $0x61] sm:$0xff] %vm2396, %v2514
      %2545 = vst.msk [vmem:[%s2537 + $0x71] sm:$0xff] %vm2396, %v2515
      %v2546 = vld [vmem:[#allocation5] sm:$0xff]
      %v2547 = vld [vmem:[#allocation5 + $0x8] sm:$0x3]
      %v2548 = vld [vmem:[#allocation5 + $0x10] sm:$0xff]
      %v2549 = vld [vmem:[#allocation5 + $0x18] sm:$0x3]
      %v2550 = vld [vmem:[#allocation5 + $0x20] sm:$0xff]
      %v2551 = vld [vmem:[#allocation5 + $0x28] sm:$0x3]
      %v2552 = vld [vmem:[#allocation5 + $0x30] sm:$0xff]
      %v2553 = vld [vmem:[#allocation5 + $0x38] sm:$0x3]
      %v2554 = vld [vmem:[#allocation5 + $0x40] sm:$0xff]
      %v2555 = vld [vmem:[#allocation5 + $0x48] sm:$0x3]
      %v2556 = vld [vmem:[#allocation5 + $0x50] sm:$0xff]
      %v2557 = vld [vmem:[#allocation5 + $0x58] sm:$0x3]
      %v2558 = vld [vmem:[#allocation5 + $0x60] sm:$0xff]
      %v2559 = vld [vmem:[#allocation5 + $0x68] sm:$0x3]
      %v2560 = vld [vmem:[#allocation5 + $0x70] sm:$0xff]
      %v2561 = vld [vmem:[#allocation5 + $0x78] sm:$0x3]
      %v2562 = vld [vmem:[#allocation5 + $0x80] sm:$0xff]
      %v2563 = vld [vmem:[#allocation5 + $0x88] sm:$0x3]
      %v2564 = vld [vmem:[#allocation5 + $0x90] sm:$0xff]
      %v2565 = vld [vmem:[#allocation5 + $0x98] sm:$0x3]
      %2566 = vst.msk [vmem:[#allocation6] sm:$0xff] %vm2396, %v2546
      %2567 = vst.msk [vmem:[#allocation6 + $0x8] sm:$0xff] %vm2396, %v2548
      %2568 = vst.msk [vmem:[#allocation6 + $0x10] sm:$0xff] %vm2396, %v2550
      %2569 = vst.msk [vmem:[#allocation6 + $0x18] sm:$0xff] %vm2396, %v2552
      %2570 = vst.msk [vmem:[#allocation6 + $0x20] sm:$0xff] %vm2396, %v2554
      %2571 = vst.msk [vmem:[#allocation6 + $0x28] sm:$0xff] %vm2396, %v2556
      %2572 = vst.msk [vmem:[#allocation6 + $0x30] sm:$0xff] %vm2396, %v2558
      %2573 = vst.msk [vmem:[#allocation6 + $0x38] sm:$0xff] %vm2396, %v2560
      %v2590 = vrot.slane %v2546, 1
      %v2591 = vrot.slane %v2547, 1
      %v2592 = vsel %vm640, %v2590, %v2591
      %v2593 = vrot.slane %v2548, 1
      %v2594 = vrot.slane %v2549, 1
      %v2595 = vsel %vm640, %v2593, %v2594
      %v2596 = vrot.slane %v2550, 1
      %v2597 = vrot.slane %v2551, 1
      %v2598 = vsel %vm640, %v2596, %v2597
      %v2599 = vrot.slane %v2552, 1
      %v2600 = vrot.slane %v2553, 1
      %v2601 = vsel %vm640, %v2599, %v2600
      %v2602 = vrot.slane %v2554, 1
      %v2603 = vrot.slane %v2555, 1
      %v2604 = vsel %vm640, %v2602, %v2603
      %v2605 = vrot.slane %v2556, 1
      %v2606 = vrot.slane %v2557, 1
      %v2607 = vsel %vm640, %v2605, %v2606
      %v2608 = vrot.slane %v2558, 1
      %v2609 = vrot.slane %v2559, 1
      %v2610 = vsel %vm640, %v2608, %v2609
      %v2611 = vrot.slane %v2560, 1
      %v2612 = vrot.slane %v2561, 1
      %v2613 = vsel %vm640, %v2611, %v2612
      %2614 = vrot.lane.b32.xlu0 %v2592, 8
      %v2615 = vpop.permute.xlu0 %2614
      %2616 = vrot.lane.b32.xlu0 %v2595, 8
      %v2617 = vpop.permute.xlu0 %2616
      %2618 = vrot.lane.b32.xlu0 %v2598, 8
      %v2619 = vpop.permute.xlu0 %2618
      %2620 = vrot.lane.b32.xlu0 %v2601, 8
      %v2621 = vpop.permute.xlu0 %2620
      %2622 = vrot.lane.b32.xlu0 %v2604, 8
      %v2623 = vpop.permute.xlu0 %2622
      %2624 = vrot.lane.b32.xlu0 %v2607, 8
      %v2625 = vpop.permute.xlu0 %2624
      %2626 = vrot.lane.b32.xlu0 %v2610, 8
      %v2627 = vpop.permute.xlu0 %2626
      %2628 = vrot.lane.b32.xlu0 %v2613, 8
      %v2629 = vpop.permute.xlu0 %2628
      %vm2638 = vcmask 130112
      %2639 = vst.msk [vmem:[#allocation6] sm:$0xff] %vm2638, %v2615
      %2640 = vst.msk [vmem:[#allocation6 + $0x8] sm:$0xff] %vm2638, %v2617
      %2641 = vst.msk [vmem:[#allocation6 + $0x10] sm:$0xff] %vm2638, %v2619
      %2642 = vst.msk [vmem:[#allocation6 + $0x18] sm:$0xff] %vm2638, %v2621
      %2643 = vst.msk [vmem:[#allocation6 + $0x20] sm:$0xff] %vm2638, %v2623
      %2644 = vst.msk [vmem:[#allocation6 + $0x28] sm:$0xff] %vm2638, %v2625
      %2645 = vst.msk [vmem:[#allocation6 + $0x30] sm:$0xff] %vm2638, %v2627
      %2646 = vst.msk [vmem:[#allocation6 + $0x38] sm:$0xff] %vm2638, %v2629
      %v2647 = vrot.slane %v2546, 2
      %v2648 = vrot.slane %v2547, 2
      %v2649 = vsel %vm850, %v2647, %v2648
      %v2650 = vrot.slane %v2548, 2
      %v2651 = vrot.slane %v2549, 2
      %v2652 = vsel %vm850, %v2650, %v2651
      %v2653 = vrot.slane %v2550, 2
      %v2654 = vrot.slane %v2551, 2
      %v2655 = vsel %vm850, %v2653, %v2654
      %v2656 = vrot.slane %v2552, 2
      %v2657 = vrot.slane %v2553, 2
      %v2658 = vsel %vm850, %v2656, %v2657
      %v2659 = vrot.slane %v2554, 2
      %v2660 = vrot.slane %v2555, 2
      %v2661 = vsel %vm850, %v2659, %v2660
      %v2662 = vrot.slane %v2556, 2
      %v2663 = vrot.slane %v2557, 2
      %v2664 = vsel %vm850, %v2662, %v2663
      %v2665 = vrot.slane %v2558, 2
      %v2666 = vrot.slane %v2559, 2
      %v2667 = vsel %vm850, %v2665, %v2666
      %v2668 = vrot.slane %v2560, 2
      %v2669 = vrot.slane %v2561, 2
      %v2670 = vsel %vm850, %v2668, %v2669
      %2671 = vrot.lane.b32.xlu0 %v2649, 16
      %v2672 = vpop.permute.xlu0 %2671
      %2673 = vrot.lane.b32.xlu0 %v2652, 16
      %v2674 = vpop.permute.xlu0 %2673
      %2675 = vrot.lane.b32.xlu0 %v2655, 16
      %v2676 = vpop.permute.xlu0 %2675
      %2677 = vrot.lane.b32.xlu0 %v2658, 16
      %v2678 = vpop.permute.xlu0 %2677
      %2679 = vrot.lane.b32.xlu0 %v2661, 16
      %v2680 = vpop.permute.xlu0 %2679
      %2681 = vrot.lane.b32.xlu0 %v2664, 16
      %v2682 = vpop.permute.xlu0 %2681
      %2683 = vrot.lane.b32.xlu0 %v2667, 16
      %v2684 = vpop.permute.xlu0 %2683
      %2685 = vrot.lane.b32.xlu0 %v2670, 16
      %v2686 = vpop.permute.xlu0 %2685
      %vm2695 = vcmask 195712
      %2696 = vst.msk [vmem:[#allocation6] sm:$0xff] %vm2695, %v2672
      %2697 = vst.msk [vmem:[#allocation6 + $0x8] sm:$0xff] %vm2695, %v2674
      %2698 = vst.msk [vmem:[#allocation6 + $0x10] sm:$0xff] %vm2695, %v2676
      %2699 = vst.msk [vmem:[#allocation6 + $0x18] sm:$0xff] %vm2695, %v2678
      %2700 = vst.msk [vmem:[#allocation6 + $0x20] sm:$0xff] %vm2695, %v2680
      %2701 = vst.msk [vmem:[#allocation6 + $0x28] sm:$0xff] %vm2695, %v2682
      %2702 = vst.msk [vmem:[#allocation6 + $0x30] sm:$0xff] %vm2695, %v2684
      %2703 = vst.msk [vmem:[#allocation6 + $0x38] sm:$0xff] %vm2695, %v2686
      %2705 = vrot.lane.b32.xlu0 %v2548, 24
      %v2706 = vpop.permute.xlu0 %2705
      %2707 = vrot.lane.b32.xlu0 %v2550, 24
      %v2708 = vpop.permute.xlu0 %2707
      %2709 = vrot.lane.b32.xlu0 %v2552, 24
      %v2710 = vpop.permute.xlu0 %2709
      %2711 = vrot.lane.b32.xlu0 %v2554, 24
      %v2712 = vpop.permute.xlu0 %2711
      %2713 = vrot.lane.b32.xlu0 %v2556, 24
      %v2714 = vpop.permute.xlu0 %2713
      %2715 = vrot.lane.b32.xlu0 %v2558, 24
      %v2716 = vpop.permute.xlu0 %2715
      %2717 = vrot.lane.b32.xlu0 %v2560, 24
      %v2718 = vpop.permute.xlu0 %2717
      %2719 = vrot.lane.b32.xlu0 %v2562, 24
      %v2720 = vpop.permute.xlu0 %2719
      %vm2729 = vcmask 261312
      %2730 = vst.msk [vmem:[#allocation6] sm:$0xff] %vm2729, %v2706
      %2731 = vst.msk [vmem:[#allocation6 + $0x8] sm:$0xff] %vm2729, %v2708
      %2732 = vst.msk [vmem:[#allocation6 + $0x10] sm:$0xff] %vm2729, %v2710
      %2733 = vst.msk [vmem:[#allocation6 + $0x18] sm:$0xff] %vm2729, %v2712
      %2734 = vst.msk [vmem:[#allocation6 + $0x20] sm:$0xff] %vm2729, %v2714
      %2735 = vst.msk [vmem:[#allocation6 + $0x28] sm:$0xff] %vm2729, %v2716
      %2736 = vst.msk [vmem:[#allocation6 + $0x30] sm:$0xff] %vm2729, %v2718
      %2737 = vst.msk [vmem:[#allocation6 + $0x38] sm:$0xff] %vm2729, %v2720
      %v2739 = vrot.slane %v2562, 1
      %v2740 = vrot.slane %v2563, 1
      %v2741 = vsel %vm640, %v2739, %v2740
      %2742 = vrot.lane.b32.xlu0 %v2595, 32
      %v2743 = vpop.permute.xlu0 %2742
      %2744 = vrot.lane.b32.xlu0 %v2598, 32
      %v2745 = vpop.permute.xlu0 %2744
      %2746 = vrot.lane.b32.xlu0 %v2601, 32
      %v2747 = vpop.permute.xlu0 %2746
      %2748 = vrot.lane.b32.xlu0 %v2604, 32
      %v2749 = vpop.permute.xlu0 %2748
      %2750 = vrot.lane.b32.xlu0 %v2607, 32
      %v2751 = vpop.permute.xlu0 %2750
      %2752 = vrot.lane.b32.xlu0 %v2610, 32
      %v2753 = vpop.permute.xlu0 %2752
      %2754 = vrot.lane.b32.xlu0 %v2613, 32
      %v2755 = vpop.permute.xlu0 %2754
      %2756 = vrot.lane.b32.xlu0 %v2741, 32
      %v2757 = vpop.permute.xlu0 %2756
      %vm2766 = vcmask 326912
      %2767 = vst.msk [vmem:[#allocation6] sm:$0xff] %vm2766, %v2743
      %2768 = vst.msk [vmem:[#allocation6 + $0x8] sm:$0xff] %vm2766, %v2745
      %2769 = vst.msk [vmem:[#allocation6 + $0x10] sm:$0xff] %vm2766, %v2747
      %2770 = vst.msk [vmem:[#allocation6 + $0x18] sm:$0xff] %vm2766, %v2749
      %2771 = vst.msk [vmem:[#allocation6 + $0x20] sm:$0xff] %vm2766, %v2751
      %2772 = vst.msk [vmem:[#allocation6 + $0x28] sm:$0xff] %vm2766, %v2753
      %2773 = vst.msk [vmem:[#allocation6 + $0x30] sm:$0xff] %vm2766, %v2755
      %2774 = vst.msk [vmem:[#allocation6 + $0x38] sm:$0xff] %vm2766, %v2757
      %v2775 = vrot.slane %v2562, 2
      %v2776 = vrot.slane %v2563, 2
      %v2777 = vsel %vm850, %v2775, %v2776
      %2778 = vrot.lane.b32.xlu0 %v2652, 40
      %v2779 = vpop.permute.xlu0 %2778
      %2780 = vrot.lane.b32.xlu0 %v2655, 40
      %v2781 = vpop.permute.xlu0 %2780
      %2782 = vrot.lane.b32.xlu0 %v2658, 40
      %v2783 = vpop.permute.xlu0 %2782
      %2784 = vrot.lane.b32.xlu0 %v2661, 40
      %v2785 = vpop.permute.xlu0 %2784
      %2786 = vrot.lane.b32.xlu0 %v2664, 40
      %v2787 = vpop.permute.xlu0 %2786
      %2788 = vrot.lane.b32.xlu0 %v2667, 40
      %v2789 = vpop.permute.xlu0 %2788
      %2790 = vrot.lane.b32.xlu0 %v2670, 40
      %v2791 = vpop.permute.xlu0 %2790
      %2792 = vrot.lane.b32.xlu0 %v2777, 40
      %v2793 = vpop.permute.xlu0 %2792
      %vm2802 = vcmask 392512
      %2803 = vst.msk [vmem:[#allocation6] sm:$0xff] %vm2802, %v2779
      %2804 = vst.msk [vmem:[#allocation6 + $0x8] sm:$0xff] %vm2802, %v2781
      %2805 = vst.msk [vmem:[#allocation6 + $0x10] sm:$0xff] %vm2802, %v2783
      %2806 = vst.msk [vmem:[#allocation6 + $0x18] sm:$0xff] %vm2802, %v2785
      %2807 = vst.msk [vmem:[#allocation6 + $0x20] sm:$0xff] %vm2802, %v2787
      %2808 = vst.msk [vmem:[#allocation6 + $0x28] sm:$0xff] %vm2802, %v2789
      %2809 = vst.msk [vmem:[#allocation6 + $0x30] sm:$0xff] %vm2802, %v2791
      %2810 = vst.msk [vmem:[#allocation6 + $0x38] sm:$0xff] %vm2802, %v2793
      %2812 = vrot.lane.b32.xlu0 %v2550, 48
      %v2813 = vpop.permute.xlu0 %2812
      %2814 = vrot.lane.b32.xlu0 %v2552, 48
      %v2815 = vpop.permute.xlu0 %2814
      %2816 = vrot.lane.b32.xlu0 %v2554, 48
      %v2817 = vpop.permute.xlu0 %2816
      %2818 = vrot.lane.b32.xlu0 %v2556, 48
      %v2819 = vpop.permute.xlu0 %2818
      %2820 = vrot.lane.b32.xlu0 %v2558, 48
      %v2821 = vpop.permute.xlu0 %2820
      %2822 = vrot.lane.b32.xlu0 %v2560, 48
      %v2823 = vpop.permute.xlu0 %2822
      %2824 = vrot.lane.b32.xlu0 %v2562, 48
      %v2825 = vpop.permute.xlu0 %2824
      %2826 = vrot.lane.b32.xlu0 %v2564, 48
      %v2827 = vpop.permute.xlu0 %2826
      %vm2836 = vcmask 458112
      %2837 = vst.msk [vmem:[#allocation6] sm:$0xff] %vm2836, %v2813
      %2838 = vst.msk [vmem:[#allocation6 + $0x8] sm:$0xff] %vm2836, %v2815
      %2839 = vst.msk [vmem:[#allocation6 + $0x10] sm:$0xff] %vm2836, %v2817
      %2840 = vst.msk [vmem:[#allocation6 + $0x18] sm:$0xff] %vm2836, %v2819
      %2841 = vst.msk [vmem:[#allocation6 + $0x20] sm:$0xff] %vm2836, %v2821
      %2842 = vst.msk [vmem:[#allocation6 + $0x28] sm:$0xff] %vm2836, %v2823
      %2843 = vst.msk [vmem:[#allocation6 + $0x30] sm:$0xff] %vm2836, %v2825
      %2844 = vst.msk [vmem:[#allocation6 + $0x38] sm:$0xff] %vm2836, %v2827
      %v2846 = vrot.slane %v2564, 1
      %v2847 = vrot.slane %v2565, 1
      %v2848 = vsel %vm640, %v2846, %v2847
      %2849 = vrot.lane.b32.xlu0 %v2598, 56
      %v2850 = vpop.permute.xlu0 %2849
      %2851 = vrot.lane.b32.xlu0 %v2601, 56
      %v2852 = vpop.permute.xlu0 %2851
      %2853 = vrot.lane.b32.xlu0 %v2604, 56
      %v2854 = vpop.permute.xlu0 %2853
      %2855 = vrot.lane.b32.xlu0 %v2607, 56
      %v2856 = vpop.permute.xlu0 %2855
      %2857 = vrot.lane.b32.xlu0 %v2610, 56
      %v2858 = vpop.permute.xlu0 %2857
      %2859 = vrot.lane.b32.xlu0 %v2613, 56
      %v2860 = vpop.permute.xlu0 %2859
      %2861 = vrot.lane.b32.xlu0 %v2741, 56
      %v2862 = vpop.permute.xlu0 %2861
      %2863 = vrot.lane.b32.xlu0 %v2848, 56
      %v2864 = vpop.permute.xlu0 %2863
      %vm2873 = vcmask 523712
      %2874 = vst.msk [vmem:[#allocation6] sm:$0xff] %vm2873, %v2850
      %2875 = vst.msk [vmem:[#allocation6 + $0x8] sm:$0xff] %vm2873, %v2852
      %2876 = vst.msk [vmem:[#allocation6 + $0x10] sm:$0xff] %vm2873, %v2854
      %2877 = vst.msk [vmem:[#allocation6 + $0x18] sm:$0xff] %vm2873, %v2856
      %2878 = vst.msk [vmem:[#allocation6 + $0x20] sm:$0xff] %vm2873, %v2858
      %2879 = vst.msk [vmem:[#allocation6 + $0x28] sm:$0xff] %vm2873, %v2860
      %2880 = vst.msk [vmem:[#allocation6 + $0x30] sm:$0xff] %vm2873, %v2862
      %2881 = vst.msk [vmem:[#allocation6 + $0x38] sm:$0xff] %vm2873, %v2864
      %v2882 = vrot.slane %v2564, 2
      %v2883 = vrot.slane %v2565, 2
      %v2884 = vsel %vm850, %v2882, %v2883
      %2885 = vrot.lane.b32.xlu0 %v2655, 64
      %v2886 = vpop.permute.xlu0 %2885
      %2887 = vrot.lane.b32.xlu0 %v2658, 64
      %v2888 = vpop.permute.xlu0 %2887
      %2889 = vrot.lane.b32.xlu0 %v2661, 64
      %v2890 = vpop.permute.xlu0 %2889
      %2891 = vrot.lane.b32.xlu0 %v2664, 64
      %v2892 = vpop.permute.xlu0 %2891
      %2893 = vrot.lane.b32.xlu0 %v2667, 64
      %v2894 = vpop.permute.xlu0 %2893
      %2895 = vrot.lane.b32.xlu0 %v2670, 64
      %v2896 = vpop.permute.xlu0 %2895
      %2897 = vrot.lane.b32.xlu0 %v2777, 64
      %v2898 = vpop.permute.xlu0 %2897
      %2899 = vrot.lane.b32.xlu0 %v2884, 64
      %v2900 = vpop.permute.xlu0 %2899
      %vm2909 = vcmask 589312
      %2910 = vst.msk [vmem:[#allocation6] sm:$0xff] %vm2909, %v2886
      %2911 = vst.msk [vmem:[#allocation6 + $0x8] sm:$0xff] %vm2909, %v2888
      %2912 = vst.msk [vmem:[#allocation6 + $0x10] sm:$0xff] %vm2909, %v2890
      %2913 = vst.msk [vmem:[#allocation6 + $0x18] sm:$0xff] %vm2909, %v2892
      %2914 = vst.msk [vmem:[#allocation6 + $0x20] sm:$0xff] %vm2909, %v2894
      %2915 = vst.msk [vmem:[#allocation6 + $0x28] sm:$0xff] %vm2909, %v2896
      %2916 = vst.msk [vmem:[#allocation6 + $0x30] sm:$0xff] %vm2909, %v2898
      %2917 = vst.msk [vmem:[#allocation6 + $0x38] sm:$0xff] %vm2909, %v2900
      %v2918 = vld [vmem:[#allocation6] sm:$0xff]
      %v2919 = vld [vmem:[#allocation6 + $0x8] sm:$0xff]
      %v2920 = vld [vmem:[#allocation6 + $0x10] sm:$0xff]
      %v2921 = vld [vmem:[#allocation6 + $0x18] sm:$0xff]
      %v2922 = vld [vmem:[#allocation6 + $0x20] sm:$0xff]
      %v2923 = vld [vmem:[#allocation6 + $0x28] sm:$0xff]
      %v2924 = vld [vmem:[#allocation6 + $0x30] sm:$0xff]
      %v2925 = vld [vmem:[#allocation6 + $0x38] sm:$0xff]
      %v2926 = vld [vmem:[%s4] sm:$0xff]
      %v2927 = vld [vmem:[%s4 + $0x8] sm:$0xff]
      %v2928 = vld [vmem:[%s4 + $0x10] sm:$0xff]
      %v2929 = vld [vmem:[%s4 + $0x18] sm:$0xff]
      %v2930 = vld [vmem:[%s4 + $0x20] sm:$0xff]
      %v2931 = vld [vmem:[%s4 + $0x28] sm:$0xff]
      %v2932 = vld [vmem:[%s4 + $0x30] sm:$0xff]
      %v2933 = vld [vmem:[%s4 + $0x38] sm:$0xff]
      %v2934 = vld [vmem:[%s4 + $0x40] sm:$0xff]
      %vm2935 = vcmask 588800
      %v2937 = vsel %vm2935, %v2918, 0
      %v2940 = vsel %vm2935, %v2919, 0
      %v2943 = vsel %vm2935, %v2920, 0
      %v2946 = vsel %vm2935, %v2921, 0
      %v2949 = vsel %vm2935, %v2922, 0
      %v2952 = vsel %vm2935, %v2923, 0
      %v2955 = vsel %vm2935, %v2924, 0
      %v2958 = vsel %vm2935, %v2925, 0
      %2960 = vmatprep.subr.mxu0 0.0
      %2961 = vmatpush1.msra.mxu0 0.0
      %2962 = vmatprep.subr.mxu0 0.0
      %2963 = vmatpush1.msra.mxu0 0.0
      %2964 = vmatprep.subr.mxu0 0.0
      %2965 = vmatpush1.msra.mxu0 0.0
      %2966 = vmatprep.subr.mxu0 0.0
      %2967 = vmatpush1.msra.mxu0 0.0
      %2968 = vmatprep.subr.mxu0 0.0
      %2969 = vmatpush1.msra.mxu0 0.0
      %2970 = vmatprep.subr.mxu0 0.0
      %2971 = vmatpush1.msra.mxu0 0.0
      %2972 = vmatprep.subr.mxu0 0.0
      %2973 = vmatpush1.msra.mxu0 0.0
      %2974 = vmatprep.subr.mxu0 0.0
      %2975 = vmatpush1.msra.mxu0 %v2934
      %2976 = vmatprep.subr.mxu0 0.0
      %2977 = vmatpush1.msra.mxu0 %v2933
      %2978 = vmatprep.subr.mxu0 0.0
      %2979 = vmatpush1.msra.mxu0 %v2932
      %2980 = vmatprep.subr.mxu0 0.0
      %2981 = vmatpush1.msra.mxu0 %v2931
      %2982 = vmatprep.subr.mxu0 0.0
      %2983 = vmatpush1.msra.mxu0 %v2930
      %2984 = vmatprep.subr.mxu0 0.0
      %2985 = vmatpush1.msra.mxu0 %v2929
      %2986 = vmatprep.subr.mxu0 0.0
      %2987 = vmatpush1.msra.mxu0 %v2928
      %2988 = vmatprep.subr.mxu0 0.0
      %2989 = vmatpush1.msra.mxu0 %v2927
      %2990 = vmatprep.subr.mxu0 0.0
      %2991 = vmatpush1.msra.mxu0 %v2926
      %2992 = vmatprep.subr.mxu0 0.0
      %2993 = vmatpush2.msra.mxu0 0.0
      %2994 = vmatprep.subr.mxu0 0.0
      %2995 = vmatpush2.msra.mxu0 0.0
      %2996 = vmatprep.subr.mxu0 0.0
      %2997 = vmatpush2.msra.mxu0 0.0
      %2998 = vmatprep.subr.mxu0 0.0
      %2999 = vmatpush2.msra.mxu0 0.0
      %3000 = vmatprep.subr.mxu0 0.0
      %3001 = vmatpush2.msra.mxu0 0.0
      %3002 = vmatprep.subr.mxu0 0.0
      %3003 = vmatpush2.msra.mxu0 0.0
      %3004 = vmatprep.subr.mxu0 0.0
      %3005 = vmatpush2.msra.mxu0 0.0
      %3006 = vmatprep.subr.mxu0 0.0
      %3007 = vmatpush2.msra.mxu0 0.0
      %3008 = vmatprep.subr.mxu0 0.0
      %3009 = vmatpush2.msra.mxu0 0.0
      %3010 = vmatprep.subr.mxu0 0.0
      %3011 = vmatpush2.msra.mxu0 0.0
      %3012 = vmatprep.subr.mxu0 0.0
      %3013 = vmatpush2.msra.mxu0 0.0
      %3014 = vmatprep.subr.mxu0 0.0
      %3015 = vmatpush2.msra.mxu0 0.0
      %3016 = vmatprep.subr.mxu0 0.0
      %3017 = vmatpush2.msra.mxu0 0.0
      %3018 = vmatprep.subr.mxu0 0.0
      %3019 = vmatpush2.msra.mxu0 0.0
      %3020 = vmatprep.subr.mxu0 0.0
      %3021 = vmatpush2.msra.mxu0 0.0
      %3022 = vmatprep.subr.mxu0 0.0
      %3023 = vmatpush2.msra.mxu0 0.0
      %3024 = vmatprep.mubr.f32.mxu0 0.0
      %3025 = vmatmul.mubr.f32.gmra.mxu0 %v2937
      %v3026 = vpop.f32.mrf.mxu0
      %v3027 = vadd.f32 0.0, %v3026
      %v3028 = vpop.f32.mrf.mxu0
      %3029 = vmatprep.mubr.f32.mxu0 0.0
      %3030 = vmatmul.mubr.f32.gmra.mxu0 %v2940
      %v3031 = vpop.f32.mrf.mxu0
      %v3032 = vadd.f32 0.0, %v3031
      %v3033 = vpop.f32.mrf.mxu0
      %3034 = vmatprep.mubr.f32.mxu0 0.0
      %3035 = vmatmul.mubr.f32.gmra.mxu0 %v2943
      %v3036 = vpop.f32.mrf.mxu0
      %v3037 = vadd.f32 0.0, %v3036
      %v3038 = vpop.f32.mrf.mxu0
      %3039 = vmatprep.mubr.f32.mxu0 0.0
      %3040 = vmatmul.mubr.f32.gmra.mxu0 %v2946
      %v3041 = vpop.f32.mrf.mxu0
      %v3042 = vadd.f32 0.0, %v3041
      %v3043 = vpop.f32.mrf.mxu0
      %3044 = vmatprep.mubr.f32.mxu0 0.0
      %3045 = vmatmul.mubr.f32.gmra.mxu0 %v2949
      %v3046 = vpop.f32.mrf.mxu0
      %v3047 = vadd.f32 0.0, %v3046
      %v3048 = vpop.f32.mrf.mxu0
      %3049 = vmatprep.mubr.f32.mxu0 0.0
      %3050 = vmatmul.mubr.f32.gmra.mxu0 %v2952
      %v3051 = vpop.f32.mrf.mxu0
      %v3052 = vadd.f32 0.0, %v3051
      %v3053 = vpop.f32.mrf.mxu0
      %3054 = vmatprep.mubr.f32.mxu0 0.0
      %3055 = vmatmul.mubr.f32.gmra.mxu0 %v2955
      %v3056 = vpop.f32.mrf.mxu0
      %v3057 = vadd.f32 0.0, %v3056
      %v3058 = vpop.f32.mrf.mxu0
      %3059 = vmatprep.mubr.f32.mxu0 0.0
      %3060 = vmatmul.mubr.f32.gmra.mxu0 %v2958
      %v3061 = vpop.f32.mrf.mxu0
      %v3062 = vadd.f32 0.0, %v3061
      %v3063 = vpop.f32.mrf.mxu0
      %3064 = vdwg.mxu0
      %v3065 = vld [vmem:[%s5] sm:$0x1]
      %v3067 = vlaneseq
      %v3068 = vshrl.u32 %v3067, 7
      %v3069 = vsub.s32 0, %v3068
      %v3070 = vrot.slane %v3065, %v3069
      %v3072 = vmul.f32 %v3027, %v3070
      %v3073 = vmul.f32 %v3032, %v3070
      %v3074 = vmul.f32 %v3037, %v3070
      %v3075 = vmul.f32 %v3042, %v3070
      %v3076 = vmul.f32 %v3047, %v3070
      %v3077 = vmul.f32 %v3052, %v3070
      %v3078 = vmul.f32 %v3057, %v3070
      %v3079 = vmul.f32 %v3062, %v3070
      %v3080 = vld [vmem:[%s6] sm:$0x1]
      %v3082 = vlaneseq
      %v3083 = vshrl.u32 %v3082, 7
      %v3084 = vsub.s32 0, %v3083
      %v3085 = vrot.slane %v3080, %v3084
      %v3087 = vadd.f32 %v3072, %v3085
      %v3088 = vadd.f32 %v3073, %v3085
      %v3089 = vadd.f32 %v3074, %v3085
      %v3090 = vadd.f32 %v3075, %v3085
      %v3091 = vadd.f32 %v3076, %v3085
      %v3092 = vadd.f32 %v3077, %v3085
      %v3093 = vadd.f32 %v3078, %v3085
      %v3094 = vadd.f32 %v3079, %v3085
      %vm3095 = vcmp.gt.f32.partialorder %v3087, 0.0
      %vm3096 = vcmp.gt.f32.partialorder %v3088, 0.0
      %vm3097 = vcmp.gt.f32.partialorder %v3089, 0.0
      %vm3098 = vcmp.gt.f32.partialorder %v3090, 0.0
      %vm3099 = vcmp.gt.f32.partialorder %v3091, 0.0
      %vm3100 = vcmp.gt.f32.partialorder %v3092, 0.0
      %vm3101 = vcmp.gt.f32.partialorder %v3093, 0.0
      %vm3102 = vcmp.gt.f32.partialorder %v3094, 0.0
      %v3103 = vmul.f32 %v3087, 0.01
      %v3104 = vmul.f32 %v3088, 0.01
      %v3105 = vmul.f32 %v3089, 0.01
      %v3106 = vmul.f32 %v3090, 0.01
      %v3107 = vmul.f32 %v3091, 0.01
      %v3108 = vmul.f32 %v3092, 0.01
      %v3109 = vmul.f32 %v3093, 0.01
      %v3110 = vmul.f32 %v3094, 0.01
      %v3111 = vsel %vm3095, %v3087, %v3103
      %v3112 = vsel %vm3096, %v3088, %v3104
      %v3113 = vsel %vm3097, %v3089, %v3105
      %v3114 = vsel %vm3098, %v3090, %v3106
      %v3115 = vsel %vm3099, %v3091, %v3107
      %v3116 = vsel %vm3100, %v3092, %v3108
      %v3117 = vsel %vm3101, %v3093, %v3109
      %v3118 = vsel %vm3102, %v3094, %v3110
      %3119 = vst.msk [vmem:[#allocation7] sm:$0xff] %vm2396, %v3111
      %3120 = vst.msk [vmem:[#allocation7 + $0x8] sm:$0xff] %vm2396, %v3112
      %3121 = vst.msk [vmem:[#allocation7 + $0x10] sm:$0xff] %vm2396, %v3113
      %3122 = vst.msk [vmem:[#allocation7 + $0x18] sm:$0xff] %vm2396, %v3114
      %3123 = vst.msk [vmem:[#allocation7 + $0x20] sm:$0xff] %vm2396, %v3115
      %3124 = vst.msk [vmem:[#allocation7 + $0x28] sm:$0xff] %vm2396, %v3116
      %3125 = vst.msk [vmem:[#allocation7 + $0x30] sm:$0xff] %vm2396, %v3117
      %3126 = vst.msk [vmem:[#allocation7 + $0x38] sm:$0xff] %vm2396, %v3118
      %v3127 = vld [vmem:[#allocation7] ss:$2 sm:$0xf]
      %s3128 = scalar_lea.vmem [#allocation7], 16
      %v3129 = vld [vmem:[%s3128] ss:$2 sm:$0xf]
      %s3130 = scalar_lea.vmem [#allocation7], 32
      %v3131 = vld [vmem:[%s3130] ss:$2 sm:$0xf]
      %s3132 = scalar_lea.vmem [#allocation7], 48
      %v3133 = vld [vmem:[%s3132] ss:$2 sm:$0xf]
      %s3134 = scalar_lea.vmem [#allocation7], 1
      %v3135 = vld [vmem:[%s3134] ss:$2 sm:$0xf]
      %s3136 = scalar_lea.vmem [#allocation7], 17
      %v3137 = vld [vmem:[%s3136] ss:$2 sm:$0xf]
      %s3138 = scalar_lea.vmem [#allocation7], 33
      %v3139 = vld [vmem:[%s3138] ss:$2 sm:$0xf]
      %s3140 = scalar_lea.vmem [#allocation7], 49
      %v3141 = vld [vmem:[%s3140] ss:$2 sm:$0xf]
      %s3142 = scalar_lea.vmem [#allocation7], 8
      %v3143 = vld [vmem:[%s3142] ss:$2 sm:$0xf]
      %s3144 = scalar_lea.vmem %s3142, 16 [#allocation7]
      %v3145 = vld [vmem:[%s3144] ss:$2 sm:$0xf]
      %s3146 = scalar_lea.vmem %s3142, 32 [#allocation7]
      %v3147 = vld [vmem:[%s3146] ss:$2 sm:$0xf]
      %s3148 = scalar_lea.vmem %s3142, 48 [#allocation7]
      %v3149 = vld [vmem:[%s3148] ss:$2 sm:$0xf]
      %s3150 = scalar_lea.vmem %s3142, 1 [#allocation7]
      %v3151 = vld [vmem:[%s3150] ss:$2 sm:$0xf]
      %s3152 = scalar_lea.vmem %s3142, 17 [#allocation7]
      %v3153 = vld [vmem:[%s3152] ss:$2 sm:$0xf]
      %s3154 = scalar_lea.vmem %s3142, 33 [#allocation7]
      %v3155 = vld [vmem:[%s3154] ss:$2 sm:$0xf]
      %s3156 = scalar_lea.vmem %s3142, 49 [#allocation7]
      %v3157 = vld [vmem:[%s3156] ss:$2 sm:$0xf]
      %v3158 = vmax.f32 %v3127, %v3135
      %v3159 = vmax.f32 %v3129, %v3137
      %v3160 = vmax.f32 %v3131, %v3139
      %v3161 = vmax.f32 %v3133, %v3141
      %v3162 = vmax.f32 %v3143, %v3151
      %v3163 = vmax.f32 %v3145, %v3153
      %v3164 = vmax.f32 %v3147, %v3155
      %v3165 = vmax.f32 %v3149, %v3157
      %v3166 = vmax.f32 %v3158, %v3162
      %v3167 = vmax.f32 %v3159, %v3163
      %v3168 = vmax.f32 %v3160, %v3164
      %v3169 = vmax.f32 %v3161, %v3165
      %vm3170 = vcmask 57344
      %3171 = vst.msk [vmem:[#allocation8] sm:$0x1] %vm3170, %v3166
      %3173 = vrot.lane.b32.xlu0 %v3166, 8
      %v3174 = vpop.permute.xlu0 %3173
      %vm3176 = vcmask 123969
      %3177 = vst.msk [vmem:[#allocation8 - $0x1] sm:$0x2] %vm3176, %v3174
      %3178 = vrot.lane.b32.xlu0 %v3166, 16
      %v3179 = vpop.permute.xlu0 %3178
      %vm3181 = vcmask 190594
      %3182 = vst.msk [vmem:[#allocation8 - $0x2] sm:$0x4] %vm3181, %v3179
      %3183 = vrot.lane.b32.xlu0 %v3166, 24
      %v3184 = vpop.permute.xlu0 %3183
      %vm3186 = vcmask 257219
      %3187 = vst.msk [vmem:[#allocation8 - $0x3] sm:$0x8] %vm3186, %v3184
      %3189 = vrot.lane.b32.xlu0 %v3167, 32
      %v3190 = vpop.permute.xlu0 %3189
      %vm3192 = vcmask 319744
      %3193 = vst.msk [vmem:[#allocation8] sm:$0x1] %vm3192, %v3190
      %3194 = vrot.lane.b32.xlu0 %v3167, 40
      %v3195 = vpop.permute.xlu0 %3194
      %vm3197 = vcmask 386369
      %3198 = vst.msk [vmem:[#allocation8 - $0x1] sm:$0x2] %vm3197, %v3195
      %3199 = vrot.lane.b32.xlu0 %v3167, 48
      %v3200 = vpop.permute.xlu0 %3199
      %vm3202 = vcmask 452994
      %3203 = vst.msk [vmem:[#allocation8 - $0x2] sm:$0x4] %vm3202, %v3200
      %3204 = vrot.lane.b32.xlu0 %v3167, 56
      %v3205 = vpop.permute.xlu0 %3204
      %vm3207 = vcmask 519619
      %3208 = vst.msk [vmem:[#allocation8 - $0x3] sm:$0x8] %vm3207, %v3205
      %3210 = vrot.lane.b32.xlu0 %v3168, 64
      %v3211 = vpop.permute.xlu0 %3210
      %vm3213 = vcmask 582144
      %3214 = vst.msk [vmem:[#allocation8] sm:$0x1] %vm3213, %v3211
      %3215 = vrot.lane.b32.xlu0 %v3168, 72
      %v3216 = vpop.permute.xlu0 %3215
      %vm3218 = vcmask 648769
      %3219 = vst.msk [vmem:[#allocation8 - $0x1] sm:$0x2] %vm3218, %v3216
      %3220 = vrot.lane.b32.xlu0 %v3168, 80
      %v3221 = vpop.permute.xlu0 %3220
      %vm3223 = vcmask 715394
      %3224 = vst.msk [vmem:[#allocation8 - $0x2] sm:$0x4] %vm3223, %v3221
      %3225 = vrot.lane.b32.xlu0 %v3168, 88
      %v3226 = vpop.permute.xlu0 %3225
      %vm3228 = vcmask 782019
      %3229 = vst.msk [vmem:[#allocation8 - $0x3] sm:$0x8] %vm3228, %v3226
      %3231 = vrot.lane.b32.xlu0 %v3169, 96
      %v3232 = vpop.permute.xlu0 %3231
      %vm3234 = vcmask 844544
      %3235 = vst.msk [vmem:[#allocation8] sm:$0x1] %vm3234, %v3232
      %3236 = vrot.lane.b32.xlu0 %v3169, 104
      %v3237 = vpop.permute.xlu0 %3236
      %vm3239 = vcmask 911169
      %3240 = vst.msk [vmem:[#allocation8 - $0x1] sm:$0x2] %vm3239, %v3237
      %3241 = vrot.lane.b32.xlu0 %v3169, 112
      %v3242 = vpop.permute.xlu0 %3241
      %vm3244 = vcmask 977794
      %3245 = vst.msk [vmem:[#allocation8 - $0x2] sm:$0x4] %vm3244, %v3242
      %3246 = vrot.lane.b32.xlu0 %v3169, 120
      %v3247 = vpop.permute.xlu0 %3246
      %vm3249 = vcmask 1044419
      %3250 = vst.msk [vmem:[#allocation8 - $0x3] sm:$0x8] %vm3249, %v3247
      %v3251 = vld [vmem:[#allocation8] sm:$0x1]
      %v3252 = vld [vmem:[%s7] sm:$0xff]
      %v3253 = vld [vmem:[%s7 + $0x8] sm:$0xff]
      %v3254 = vld [vmem:[%s7 + $0x10] sm:$0xff]
      %v3255 = vld [vmem:[%s7 + $0x18] sm:$0xff]
      %v3256 = vld [vmem:[%s7 + $0x20] sm:$0xff]
      %v3257 = vld [vmem:[%s7 + $0x28] sm:$0xff]
      %v3258 = vld [vmem:[%s7 + $0x30] sm:$0xff]
      %v3259 = vld [vmem:[%s7 + $0x38] sm:$0xff]
      %v3260 = vld [vmem:[%s7 + $0x40] sm:$0xff]
      %v3261 = vld [vmem:[%s7 + $0x48] sm:$0xff]
      %v3262 = vld [vmem:[%s7 + $0x50] sm:$0xff]
      %v3263 = vld [vmem:[%s7 + $0x58] sm:$0xff]
      %v3264 = vld [vmem:[%s7 + $0x60] sm:$0xff]
      %v3265 = vld [vmem:[%s7 + $0x68] sm:$0xff]
      %v3266 = vld [vmem:[%s7 + $0x70] sm:$0xff]
      %v3267 = vld [vmem:[%s7 + $0x78] sm:$0xff]
      %v3268 = vld [vmem:[%s8] sm:$0x1]
      %3269 = vmatprep.subr.mxu0 0.0
      %3270 = vmatpush1.msra.mxu0 %v3267
      %3271 = vmatprep.subr.mxu0 0.0
      %3272 = vmatpush1.msra.mxu0 %v3266
      %3273 = vmatprep.subr.mxu0 0.0
      %3274 = vmatpush1.msra.mxu0 %v3265
      %3275 = vmatprep.subr.mxu0 0.0
      %3276 = vmatpush1.msra.mxu0 %v3264
      %3277 = vmatprep.subr.mxu0 0.0
      %3278 = vmatpush1.msra.mxu0 %v3263
      %3279 = vmatprep.subr.mxu0 0.0
      %3280 = vmatpush1.msra.mxu0 %v3262
      %3281 = vmatprep.subr.mxu0 0.0
      %3282 = vmatpush1.msra.mxu0 %v3261
      %3283 = vmatprep.subr.mxu0 0.0
      %3284 = vmatpush1.msra.mxu0 %v3260
      %3285 = vmatprep.subr.mxu0 0.0
      %3286 = vmatpush1.msra.mxu0 %v3259
      %3287 = vmatprep.subr.mxu0 0.0
      %3288 = vmatpush1.msra.mxu0 %v3258
      %3289 = vmatprep.subr.mxu0 0.0
      %3290 = vmatpush1.msra.mxu0 %v3257
      %3291 = vmatprep.subr.mxu0 0.0
      %3292 = vmatpush1.msra.mxu0 %v3256
      %3293 = vmatprep.subr.mxu0 0.0
      %3294 = vmatpush1.msra.mxu0 %v3255
      %3295 = vmatprep.subr.mxu0 0.0
      %3296 = vmatpush1.msra.mxu0 %v3254
      %3297 = vmatprep.subr.mxu0 0.0
      %3298 = vmatpush1.msra.mxu0 %v3253
      %3299 = vmatprep.subr.mxu0 0.0
      %3300 = vmatpush1.msra.mxu0 %v3252
      %3301 = vmatprep.subr.mxu0 0.0
      %3302 = vmatpush2.msra.mxu0 0.0
      %3303 = vmatprep.subr.mxu0 0.0
      %3304 = vmatpush2.msra.mxu0 0.0
      %3305 = vmatprep.subr.mxu0 0.0
      %3306 = vmatpush2.msra.mxu0 0.0
      %3307 = vmatprep.subr.mxu0 0.0
      %3308 = vmatpush2.msra.mxu0 0.0
      %3309 = vmatprep.subr.mxu0 0.0
      %3310 = vmatpush2.msra.mxu0 0.0
      %3311 = vmatprep.subr.mxu0 0.0
      %3312 = vmatpush2.msra.mxu0 0.0
      %3313 = vmatprep.subr.mxu0 0.0
      %3314 = vmatpush2.msra.mxu0 0.0
      %3315 = vmatprep.subr.mxu0 0.0
      %3316 = vmatpush2.msra.mxu0 0.0
      %3317 = vmatprep.subr.mxu0 0.0
      %3318 = vmatpush2.msra.mxu0 0.0
      %3319 = vmatprep.subr.mxu0 0.0
      %3320 = vmatpush2.msra.mxu0 0.0
      %3321 = vmatprep.subr.mxu0 0.0
      %3322 = vmatpush2.msra.mxu0 0.0
      %3323 = vmatprep.subr.mxu0 0.0
      %3324 = vmatpush2.msra.mxu0 0.0
      %3325 = vmatprep.subr.mxu0 0.0
      %3326 = vmatpush2.msra.mxu0 0.0
      %3327 = vmatprep.subr.mxu0 0.0
      %3328 = vmatpush2.msra.mxu0 0.0
      %3329 = vmatprep.subr.mxu0 0.0
      %3330 = vmatpush2.msra.mxu0 0.0
      %3331 = vmatprep.subr.mxu0 0.0
      %3332 = vmatpush2.msra.mxu0 0.0
      %3333 = vmatprep.mubr.f32.mxu0 0.0
      %3334 = vmatmul.mubr.f32.gmra.mxu0 %v3251
      %v3335 = vpop.f32.mrf.mxu0
      %v3336 = vadd.f32 %v3268, %v3335
      %v3337 = vpop.f32.mrf.mxu0
      %3338 = vdwg.mxu0
      %vm3339 = vcmp.gt.f32.partialorder %v3336, 0.0
      %v3340 = vmul.f32 %v3336, 0.01
      %v3341 = vsel %vm3339, %v3336, %v3340
      %v3342 = vld [vmem:[%s9] sm:$0xff]
      %v3343 = vld [vmem:[%s9 + $0x8] sm:$0xff]
      %v3344 = vld [vmem:[%s9 + $0x10] sm:$0xff]
      %v3345 = vld [vmem:[%s9 + $0x18] sm:$0xff]
      %v3346 = vld [vmem:[#allocation9] sm:$0x1]
      %vm3347 = vcmask 261120
      %v3349 = vsel %vm3347, %v3341, 0
      %3351 = vmatprep.subr.mxu0 0.0
      %3352 = vmatpush1.msra.mxu0 0.0
      %3353 = vmatprep.subr.mxu0 0.0
      %3354 = vmatpush1.msra.mxu0 0.0
      %3355 = vmatprep.subr.mxu0 0.0
      %3356 = vmatpush1.msra.mxu0 0.0
      %3357 = vmatprep.subr.mxu0 0.0
      %3358 = vmatpush1.msra.mxu0 0.0
      %3359 = vmatprep.subr.mxu0 0.0
      %3360 = vmatpush1.msra.mxu0 0.0
      %3361 = vmatprep.subr.mxu0 0.0
      %3362 = vmatpush1.msra.mxu0 0.0
      %3363 = vmatprep.subr.mxu0 0.0
      %3364 = vmatpush1.msra.mxu0 0.0
      %3365 = vmatprep.subr.mxu0 0.0
      %3366 = vmatpush1.msra.mxu0 0.0
      %3367 = vmatprep.subr.mxu0 0.0
      %3368 = vmatpush1.msra.mxu0 0.0
      %3369 = vmatprep.subr.mxu0 0.0
      %3370 = vmatpush1.msra.mxu0 0.0
      %3371 = vmatprep.subr.mxu0 0.0
      %3372 = vmatpush1.msra.mxu0 0.0
      %3373 = vmatprep.subr.mxu0 0.0
      %3374 = vmatpush1.msra.mxu0 0.0
      %3375 = vmatprep.subr.mxu0 0.0
      %3376 = vmatpush1.msra.mxu0 %v3345
      %3377 = vmatprep.subr.mxu0 0.0
      %3378 = vmatpush1.msra.mxu0 %v3344
      %3379 = vmatprep.subr.mxu0 0.0
      %3380 = vmatpush1.msra.mxu0 %v3343
      %3381 = vmatprep.subr.mxu0 0.0
      %3382 = vmatpush1.msra.mxu0 %v3342
      %3383 = vmatprep.subr.mxu0 0.0
      %3384 = vmatpush2.msra.mxu0 0.0
      %3385 = vmatprep.subr.mxu0 0.0
      %3386 = vmatpush2.msra.mxu0 0.0
      %3387 = vmatprep.subr.mxu0 0.0
      %3388 = vmatpush2.msra.mxu0 0.0
      %3389 = vmatprep.subr.mxu0 0.0
      %3390 = vmatpush2.msra.mxu0 0.0
      %3391 = vmatprep.subr.mxu0 0.0
      %3392 = vmatpush2.msra.mxu0 0.0
      %3393 = vmatprep.subr.mxu0 0.0
      %3394 = vmatpush2.msra.mxu0 0.0
      %3395 = vmatprep.subr.mxu0 0.0
      %3396 = vmatpush2.msra.mxu0 0.0
      %3397 = vmatprep.subr.mxu0 0.0
      %3398 = vmatpush2.msra.mxu0 0.0
      %3399 = vmatprep.subr.mxu0 0.0
      %3400 = vmatpush2.msra.mxu0 0.0
      %3401 = vmatprep.subr.mxu0 0.0
      %3402 = vmatpush2.msra.mxu0 0.0
      %3403 = vmatprep.subr.mxu0 0.0
      %3404 = vmatpush2.msra.mxu0 0.0
      %3405 = vmatprep.subr.mxu0 0.0
      %3406 = vmatpush2.msra.mxu0 0.0
      %3407 = vmatprep.subr.mxu0 0.0
      %3408 = vmatpush2.msra.mxu0 0.0
      %3409 = vmatprep.subr.mxu0 0.0
      %3410 = vmatpush2.msra.mxu0 0.0
      %3411 = vmatprep.subr.mxu0 0.0
      %3412 = vmatpush2.msra.mxu0 0.0
      %3413 = vmatprep.subr.mxu0 0.0
      %3414 = vmatpush2.msra.mxu0 0.0
      %3415 = vmatprep.mubr.f32.mxu0 0.0
      %3416 = vmatmul.mubr.f32.gmra.mxu0 %v3349
      %v3417 = vpop.f32.mrf.mxu0
      %v3418 = vadd.f32 %v3346, %v3417
      %v3419 = vpop.f32.mrf.mxu0
      %3420 = vdwg.mxu0
      %v3421 = vsub.f32 0.0, %v3418
      %v3422 = vmul.f32 %v3421, 1.442695
      %v3423 = vpow.pop %v3422
      %v3424 = vadd.f32 %v3423, 1.0
      %v3425 = vrcp.pop %v3424
      %v3426 = vmul.f32 1.0, %v3425
      %vm3427 = vcmask 0
      %3428 = vst.msk [vmem:[%s384] sm:$0x1] %vm3427, %v3426
      %p3429 = scmp.lt.s32.totalorder %s24, 1
      %s3430 = scalar_select %p3429, %s24, 1
      %s3431 = scalar_lea.vmem %s11, %s3430
      // Predicated region
      $region65: #{tpu_custom_call.1} parent=63 // pred_check
        %p3432 = pneg %p278
      $region66: #{tpu_custom_call.1} parent=63 // pred_check_branch
        %3434 = sbr.rel (%p3432) target = $region68
      $region67: #{tpu_custom_call.1} parent=63 // pred_region
        _
      $region68: #{tpu_custom_call.1} parent=63 // pred_fallthru
        _
    $region64: #{tpu_custom_call.1} parent=5 // pred_fallthru
      _
    %p3435 = scmp.le.s32.totalorder 2, %s19
    // Predicated region
    $region69: #{tpu_custom_call.1} parent=5 // pred_check
      %p3436 = pneg %p3435
    $region70: #{tpu_custom_call.1} parent=5 // pred_check_branch
      %3438 = sbr.rel (%p3436) target = $region72
    $region71: #{tpu_custom_call.1} parent=5 // pred_region
      %s3439 = ssub.s32 %s19, 2
      // Predicated region
      $region73: #{tpu_custom_call.1} parent=71 // pred_check
        %p3440 = pneg %p284
      $region74: #{tpu_custom_call.1} parent=71 // pred_check_branch
        %3442 = sbr.rel (%p3440) target = $region76
      $region75: #{tpu_custom_call.1} parent=71 // pred_region
        %p3443 = scmp.lt.s32.totalorder %s25, 1
        %s3444 = scalar_select %p3443, %s25, 1
        %s3445 = scalar_lea.vmem %s11, %s3444
      $region76: #{tpu_custom_call.1} parent=71 // pred_fallthru
        _
    $region72: #{tpu_custom_call.1} parent=5 // pred_fallthru
      _
  $region6: #{tpu_custom_call.1} parent=0 // loop_footer
    %s23 = sadd.s32 1, %s19
  $region7: #{tpu_custom_call.1} parent=0 // loop_footer_branch
    %18 = sbr.rel target = $region3
  $region8: #{tpu_custom_call.1} parent=0 // loop_exit
    _

</llo_original>
